<compile_context>
chip_gen: v6e
topology: v6e:2x2x1
jax: 0.10.0
libtpu: 0.0.40
codegen_flags: <defaults>
</compile_context>

<pallas_src>
from functools import lru_cache
from typing import List

import jax
import jax.numpy as jnp
from jax import lax
from jax.experimental import pallas as pl
from jax.experimental.pallas import tpu as pltpu


# -----------------------------------------------------------------------------
# In-kernel helpers (trace-time; only static slices / concats / one big dot)
# -----------------------------------------------------------------------------
def _prelu(x, alpha):
    return jnp.where(x >= 0, x, alpha * x)


def _pad1_hw(x, h, w, c):
    """Zero-pad the two spatial dims by 1 on each side (in-kernel, value level)."""
    zr = jnp.zeros((1, w, c), jnp.float32)
    x = jnp.concatenate([zr, x, zr], axis=0)              # (h+2, w, c)
    zc = jnp.zeros((h + 2, 1, c), jnp.float32)
    return jnp.concatenate([zc, x, zc], axis=1)           # (h+2, w+2, c)


def _conv3x3_same(act, w_flat, b, h, w, cin, cout):
    """3x3 'same' conv (stride 1) as one im2col matmul with K = 9*cin."""
    xp = _pad1_hw(act, h, w, cin)
    taps = [xp[ky:ky + h, kx:kx + w, :] for ky in range(3) for kx in range(3)]
    patches = jnp.concatenate(taps, axis=-1).reshape(h * w, 9 * cin)
    acc = jnp.dot(patches, w_flat, preferred_element_type=jnp.float32) + b
    return acc.reshape(h, w, cout)


def _conv3x3_stride2(v, w_flat, b, h2, w2, cin, cout):
    """3x3 / stride-2 / pad-1 conv computed directly at (h2, w2).

    `v` is the (already PReLU'd) input viewed as (h2, 2, w2, 2*cin): axis 1 is
    the row parity, lanes [0:cin] / [cin:2cin] are the even / odd columns.
    Each stride-2 tap is then a static slice of a (zero top/left padded)
    parity plane -- no strided slicing anywhere.
    """
    ve = v[:, 0, :, :]                                     # even rows (h2, w2, 2cin)
    vo = v[:, 1, :, :]                                     # odd rows
    planes = {
        (0, 0): ve[:, :, :cin], (0, 1): ve[:, :, cin:],    # (row parity, col parity)
        (1, 0): vo[:, :, :cin], (1, 1): vo[:, :, cin:],
    }

    def pad_tl(p):                                         # one zero row top, zero col left
        zr = jnp.zeros((1, w2, cin), jnp.float32)
        p = jnp.concatenate([zr, p], axis=0)
        zc = jnp.zeros((h2 + 1, 1, cin), jnp.float32)
        return jnp.concatenate([zc, p], axis=1)            # (h2+1, w2+1, cin)

    padded = {k: pad_tl(p) for k, p in planes.items()}
    # tap ky (or kx) = 0,1,2  ->  (source parity, start offset in padded plane)
    sel = [(1, 0), (0, 1), (1, 1)]
    taps = []
    for rp, r0 in sel:
        for cp, c0 in sel:
            taps.append(padded[(rp, cp)][r0:r0 + h2, c0:c0 + w2, :])
    patches = jnp.concatenate(taps, axis=-1).reshape(h2 * w2, 9 * cin)
    acc = jnp.dot(patches, w_flat, preferred_element_type=jnp.float32) + b
    return acc.reshape(h2, w2, cout)


# -----------------------------------------------------------------------------
# Fused block kernels (one pallas_call per PReLU-conv-PReLU-conv block)
# -----------------------------------------------------------------------------
@lru_cache(maxsize=None)
def _build_conv_block_call(n, h, w, cin, cmid, cout):
    def kernel(x_ref, w1_ref, b1_ref, w2_ref, b2_ref, a_ref, o_ref):
        x = x_ref[0]                                       # (h, w, cin)
        mid = _conv3x3_same(_prelu(x, a_ref[0]), w1_ref[...], b1_ref[...],
                            h, w, cin, cmid)
        out = _conv3x3_same(_prelu(mid, a_ref[1]), w2_ref[...], b2_ref[...],
                            h, w, cmid, cout)
        o_ref[0] = out.astype(o_ref.dtype)

    return pl.pallas_call(
        kernel,
        out_shape=jax.ShapeDtypeStruct((n, h, w, cout), jnp.float32),
        grid=(n,),
        in_specs=[
            pl.BlockSpec((1, h, w, cin), lambda i: (i, 0, 0, 0)),
            pl.BlockSpec((9 * cin, cmid), lambda i: (0, 0)),
            pl.BlockSpec((1, cmid), lambda i: (0, 0)),
            pl.BlockSpec((9 * cmid, cout), lambda i: (0, 0)),
            pl.BlockSpec((1, cout), lambda i: (0, 0)),
            pl.BlockSpec(memory_space=pltpu.MemorySpace.SMEM),
        ],
        out_specs=pl.BlockSpec((1, h, w, cout), lambda i: (i, 0, 0, 0)),
        compiler_params=pltpu.CompilerParams(dimension_semantics=("parallel",)),
    )


@lru_cache(maxsize=None)
def _build_down_block_call(n, h, w, cin, cmid, cout):
    h2, w2 = h // 2, w // 2

    def kernel(x_ref, w1_ref, b1_ref, w2_ref, b2_ref, a_ref, o_ref):
        v = _prelu(x_ref[0], a_ref[0])                     # (h2, 2, w2, 2cin)
        mid = _conv3x3_stride2(v, w1_ref[...], b1_ref[...], h2, w2, cin, cmid)
        out = _conv3x3_same(_prelu(mid, a_ref[1]), w2_ref[...], b2_ref[...],
                            h2, w2, cmid, cout)
        o_ref[0] = out.astype(o_ref.dtype)

    return pl.pallas_call(
        kernel,
        out_shape=jax.ShapeDtypeStruct((n, h2, w2, cout), jnp.float32),
        grid=(n,),
        in_specs=[
            pl.BlockSpec((1, h2, 2, w2, 2 * cin), lambda i: (i, 0, 0, 0, 0)),
            pl.BlockSpec((9 * cin, cmid), lambda i: (0, 0)),
            pl.BlockSpec((1, cmid), lambda i: (0, 0)),
            pl.BlockSpec((9 * cmid, cout), lambda i: (0, 0)),
            pl.BlockSpec((1, cout), lambda i: (0, 0)),
            pl.BlockSpec(memory_space=pltpu.MemorySpace.SMEM),
        ],
        out_specs=pl.BlockSpec((1, h2, w2, cout), lambda i: (i, 0, 0, 0)),
        compiler_params=pltpu.CompilerParams(dimension_semantics=("parallel",)),
    )


# -----------------------------------------------------------------------------
# Bilinear 2x upsample, matching nn.Upsample(scale_factor=2, mode='bilinear',
# align_corners=False): slice/concat based (no gathers).
# -----------------------------------------------------------------------------
def _up2_axis(x, axis):
    n = x.shape[axis]
    sl = lambda a, b: lax.slice_in_dim(x, a, b, axis=axis)
    prev = jnp.concatenate([sl(0, 1), sl(0, n - 1)], axis=axis)   # x[i-1], edge-clamped
    nxt = jnp.concatenate([sl(1, n), sl(n - 1, n)], axis=axis)    # x[i+1], edge-clamped
    even = 0.25 * prev + 0.75 * x                                 # out[2i]   <- i - 0.25
    odd = 0.75 * x + 0.25 * nxt                                   # out[2i+1] <- i + 0.25
    out = jnp.stack([even, odd], axis=axis + 1)
    shape = list(x.shape)
    shape[axis] = 2 * n
    return out.reshape(shape)


def bilinear_upsample2(x):                                        # NHWC
    return _up2_axis(_up2_axis(x, 1), 2)


# -----------------------------------------------------------------------------
# Block application wrappers
# -----------------------------------------------------------------------------
def apply_conv_block(p, x):               # CovnBlock: PReLU,conv, PReLU,conv (stride 1)
    n, h, w, cin = x.shape
    cmid, cout = p["c1"]["w"].shape[1], p["c2"]["w"].shape[1]
    alphas = jnp.stack([p["c1"]["a"], p["c2"]["a"]]).astype(jnp.float32)
    call = _build_conv_block_call(n, h, w, cin, cmid, cout)
    return call(x, p["c1"]["w"], p["c1"]["b"], p["c2"]["w"], p["c2"]["b"], alphas)


def apply_down_block(p, x):               # DownsampleBlock: stride-2 conv then stride-1 conv
    n, h, w, cin = x.shape
    assert h % 2 == 0 and w % 2 == 0, "downsample blocks need even spatial dims"
    cmid, cout = p["c1"]["w"].shape[1], p["c2"]["w"].shape[1]
    alphas = jnp.stack([p["c1"]["a"], p["c2"]["a"]]).astype(jnp.float32)
    v = x.reshape(n, h // 2, 2, w // 2, 2 * cin)          # free row/col-parity view
    call = _build_down_block_call(n, h, w, cin, cmid, cout)
    return call(v, p["c1"]["w"], p["c1"]["b"], p["c2"]["w"], p["c2"]["b"], alphas)


def apply_up_block(p, x):                 # UpsampleBlock: bilinear x2 then two convs
    # TODO(synk): the bilinear 2x upsample (fixed 0.25/0.75 stencil) is plain-JAX
    # glue; folding it into the first conv's im2col inside the kernel is a
    # further possible fusion.
    return apply_conv_block(p, bilinear_upsample2(x))


# -----------------------------------------------------------------------------
# Parameter init (deterministic, synthetic)
# -----------------------------------------------------------------------------
def init_prelu_conv(key, cin, cout):
    k1, k2 = jax.random.split(key)
    w = jax.random.normal(k1, (3, 3, cin, cout), jnp.float32) / jnp.sqrt(9.0 * cin)
    b = jax.random.normal(k2, (cout,), jnp.float32) * 0.01
    return {"a": jnp.float32(0.25),                       # nn.PReLU default (single slope)
            "w": w.reshape(9 * cin, cout),                # im2col-flattened (ky,kx,cin)
            "b": b.reshape(1, cout)}


def init_two_conv_block(key, cin, cout):
    k1, k2 = jax.random.split(key)
    return {"c1": init_prelu_conv(k1, cin, cout),
            "c2": init_prelu_conv(k2, cout, cout)}


def init_gridnet(key, in_channels: List[int], hidden_channels: List[int],
                 columns: int, out_channels: int):
    keys = iter(jax.random.split(key, 256))
    params = {}
    head_cout = [hidden_channels[0]] + hidden_channels
    params["heads"] = [init_two_conv_block(next(keys), i, c)
                       for i, c in zip(in_channels, head_cout)]
    params["downs"] = [None] + [init_two_conv_block(next(keys), cin, cout)
                                for cin, cout in zip(hidden_channels[:-1],
                                                     hidden_channels[1:])]
    ncols = columns - 1
    params["columns"] = []
    for n in range(ncols):
        down = n < ncols // 2
        ch = hidden_channels if down else hidden_channels[::-1]
        params["columns"].append({
            "down": down,
            "res": [init_two_conv_block(next(keys), c, c) for c in ch],
            "bridge": [init_two_conv_block(next(keys), cin, cout)
                       for cin, cout in zip(ch[:-1], ch[1:])],
        })
    params["tail"] = init_two_conv_block(next(keys), hidden_channels[0], out_channels)
    return params


# -----------------------------------------------------------------------------
# GridNet forward
# -----------------------------------------------------------------------------
def apply_column_block(col, inputs):
    if not col["down"]:
        inputs = inputs[::-1]
    outputs = []
    for i, x in enumerate(inputs):
        out = apply_conv_block(col["res"][i], x)
        if i > 0:
            if col["down"]:
                out = out + apply_down_block(col["bridge"][i - 1], outputs[-1])
            else:
                out = out + apply_up_block(col["bridge"][i - 1], outputs[-1])
        outputs.append(out)
    if not col["down"]:
        outputs = outputs[::-1]
    return outputs


def gridnet_forward(params, inputs):
    feats = []
    for i, x in enumerate(inputs):
        feat = apply_conv_block(params["heads"][i], x)
        if i > 0:
            bridge = params["downs"][i - 1]
            if bridge is None:                            # nn.Identity()
                feat = feat + feats[-1]
            else:
                feat = feat + apply_down_block(bridge, feats[-1])
        feats.append(feat)
    feats.pop(0)
    for col in params["columns"]:
        feats = apply_column_block(col, feats)
    output = apply_conv_block(params["tail"], feats[0])
    return output, feats


# -----------------------------------------------------------------------------
# Plain-JAX reference (lax.conv) for spot-checking the fused kernels
# -----------------------------------------------------------------------------
def _ref_conv3x3(x, w_flat, b, stride):
    cin, cout = x.shape[-1], w_flat.shape[-1]
    w = w_flat.reshape(3, 3, cin, cout)
    y = lax.conv_general_dilated(x, w, (stride, stride), ((1, 1), (1, 1)),
                                 dimension_numbers=("NHWC", "HWIO", "NHWC"))
    return y + b.reshape(1, 1, 1, cout)


def _ref_block(p, x, stride1):
    y = _ref_conv3x3(_prelu(x, p["c1"]["a"]), p["c1"]["w"], p["c1"]["b"], stride1)
    return _ref_conv3x3(_prelu(y, p["c2"]["a"]), p["c2"]["w"], p["c2"]["b"], 1)


# -----------------------------------------------------------------------------
if __name__ == "__main__":
    key = jax.random.PRNGKey(0)
    in_channels = [4, 8, 16, 32]
    hidden_channels = [8, 16, 32]
    columns = 4
    out_channels = 3
    N, H, W = 2, 16, 16

    kp, kx, kc = jax.random.split(key, 3)
    params = init_gridnet(kp, in_channels, hidden_channels, columns, out_channels)

    xkeys = jax.random.split(kx, 4)
    # NHWC pyramid inputs (levels 0 and 1 share resolution; deeper levels are
    # each half the previous resolution, as GridNet's down bridges require).
    inputs = [
        jax.random.normal(xkeys[0], (N, H, W, in_channels[0]), jnp.float32),
        jax.random.normal(xkeys[1], (N, H, W, in_channels[1]), jnp.float32),
        jax.random.normal(xkeys[2], (N, H // 2, W // 2, in_channels[2]), jnp.float32),
        jax.random.normal(xkeys[3], (N, H // 4, W // 4, in_channels[3]), jnp.float32),
    ]

    # Spot-check the fused conv and down blocks against a lax.conv reference.
    ck1, ck2, ck3 = jax.random.split(kc, 3)
    xt = jax.random.normal(ck1, (N, H, W, 8), jnp.float32)
    pcb = init_two_conv_block(ck2, 8, 8)
    pdb = init_two_conv_block(ck3, 8, 16)
    err_cb = float(jnp.max(jnp.abs(apply_conv_block(pcb, xt) - _ref_block(pcb, xt, 1))))
    err_db = float(jnp.max(jnp.abs(apply_down_block(pdb, xt) - _ref_block(pdb, xt, 2))))
    assert err_cb < 1e-1 and err_db < 1e-1, (err_cb, err_db)

    output, feats = gridnet_forward(params, inputs)
    jax.block_until_ready(output)
    for f in feats:
        jax.block_until_ready(f)

    assert output.shape == (N, H, W, out_channels)
    assert [tuple(f.shape) for f in feats] == [(N, H, W, 8),
                                               (N, H // 2, W // 2, 16),
                                               (N, H // 4, W // 4, 32)]
    print("KERNEL_OK")
</pallas_src>

<mosaic_0001>
module attributes {stable_mosaic.version = 11 : i64} {
  func.func @kernel(%arg0: i32, %arg1: memref<1x16x16x8xf32, #tpu.memory_space<vmem>>, %arg2: memref<72x8xf32, #tpu.memory_space<vmem>>, %arg3: memref<1x8xf32, #tpu.memory_space<vmem>>, %arg4: memref<72x8xf32, #tpu.memory_space<vmem>>, %arg5: memref<1x8xf32, #tpu.memory_space<vmem>>, %arg6: memref<2xf32, #tpu.memory_space<smem>>, %arg7: memref<1x16x16x8xf32, #tpu.memory_space<vmem>>) attributes {dimension_semantics = [#tpu.dimension_semantics<parallel>], iteration_bounds = array<i64: 2>, scalar_prefetch = 0 : i64, scratch_operands = 0 : i64, tpu.core_type = #tpu.core_type<tc>, window_params = [{transform_indices = @transform_0, window_bounds = array<i64: 1, 16, 16, 8>}, {pipeline_mode = #tpu.pipeline_mode<synchronous>, transform_indices = @transform_1, window_bounds = array<i64: 72, 8>}, {pipeline_mode = #tpu.pipeline_mode<synchronous>, transform_indices = @transform_2, window_bounds = array<i64: 1, 8>}, {pipeline_mode = #tpu.pipeline_mode<synchronous>, transform_indices = @transform_3, window_bounds = array<i64: 72, 8>}, {pipeline_mode = #tpu.pipeline_mode<synchronous>, transform_indices = @transform_4, window_bounds = array<i64: 1, 8>}, {transform_indices = @transform_5, window_bounds = array<i64: 2>}, {transform_indices = @transform_6, window_bounds = array<i64: 1, 16, 16, 8>}]} {
    %c0 = arith.constant 0 : index
    %c0_0 = arith.constant 0 : index
    %c0_1 = arith.constant 0 : index
    %c0_2 = arith.constant 0 : index
    %0 = vector.load %arg1[%c0, %c0_0, %c0_1, %c0_2] : memref<1x16x16x8xf32, #tpu.memory_space<vmem>>, vector<1x16x16x8xf32>
    %1 = vector.shape_cast %0 : vector<1x16x16x8xf32> to vector<16x16x8xf32>
    %c0_3 = arith.constant 0 : index
    %2 = memref.load %arg6[%c0_3] : memref<2xf32, #tpu.memory_space<smem>>
    %cst = arith.constant 0.000000e+00 : f32
    %3 = vector.broadcast %cst : f32 to vector<16x16x8xf32>
    %4 = arith.cmpf oge, %1, %3 : vector<16x16x8xf32>
    %5 = vector.broadcast %2 : f32 to vector<16x16x8xf32>
    %6 = arith.mulf %5, %1 : vector<16x16x8xf32>
    %7 = arith.select %4, %1, %6 : vector<16x16x8xi1>, vector<16x16x8xf32>
    %c0_4 = arith.constant 0 : index
    %c0_5 = arith.constant 0 : index
    %8 = vector.load %arg2[%c0_4, %c0_5] : memref<72x8xf32, #tpu.memory_space<vmem>>, vector<72x8xf32>
    %c0_6 = arith.constant 0 : index
    %c0_7 = arith.constant 0 : index
    %9 = vector.load %arg3[%c0_6, %c0_7] : memref<1x8xf32, #tpu.memory_space<vmem>>, vector<1x8xf32>
    %cst_8 = arith.constant 0.000000e+00 : f32
    %10 = vector.broadcast %cst_8 : f32 to vector<1x16x8xf32>
    %11 = tpu.concatenate %10, %7, %10 in 0 : vector<1x16x8xf32>, vector<16x16x8xf32>, vector<1x16x8xf32> -> vector<18x16x8xf32>
    %cst_9 = arith.constant 0.000000e+00 : f32
    %12 = vector.broadcast %cst_9 : f32 to vector<18x1x8xf32>
    %13 = tpu.concatenate %12, %11, %12 in 1 : vector<18x1x8xf32>, vector<18x16x8xf32>, vector<18x1x8xf32> -> vector<18x18x8xf32>
    %14 = vector.extract_strided_slice %13 {offsets = [0, 0, 0], sizes = [16, 16, 8], strides = [1, 1, 1]} : vector<18x18x8xf32> to vector<16x16x8xf32>
    %15 = vector.extract_strided_slice %13 {offsets = [0, 1, 0], sizes = [16, 16, 8], strides = [1, 1, 1]} : vector<18x18x8xf32> to vector<16x16x8xf32>
    %16 = vector.extract_strided_slice %13 {offsets = [0, 2, 0], sizes = [16, 16, 8], strides = [1, 1, 1]} : vector<18x18x8xf32> to vector<16x16x8xf32>
    %17 = vector.extract_strided_slice %13 {offsets = [1, 0, 0], sizes = [16, 16, 8], strides = [1, 1, 1]} : vector<18x18x8xf32> to vector<16x16x8xf32>
    %18 = vector.extract_strided_slice %13 {offsets = [1, 1, 0], sizes = [16, 16, 8], strides = [1, 1, 1]} : vector<18x18x8xf32> to vector<16x16x8xf32>
    %19 = vector.extract_strided_slice %13 {offsets = [1, 2, 0], sizes = [16, 16, 8], strides = [1, 1, 1]} : vector<18x18x8xf32> to vector<16x16x8xf32>
    %20 = vector.extract_strided_slice %13 {offsets = [2, 0, 0], sizes = [16, 16, 8], strides = [1, 1, 1]} : vector<18x18x8xf32> to vector<16x16x8xf32>
    %21 = vector.extract_strided_slice %13 {offsets = [2, 1, 0], sizes = [16, 16, 8], strides = [1, 1, 1]} : vector<18x18x8xf32> to vector<16x16x8xf32>
    %22 = vector.extract_strided_slice %13 {offsets = [2, 2, 0], sizes = [16, 16, 8], strides = [1, 1, 1]} : vector<18x18x8xf32> to vector<16x16x8xf32>
    %23 = tpu.concatenate %14, %15, %16, %17, %18, %19, %20, %21, %22 in 2 : vector<16x16x8xf32>, vector<16x16x8xf32>, vector<16x16x8xf32>, vector<16x16x8xf32>, vector<16x16x8xf32>, vector<16x16x8xf32>, vector<16x16x8xf32>, vector<16x16x8xf32>, vector<16x16x8xf32> -> vector<16x16x72xf32>
    %24 = vector.shape_cast %23 : vector<16x16x72xf32> to vector<256x72xf32>
    %cst_10 = arith.constant dense<0.000000e+00> : vector<256x8xf32>
    %25 = tpu.matmul %24, %8, %cst_10 {dimension_numbers = #tpu.dot_dimension_numbers<[1], [0], [0], [1], [0, 0, 1, 1], [], []>} : vector<256x72xf32>, vector<72x8xf32>, vector<256x8xf32> -> vector<256x8xf32>
    %26 = vector.broadcast %9 : vector<1x8xf32> to vector<256x8xf32>
    %27 = arith.addf %25, %26 : vector<256x8xf32>
    %28 = vector.shape_cast %27 : vector<256x8xf32> to vector<16x16x8xf32>
    %c1 = arith.constant 1 : index
    %29 = memref.load %arg6[%c1] : memref<2xf32, #tpu.memory_space<smem>>
    %cst_11 = arith.constant 0.000000e+00 : f32
    %30 = vector.broadcast %cst_11 : f32 to vector<16x16x8xf32>
    %31 = arith.cmpf oge, %28, %30 : vector<16x16x8xf32>
    %32 = vector.broadcast %29 : f32 to vector<16x16x8xf32>
    %33 = arith.mulf %32, %28 : vector<16x16x8xf32>
    %34 = arith.select %31, %28, %33 : vector<16x16x8xi1>, vector<16x16x8xf32>
    %c0_12 = arith.constant 0 : index
    %c0_13 = arith.constant 0 : index
    %35 = vector.load %arg4[%c0_12, %c0_13] : memref<72x8xf32, #tpu.memory_space<vmem>>, vector<72x8xf32>
    %c0_14 = arith.constant 0 : index
    %c0_15 = arith.constant 0 : index
    %36 = vector.load %arg5[%c0_14, %c0_15] : memref<1x8xf32, #tpu.memory_space<vmem>>, vector<1x8xf32>
    %cst_16 = arith.constant 0.000000e+00 : f32
    %37 = vector.broadcast %cst_16 : f32 to vector<1x16x8xf32>
    %38 = tpu.concatenate %37, %34, %37 in 0 : vector<1x16x8xf32>, vector<16x16x8xf32>, vector<1x16x8xf32> -> vector<18x16x8xf32>
    %cst_17 = arith.constant 0.000000e+00 : f32
    %39 = vector.broadcast %cst_17 : f32 to vector<18x1x8xf32>
    %40 = tpu.concatenate %39, %38, %39 in 1 : vector<18x1x8xf32>, vector<18x16x8xf32>, vector<18x1x8xf32> -> vector<18x18x8xf32>
    %41 = vector.extract_strided_slice %40 {offsets = [0, 0, 0], sizes = [16, 16, 8], strides = [1, 1, 1]} : vector<18x18x8xf32> to vector<16x16x8xf32>
    %42 = vector.extract_strided_slice %40 {offsets = [0, 1, 0], sizes = [16, 16, 8], strides = [1, 1, 1]} : vector<18x18x8xf32> to vector<16x16x8xf32>
    %43 = vector.extract_strided_slice %40 {offsets = [0, 2, 0], sizes = [16, 16, 8], strides = [1, 1, 1]} : vector<18x18x8xf32> to vector<16x16x8xf32>
    %44 = vector.extract_strided_slice %40 {offsets = [1, 0, 0], sizes = [16, 16, 8], strides = [1, 1, 1]} : vector<18x18x8xf32> to vector<16x16x8xf32>
    %45 = vector.extract_strided_slice %40 {offsets = [1, 1, 0], sizes = [16, 16, 8], strides = [1, 1, 1]} : vector<18x18x8xf32> to vector<16x16x8xf32>
    %46 = vector.extract_strided_slice %40 {offsets = [1, 2, 0], sizes = [16, 16, 8], strides = [1, 1, 1]} : vector<18x18x8xf32> to vector<16x16x8xf32>
    %47 = vector.extract_strided_slice %40 {offsets = [2, 0, 0], sizes = [16, 16, 8], strides = [1, 1, 1]} : vector<18x18x8xf32> to vector<16x16x8xf32>
    %48 = vector.extract_strided_slice %40 {offsets = [2, 1, 0], sizes = [16, 16, 8], strides = [1, 1, 1]} : vector<18x18x8xf32> to vector<16x16x8xf32>
    %49 = vector.extract_strided_slice %40 {offsets = [2, 2, 0], sizes = [16, 16, 8], strides = [1, 1, 1]} : vector<18x18x8xf32> to vector<16x16x8xf32>
    %50 = tpu.concatenate %41, %42, %43, %44, %45, %46, %47, %48, %49 in 2 : vector<16x16x8xf32>, vector<16x16x8xf32>, vector<16x16x8xf32>, vector<16x16x8xf32>, vector<16x16x8xf32>, vector<16x16x8xf32>, vector<16x16x8xf32>, vector<16x16x8xf32>, vector<16x16x8xf32> -> vector<16x16x72xf32>
    %51 = vector.shape_cast %50 : vector<16x16x72xf32> to vector<256x72xf32>
    %cst_18 = arith.constant dense<0.000000e+00> : vector<256x8xf32>
    %52 = tpu.matmul %51, %35, %cst_18 {dimension_numbers = #tpu.dot_dimension_numbers<[1], [0], [0], [1], [0, 0, 1, 1], [], []>} : vector<256x72xf32>, vector<72x8xf32>, vector<256x8xf32> -> vector<256x8xf32>
    %53 = vector.broadcast %36 : vector<1x8xf32> to vector<256x8xf32>
    %54 = arith.addf %52, %53 : vector<256x8xf32>
    %55 = vector.shape_cast %54 : vector<256x8xf32> to vector<16x16x8xf32>
    %c0_19 = arith.constant 0 : index
    %c0_20 = arith.constant 0 : index
    %c0_21 = arith.constant 0 : index
    %c0_22 = arith.constant 0 : index
    %56 = vector.load %arg7[%c0_19, %c0_20, %c0_21, %c0_22] : memref<1x16x16x8xf32, #tpu.memory_space<vmem>>, vector<1x16x16x8xf32>
    %57 = vector.shape_cast %56 : vector<1x16x16x8xf32> to vector<16x16x8xf32>
    %58 = vector.shape_cast %55 : vector<16x16x8xf32> to vector<1x16x16x8xf32>
    tpu.vector_store %arg7[%c0_19, %c0_20, %c0_21, %c0_22], %58 {strides = array<i32>} : memref<1x16x16x8xf32, #tpu.memory_space<vmem>>, vector<1x16x16x8xf32>,
    return
  }
  func.func @transform_0(%arg0: i32) -> (i32, i32, i32, i32) {
    %c0_i32 = arith.constant 0 : i32
    %c0_i32_0 = arith.constant 0 : i32
    %c0_i32_1 = arith.constant 0 : i32
    %c0_i32_2 = arith.constant 0 : i32
    return %arg0, %c0_i32, %c0_i32_0, %c0_i32_1 : i32, i32, i32, i32
  }
  func.func @transform_1(%arg0: i32) -> (i32, i32) {
    %c0_i32 = arith.constant 0 : i32
    %c0_i32_0 = arith.constant 0 : i32
    %c0_i32_1 = arith.constant 0 : i32
    return %c0_i32, %c0_i32_0 : i32, i32
  }
  func.func @transform_2(%arg0: i32) -> (i32, i32) {
    %c0_i32 = arith.constant 0 : i32
    %c0_i32_0 = arith.constant 0 : i32
    %c0_i32_1 = arith.constant 0 : i32
    return %c0_i32, %c0_i32_0 : i32, i32
  }
  func.func @transform_3(%arg0: i32) -> (i32, i32) {
    %c0_i32 = arith.constant 0 : i32
    %c0_i32_0 = arith.constant 0 : i32
    %c0_i32_1 = arith.constant 0 : i32
    return %c0_i32, %c0_i32_0 : i32, i32
  }
  func.func @transform_4(%arg0: i32) -> (i32, i32) {
    %c0_i32 = arith.constant 0 : i32
    %c0_i32_0 = arith.constant 0 : i32
    %c0_i32_1 = arith.constant 0 : i32
    return %c0_i32, %c0_i32_0 : i32, i32
  }
  func.func @transform_5(%arg0: i32) -> i32 {
    %c0_i32 = arith.constant 0 : i32
    %c0_i32_0 = arith.constant 0 : i32
    return %c0_i32 : i32
  }
  func.func @transform_6(%arg0: i32) -> (i32, i32, i32, i32) {
    %c0_i32 = arith.constant 0 : i32
    %c0_i32_0 = arith.constant 0 : i32
    %c0_i32_1 = arith.constant 0 : i32
    %c0_i32_2 = arith.constant 0 : i32
    return %arg0, %c0_i32, %c0_i32_0, %c0_i32_1 : i32, i32, i32, i32
  }
}

</mosaic_0001>

<llo_original>
// kernel: tpu_custom_call.1
$region0: #{tpu_custom_call.1}
  #allocation0 [shape = 'u32[]', space=smem, size = 0x4, offset = 0x4, fixed_abs, tag = 'smem constant byte address 0x4 - core index']
  #allocation1 [shape = 'u32[144,128]{1,0:T(1,128)}', space=vmem, size = 0x12000, scoped, tag = 'internal scratch']
  %s0 = inlined_call_operand.vmem [shape: f32[2,16,16,8], index: 0, kind: input, shape index: {}]
  %s1 = inlined_call_operand.vmem [shape: f32[72,8], index: 1, kind: input, shape index: {}]
  %s2 = inlined_call_operand.vmem [shape: f32[1,8], index: 2, kind: input, shape index: {}]
  %s3 = inlined_call_operand.vmem [shape: f32[72,8], index: 3, kind: input, shape index: {}]
  %s4 = inlined_call_operand.vmem [shape: f32[1,8], index: 4, kind: input, shape index: {}]
  %s5 = inlined_call_operand.vmem [shape: f32[2], index: 5, kind: input, shape index: {}]
  %s6 = inlined_call_operand.vmem [shape: f32[2,16,16,8], index: 6, kind: output, shape index: {}]
  %s7 = sld [smem:[#allocation0]]
  $region61: #{tpu_custom_call.1} parent=0
    _
  %s9 = ssub.s32 1, %s7
  %s10 = scalar_select 0, %s9, %s7
  $region1: #{tpu_custom_call.1} parent=0
    #allocation2 [shape = 'u8[512]{0}', space=smem, size = 0x200, scoped, tag = 'input window, operand 5, single buffered']
    #allocation3 [shape = 's32[2]{0}', space=sflag, size = 0x8, scoped, tag = 'scoped memory for tpu_custom_call.1']
    %11 = vsyncpa [#allocation3], 0
    loop: start=0, step=1, limit=4
    $region2: #{tpu_custom_call.1} parent=1 // loop_pre_header
      _
    $region3: #{tpu_custom_call.1} parent=1 // loop_header
      %s13 = sphi 0, %s17
      %p14 = scmp.ge.s32.totalorder %s13, 4
      %s23 = sphi 0, %s25
      %s26 = sphi 0, %s23
      %s27 = sphi 0, %s26
      %s43 = sphi 0, %s27
      %s47 = sphi 0, %s47
      %s49 = sphi 0, %s47
      %s50 = sphi 0, %s49
      %s64 = sphi 0, %s50
      %s68 = sphi 0, %s68
      %s70 = sphi 0, %s68
      %s71 = sphi 0, %s70
      %s85 = sphi 0, %s71
      %s89 = sphi 0, %s89
      %s91 = sphi 0, %s89
      %s92 = sphi 0, %s91
      %s106 = sphi 0, %s92
      %s110 = sphi 0, %s110
      %s112 = sphi 0, %s110
      %s113 = sphi 0, %s112
      %s127 = sphi 0, %s113
      %s131 = sphi 0, %s131
      %s133 = sphi 0, %s131
      %s134 = sphi 0, %s133
      %s148 = sphi 0, %s134
      %s154 = sphi 0, %s156
      %s157 = sphi 0, %s154
      %s158 = sphi 0, %s157
      %s174 = sphi 0, %s158
    $region4: #{tpu_custom_call.1} parent=1 // loop_header_branch
      %16 = sbr.rel (%p14) target = $region8
    $region5: #{tpu_custom_call.1} parent=1 // loop_body
      %s18 = ssub.s32 %s13, 1
      %s19 = ssub.s32 %s13, 2
      %s20 = sadd.s32 %s13, 1
      %s21 = ssub.s32 %s13, %s20
      %p22 = scmp.eq.s32.totalorder %s21, 0
      %s24 = sadd.s32 %s23, 1
      %s25 = scalar_select %p22, %s23, %s24
      %p28 = pneg %p22
      %p29 = scmp.eq.s32.totalorder %s13, 1
      %p30 = por %p28, %p29
      %p31 = scmp.ne.s32.totalorder %s23, %s26
      %p32 = scmp.eq.s32.totalorder %s13, 0
      %p33 = por %p31, %p32
      %p34 = scmp.ne.s32.totalorder %s23, %s26
      %p35 = scmp.eq.s32.totalorder %s18, 1
      %p36 = por %p34, %p35
      %p37 = scmp.ne.s32.totalorder %s26, %s27
      %p38 = scmp.eq.s32.totalorder %s18, 0
      %p39 = por %p37, %p38
      %p40 = scmp.ne.s32.totalorder %s26, %s27
      %p41 = scmp.eq.s32.totalorder %s19, 1
      %p42 = por %p40, %p41
      %p44 = scmp.ne.s32.totalorder %s27, %s43
      %p45 = scmp.eq.s32.totalorder %s19, 0
      %p46 = por %p44, %p45
      %s48 = sadd.s32 %s47, 1
      %p51 = scmp.eq.s32.totalorder %s13, 1
      %p52 = scmp.ne.s32.totalorder %s47, %s49
      %p53 = scmp.eq.s32.totalorder %s13, 0
      %p54 = por %p52, %p53
      %p55 = scmp.ne.s32.totalorder %s47, %s49
      %p56 = scmp.eq.s32.totalorder %s18, 1
      %p57 = por %p55, %p56
      %p58 = scmp.ne.s32.totalorder %s49, %s50
      %p59 = scmp.eq.s32.totalorder %s18, 0
      %p60 = por %p58, %p59
      %p61 = scmp.ne.s32.totalorder %s49, %s50
      %p62 = scmp.eq.s32.totalorder %s19, 1
      %p63 = por %p61, %p62
      %p65 = scmp.ne.s32.totalorder %s50, %s64
      %p66 = scmp.eq.s32.totalorder %s19, 0
      %p67 = por %p65, %p66
      %s69 = sadd.s32 %s68, 1
      %p72 = scmp.eq.s32.totalorder %s13, 1
      %p73 = scmp.ne.s32.totalorder %s68, %s70
      %p74 = scmp.eq.s32.totalorder %s13, 0
      %p75 = por %p73, %p74
      %p76 = scmp.ne.s32.totalorder %s68, %s70
      %p77 = scmp.eq.s32.totalorder %s18, 1
      %p78 = por %p76, %p77
      %p79 = scmp.ne.s32.totalorder %s70, %s71
      %p80 = scmp.eq.s32.totalorder %s18, 0
      %p81 = por %p79, %p80
      %p82 = scmp.ne.s32.totalorder %s70, %s71
      %p83 = scmp.eq.s32.totalorder %s19, 1
      %p84 = por %p82, %p83
      %p86 = scmp.ne.s32.totalorder %s71, %s85
      %p87 = scmp.eq.s32.totalorder %s19, 0
      %p88 = por %p86, %p87
      %s90 = sadd.s32 %s89, 1
      %p93 = scmp.eq.s32.totalorder %s13, 1
      %p94 = scmp.ne.s32.totalorder %s89, %s91
      %p95 = scmp.eq.s32.totalorder %s13, 0
      %p96 = por %p94, %p95
      %p97 = scmp.ne.s32.totalorder %s89, %s91
      %p98 = scmp.eq.s32.totalorder %s18, 1
      %p99 = por %p97, %p98
      %p100 = scmp.ne.s32.totalorder %s91, %s92
      %p101 = scmp.eq.s32.totalorder %s18, 0
      %p102 = por %p100, %p101
      %p103 = scmp.ne.s32.totalorder %s91, %s92
      %p104 = scmp.eq.s32.totalorder %s19, 1
      %p105 = por %p103, %p104
      %p107 = scmp.ne.s32.totalorder %s92, %s106
      %p108 = scmp.eq.s32.totalorder %s19, 0
      %p109 = por %p107, %p108
      %s111 = sadd.s32 %s110, 1
      %p114 = scmp.eq.s32.totalorder %s13, 1
      %p115 = scmp.ne.s32.totalorder %s110, %s112
      %p116 = scmp.eq.s32.totalorder %s13, 0
      %p117 = por %p115, %p116
      %p118 = scmp.ne.s32.totalorder %s110, %s112
      %p119 = scmp.eq.s32.totalorder %s18, 1
      %p120 = por %p118, %p119
      %p121 = scmp.ne.s32.totalorder %s112, %s113
      %p122 = scmp.eq.s32.totalorder %s18, 0
      %p123 = por %p121, %p122
      %p124 = scmp.ne.s32.totalorder %s112, %s113
      %p125 = scmp.eq.s32.totalorder %s19, 1
      %p126 = por %p124, %p125
      %p128 = scmp.ne.s32.totalorder %s113, %s127
      %p129 = scmp.eq.s32.totalorder %s19, 0
      %p130 = por %p128, %p129
      %s132 = sadd.s32 %s131, 1
      %p135 = scmp.eq.s32.totalorder %s13, 1
      %p136 = scmp.ne.s32.totalorder %s131, %s133
      %p137 = scmp.eq.s32.totalorder %s13, 0
      %p138 = por %p136, %p137
      %p139 = scmp.ne.s32.totalorder %s131, %s133
      %p140 = scmp.eq.s32.totalorder %s18, 1
      %p141 = por %p139, %p140
      %p142 = scmp.ne.s32.totalorder %s133, %s134
      %p143 = scmp.eq.s32.totalorder %s18, 0
      %p144 = por %p142, %p143
      %p145 = scmp.ne.s32.totalorder %s133, %s134
      %p146 = scmp.eq.s32.totalorder %s19, 1
      %p147 = por %p145, %p146
      %p149 = scmp.ne.s32.totalorder %s134, %s148
      %p150 = scmp.eq.s32.totalorder %s19, 0
      %p151 = por %p149, %p150
      %s152 = ssub.s32 %s13, %s20
      %p153 = scmp.eq.s32.totalorder %s152, 0
      %s155 = sadd.s32 %s154, 1
      %s156 = scalar_select %p153, %s154, %s155
      %p159 = pneg %p153
      %p160 = scmp.eq.s32.totalorder %s13, 1
      %p161 = por %p159, %p160
      %p162 = scmp.ne.s32.totalorder %s154, %s157
      %p163 = scmp.eq.s32.totalorder %s13, 0
      %p164 = por %p162, %p163
      %p165 = scmp.ne.s32.totalorder %s154, %s157
      %p166 = scmp.eq.s32.totalorder %s18, 1
      %p167 = por %p165, %p166
      %p168 = scmp.ne.s32.totalorder %s157, %s158
      %p169 = scmp.eq.s32.totalorder %s18, 0
      %p170 = por %p168, %p169
      %p171 = scmp.ne.s32.totalorder %s157, %s158
      %p172 = scmp.eq.s32.totalorder %s19, 1
      %p173 = por %p171, %p172
      %p175 = scmp.ne.s32.totalorder %s158, %s174
      %p176 = scmp.eq.s32.totalorder %s19, 0
      %p177 = por %p175, %p176
      %p178 = scmp.le.s32.totalorder 1, %s13
      %p179 = scmp.lt.s32.totalorder %s13, 3
      %p180 = pnand %p178, %p179
      %p181 = pneg %p180
      // Predicated region
      $region9: #{tpu_custom_call.1} parent=5 // pred_check
        _
      $region10: #{tpu_custom_call.1} parent=5 // pred_check_branch
        %183 = sbr.rel (%p180) target = $region12
      $region11: #{tpu_custom_call.1} parent=5 // pred_region
        %s184 = ssub.s32 %s13, 1
        // Predicated region
        $region13: #{tpu_custom_call.1} parent=11 // pred_check
          %p185 = pneg %p60
        $region14: #{tpu_custom_call.1} parent=11 // pred_check_branch
          %187 = sbr.rel (%p185) target = $region16
        $region15: #{tpu_custom_call.1} parent=11 // pred_region
          _
        $region16: #{tpu_custom_call.1} parent=11 // pred_fallthru
          _
        // Predicated region
        $region17: #{tpu_custom_call.1} parent=11 // pred_check
          %p188 = pneg %p81
        $region18: #{tpu_custom_call.1} parent=11 // pred_check_branch
          %190 = sbr.rel (%p188) target = $region20
        $region19: #{tpu_custom_call.1} parent=11 // pred_region
          _
        $region20: #{tpu_custom_call.1} parent=11 // pred_fallthru
          _
        // Predicated region
        $region21: #{tpu_custom_call.1} parent=11 // pred_check
          %p191 = pneg %p102
        $region22: #{tpu_custom_call.1} parent=11 // pred_check_branch
          %193 = sbr.rel (%p191) target = $region24
        $region23: #{tpu_custom_call.1} parent=11 // pred_region
          _
        $region24: #{tpu_custom_call.1} parent=11 // pred_fallthru
          _
        // Predicated region
        $region25: #{tpu_custom_call.1} parent=11 // pred_check
          %p194 = pneg %p123
        $region26: #{tpu_custom_call.1} parent=11 // pred_check_branch
          %196 = sbr.rel (%p194) target = $region28
        $region27: #{tpu_custom_call.1} parent=11 // pred_region
          _
        $region28: #{tpu_custom_call.1} parent=11 // pred_fallthru
          _
        // Predicated region
        $region29: #{tpu_custom_call.1} parent=11 // pred_check
          %p197 = pneg %p144
        $region30: #{tpu_custom_call.1} parent=11 // pred_check_branch
          %199 = sbr.rel (%p197) target = $region32
        $region31: #{tpu_custom_call.1} parent=11 // pred_region
          %s201 = ssub.s32 16, 16
          %202 = vsyncadd [#allocation3], %s201
          %s204 = sshll.u32 %s5, 4
          %s205 = int_to_ptr.vmem [resolvable:$true] %s204
          %207 = dma.vmem_to_smem %s205, 16, [#allocation2], [#allocation3]
        $region32: #{tpu_custom_call.1} parent=11 // pred_fallthru
          _
      $region12: #{tpu_custom_call.1} parent=5 // pred_fallthru
        _
      %p208 = scmp.lt.s32.totalorder %s13, 2
      // Predicated region
      $region33: #{tpu_custom_call.1} parent=5 // pred_check
        %p209 = pneg %p208
      $region34: #{tpu_custom_call.1} parent=5 // pred_check_branch
        %211 = sbr.rel (%p209) target = $region36
      $region35: #{tpu_custom_call.1} parent=5 // pred_region
        // Predicated region
        $region37: #{tpu_custom_call.1} parent=35 // pred_check
          %p212 = pneg %p33
        $region38: #{tpu_custom_call.1} parent=35 // pred_check_branch
          %214 = sbr.rel (%p212) target = $region40
        $region39: #{tpu_custom_call.1} parent=35 // pred_region
          %p215 = scmp.lt.s32.totalorder %s13, 1
          %s216 = scalar_select %p215, %s13, 1
          %s217 = smul.addr %s216, 32
          %s218 = smul.addr %s217, 8
          %s219 = scalar_lea.vmem %s0, %s218
        $region40: #{tpu_custom_call.1} parent=35 // pred_fallthru
          _
      $region36: #{tpu_custom_call.1} parent=5 // pred_fallthru
        _
      %p220 = scmp.le.s32.totalorder 1, %s13
      %p221 = scmp.lt.s32.totalorder %s13, 3
      %p222 = pnand %p220, %p221
      %p223 = pneg %p222
      // Predicated region
      $region41: #{tpu_custom_call.1} parent=5 // pred_check
        _
      $region42: #{tpu_custom_call.1} parent=5 // pred_check_branch
        %225 = sbr.rel (%p222) target = $region44
      $region43: #{tpu_custom_call.1} parent=5 // pred_region
        %s226 = ssub.s32 %s13, 1
        // Predicated region
        $region45: #{tpu_custom_call.1} parent=43 // pred_check
          %p227 = pneg %p144
        $region46: #{tpu_custom_call.1} parent=43 // pred_check_branch
          %229 = sbr.rel (%p227) target = $region48
        $region47: #{tpu_custom_call.1} parent=43 // pred_region
          %230 = dma.done [#allocation3], 16
        $region48: #{tpu_custom_call.1} parent=43 // pred_fallthru
          _
        %231 = sfence
        %p232 = scmp.lt.s32.totalorder %s18, 1
        %s233 = scalar_select %p232, %s18, 1
        %s234 = smul.addr %s233, 32
        %s235 = smul.addr %s234, 8
        %s236 = scalar_lea.vmem %s0, %s235
        %p237 = pneg %p39
        %p238 = pneg %p36
        %p239 = pneg %p60
        %p240 = pneg %p57
        %p241 = pneg %p81
        %p242 = pneg %p78
        %p243 = pneg %p102
        %p244 = pneg %p99
        %p245 = pneg %p123
        %p246 = pneg %p120
        %p247 = pneg %p144
        %p248 = pneg %p141
        %p249 = pneg %p170
        %p250 = pneg %p167
        %p251 = scmp.lt.s32.totalorder %s18, 1
        %s252 = scalar_select %p251, %s18, 1
        %s253 = smul.addr %s252, 32
        %s254 = smul.addr %s253, 8
        %s255 = scalar_lea.vmem %s6, %s254
        %p256 = scmp.lt.s32.totalorder %s18, 1
        %s257 = scalar_select %p256, %s18, 1
        %s258 = smul.addr %s257, 32
        %s259 = smul.addr %s258, 8
        %s260 = scalar_lea.vmem %s0, %s259
        %p261 = scmp.lt.s32.totalorder %s18, 1
        %s262 = scalar_select %p261, %s18, 1
        %s263 = smul.addr %s262, 32
        %s264 = smul.addr %s263, 8
        %s265 = scalar_lea.vmem %s6, %s264
        %v266 = vld [vmem:[%s260] sm:$0xff]
        %v267 = vld [vmem:[%s260 + $0x8] sm:$0xff]
        %v268 = vld [vmem:[%s260 + $0x10] sm:$0xff]
        %v269 = vld [vmem:[%s260 + $0x18] sm:$0xff]
        %v270 = vld [vmem:[%s260 + $0x20] sm:$0xff]
        %v271 = vld [vmem:[%s260 + $0x28] sm:$0xff]
        %v272 = vld [vmem:[%s260 + $0x30] sm:$0xff]
        %v273 = vld [vmem:[%s260 + $0x38] sm:$0xff]
        %v274 = vld [vmem:[%s260 + $0x40] sm:$0xff]
        %v275 = vld [vmem:[%s260 + $0x48] sm:$0xff]
        %v276 = vld [vmem:[%s260 + $0x50] sm:$0xff]
        %v277 = vld [vmem:[%s260 + $0x58] sm:$0xff]
        %v278 = vld [vmem:[%s260 + $0x60] sm:$0xff]
        %v279 = vld [vmem:[%s260 + $0x68] sm:$0xff]
        %v280 = vld [vmem:[%s260 + $0x70] sm:$0xff]
        %v281 = vld [vmem:[%s260 + $0x78] sm:$0xff]
        %v282 = vld [vmem:[%s260 + $0x80] sm:$0xff]
        %v283 = vld [vmem:[%s260 + $0x88] sm:$0xff]
        %v284 = vld [vmem:[%s260 + $0x90] sm:$0xff]
        %v285 = vld [vmem:[%s260 + $0x98] sm:$0xff]
        %v286 = vld [vmem:[%s260 + $0xa0] sm:$0xff]
        %v287 = vld [vmem:[%s260 + $0xa8] sm:$0xff]
        %v288 = vld [vmem:[%s260 + $0xb0] sm:$0xff]
        %v289 = vld [vmem:[%s260 + $0xb8] sm:$0xff]
        %v290 = vld [vmem:[%s260 + $0xc0] sm:$0xff]
        %v291 = vld [vmem:[%s260 + $0xc8] sm:$0xff]
        %v292 = vld [vmem:[%s260 + $0xd0] sm:$0xff]
        %v293 = vld [vmem:[%s260 + $0xd8] sm:$0xff]
        %v294 = vld [vmem:[%s260 + $0xe0] sm:$0xff]
        %v295 = vld [vmem:[%s260 + $0xe8] sm:$0xff]
        %v296 = vld [vmem:[%s260 + $0xf0] sm:$0xff]
        %v297 = vld [vmem:[%s260 + $0xf8] sm:$0xff]
        %s298 = sld [smem:[#allocation2]]
        %vm299 = vcmp.ge.f32.partialorder %v266, 0.0
        %vm300 = vcmp.ge.f32.partialorder %v267, 0.0
        %vm301 = vcmp.ge.f32.partialorder %v268, 0.0
        %vm302 = vcmp.ge.f32.partialorder %v269, 0.0
        %vm303 = vcmp.ge.f32.partialorder %v270, 0.0
        %vm304 = vcmp.ge.f32.partialorder %v271, 0.0
        %vm305 = vcmp.ge.f32.partialorder %v272, 0.0
        %vm306 = vcmp.ge.f32.partialorder %v273, 0.0
        %vm307 = vcmp.ge.f32.partialorder %v274, 0.0
        %vm308 = vcmp.ge.f32.partialorder %v275, 0.0
        %vm309 = vcmp.ge.f32.partialorder %v276, 0.0
        %vm310 = vcmp.ge.f32.partialorder %v277, 0.0
        %vm311 = vcmp.ge.f32.partialorder %v278, 0.0
        %vm312 = vcmp.ge.f32.partialorder %v279, 0.0
        %vm313 = vcmp.ge.f32.partialorder %v280, 0.0
        %vm314 = vcmp.ge.f32.partialorder %v281, 0.0
        %vm315 = vcmp.ge.f32.partialorder %v282, 0.0
        %vm316 = vcmp.ge.f32.partialorder %v283, 0.0
        %vm317 = vcmp.ge.f32.partialorder %v284, 0.0
        %vm318 = vcmp.ge.f32.partialorder %v285, 0.0
        %vm319 = vcmp.ge.f32.partialorder %v286, 0.0
        %vm320 = vcmp.ge.f32.partialorder %v287, 0.0
        %vm321 = vcmp.ge.f32.partialorder %v288, 0.0
        %vm322 = vcmp.ge.f32.partialorder %v289, 0.0
        %vm323 = vcmp.ge.f32.partialorder %v290, 0.0
        %vm324 = vcmp.ge.f32.partialorder %v291, 0.0
        %vm325 = vcmp.ge.f32.partialorder %v292, 0.0
        %vm326 = vcmp.ge.f32.partialorder %v293, 0.0
        %vm327 = vcmp.ge.f32.partialorder %v294, 0.0
        %vm328 = vcmp.ge.f32.partialorder %v295, 0.0
        %vm329 = vcmp.ge.f32.partialorder %v296, 0.0
        %vm330 = vcmp.ge.f32.partialorder %v297, 0.0
        %v331 = vstv %s298
        %v332 = vmul.f32 %v331, %v266
        %v333 = vmul.f32 %v331, %v267
        %v334 = vmul.f32 %v331, %v268
        %v335 = vmul.f32 %v331, %v269
        %v336 = vmul.f32 %v331, %v270
        %v337 = vmul.f32 %v331, %v271
        %v338 = vmul.f32 %v331, %v272
        %v339 = vmul.f32 %v331, %v273
        %v340 = vmul.f32 %v331, %v274
        %v341 = vmul.f32 %v331, %v275
        %v342 = vmul.f32 %v331, %v276
        %v343 = vmul.f32 %v331, %v277
        %v344 = vmul.f32 %v331, %v278
        %v345 = vmul.f32 %v331, %v279
        %v346 = vmul.f32 %v331, %v280
        %v347 = vmul.f32 %v331, %v281
        %v348 = vmul.f32 %v331, %v282
        %v349 = vmul.f32 %v331, %v283
        %v350 = vmul.f32 %v331, %v284
        %v351 = vmul.f32 %v331, %v285
        %v352 = vmul.f32 %v331, %v286
        %v353 = vmul.f32 %v331, %v287
        %v354 = vmul.f32 %v331, %v288
        %v355 = vmul.f32 %v331, %v289
        %v356 = vmul.f32 %v331, %v290
        %v357 = vmul.f32 %v331, %v291
        %v358 = vmul.f32 %v331, %v292
        %v359 = vmul.f32 %v331, %v293
        %v360 = vmul.f32 %v331, %v294
        %v361 = vmul.f32 %v331, %v295
        %v362 = vmul.f32 %v331, %v296
        %v363 = vmul.f32 %v331, %v297
        %v364 = vsel %vm299, %v266, %v332
        %v365 = vsel %vm300, %v267, %v333
        %v366 = vsel %vm301, %v268, %v334
        %v367 = vsel %vm302, %v269, %v335
        %v368 = vsel %vm303, %v270, %v336
        %v369 = vsel %vm304, %v271, %v337
        %v370 = vsel %vm305, %v272, %v338
        %v371 = vsel %vm306, %v273, %v339
        %v372 = vsel %vm307, %v274, %v340
        %v373 = vsel %vm308, %v275, %v341
        %v374 = vsel %vm309, %v276, %v342
        %v375 = vsel %vm310, %v277, %v343
        %v376 = vsel %vm311, %v278, %v344
        %v377 = vsel %vm312, %v279, %v345
        %v378 = vsel %vm313, %v280, %v346
        %v379 = vsel %vm314, %v281, %v347
        %v380 = vsel %vm315, %v282, %v348
        %v381 = vsel %vm316, %v283, %v349
        %v382 = vsel %vm317, %v284, %v350
        %v383 = vsel %vm318, %v285, %v351
        %v384 = vsel %vm319, %v286, %v352
        %v385 = vsel %vm320, %v287, %v353
        %v386 = vsel %vm321, %v288, %v354
        %v387 = vsel %vm322, %v289, %v355
        %v388 = vsel %vm323, %v290, %v356
        %v389 = vsel %vm324, %v291, %v357
        %v390 = vsel %vm325, %v292, %v358
        %v391 = vsel %vm326, %v293, %v359
        %v392 = vsel %vm327, %v294, %v360
        %v393 = vsel %vm328, %v295, %v361
        %v394 = vsel %vm329, %v296, %v362
        %v395 = vsel %vm330, %v297, %v363
        %v396 = vld [vmem:[%s1] sm:$0xff]
        %v397 = vld [vmem:[%s1 + $0x8] sm:$0xff]
        %v398 = vld [vmem:[%s1 + $0x10] sm:$0xff]
        %v399 = vld [vmem:[%s1 + $0x18] sm:$0xff]
        %v400 = vld [vmem:[%s1 + $0x20] sm:$0xff]
        %v401 = vld [vmem:[%s1 + $0x28] sm:$0xff]
        %v402 = vld [vmem:[%s1 + $0x30] sm:$0xff]
        %v403 = vld [vmem:[%s1 + $0x38] sm:$0xff]
        %v404 = vld [vmem:[%s1 + $0x40] sm:$0xff]
        %v405 = vld [vmem:[%s2] sm:$0x1]
        %vm439 = vcmask 1040384
        %v440 = vrot.slane 0.0, 7
        %v441 = vsel %vm439, %v440, %v440
        %v442 = vrot.slane %v364, 7
        %v443 = vrot.slane %v365, 7
        %v444 = vsel %vm439, %v442, %v443
        %v445 = vrot.slane %v366, 7
        %v446 = vrot.slane %v367, 7
        %v447 = vsel %vm439, %v445, %v446
        %v448 = vrot.slane %v368, 7
        %v449 = vrot.slane %v369, 7
        %v450 = vsel %vm439, %v448, %v449
        %v451 = vrot.slane %v370, 7
        %v452 = vrot.slane %v371, 7
        %v453 = vsel %vm439, %v451, %v452
        %v454 = vrot.slane %v372, 7
        %v455 = vrot.slane %v373, 7
        %v456 = vsel %vm439, %v454, %v455
        %v457 = vrot.slane %v374, 7
        %v458 = vrot.slane %v375, 7
        %v459 = vsel %vm439, %v457, %v458
        %v460 = vrot.slane %v376, 7
        %v461 = vrot.slane %v377, 7
        %v462 = vsel %vm439, %v460, %v461
        %v463 = vrot.slane %v378, 7
        %v464 = vrot.slane %v379, 7
        %v465 = vsel %vm439, %v463, %v464
        %v466 = vrot.slane %v380, 7
        %v467 = vrot.slane %v381, 7
        %v468 = vsel %vm439, %v466, %v467
        %v469 = vrot.slane %v382, 7
        %v470 = vrot.slane %v383, 7
        %v471 = vsel %vm439, %v469, %v470
        %v472 = vrot.slane %v384, 7
        %v473 = vrot.slane %v385, 7
        %v474 = vsel %vm439, %v472, %v473
        %v475 = vrot.slane %v386, 7
        %v476 = vrot.slane %v387, 7
        %v477 = vsel %vm439, %v475, %v476
        %v478 = vrot.slane %v388, 7
        %v479 = vrot.slane %v389, 7
        %v480 = vsel %vm439, %v478, %v479
        %v481 = vrot.slane %v390, 7
        %v482 = vrot.slane %v391, 7
        %v483 = vsel %vm439, %v481, %v482
        %v484 = vrot.slane %v392, 7
        %v485 = vrot.slane %v393, 7
        %v486 = vsel %vm439, %v484, %v485
        %v487 = vrot.slane %v394, 7
        %v488 = vrot.slane %v395, 7
        %v489 = vsel %vm439, %v487, %v488
        %v539 = vsel %vm439, 0.0, %v440
        %v540 = vsel %vm439, 0.0, %v442
        %v541 = vsel %vm439, 0.0, %v445
        %v542 = vsel %vm439, 0.0, %v448
        %v543 = vsel %vm439, 0.0, %v451
        %v544 = vsel %vm439, 0.0, %v454
        %v545 = vsel %vm439, 0.0, %v457
        %v546 = vsel %vm439, 0.0, %v460
        %v547 = vsel %vm439, 0.0, %v463
        %v548 = vsel %vm439, 0.0, %v466
        %v549 = vsel %vm439, 0.0, %v469
        %v550 = vsel %vm439, 0.0, %v472
        %v551 = vsel %vm439, 0.0, %v475
        %v552 = vsel %vm439, 0.0, %v478
        %v553 = vsel %vm439, 0.0, %v481
        %v554 = vsel %vm439, 0.0, %v484
        %v555 = vsel %vm439, 0.0, %v487
        %v556 = vsel %vm439, %v440, 0.0
        %v557 = vsel %vm439, %v443, 0.0
        %v558 = vsel %vm439, %v446, 0.0
        %v559 = vsel %vm439, %v449, 0.0
        %v560 = vsel %vm439, %v452, 0.0
        %v561 = vsel %vm439, %v455, 0.0
        %v562 = vsel %vm439, %v458, 0.0
        %v563 = vsel %vm439, %v461, 0.0
        %v564 = vsel %vm439, %v464, 0.0
        %v565 = vsel %vm439, %v467, 0.0
        %v566 = vsel %vm439, %v470, 0.0
        %v567 = vsel %vm439, %v473, 0.0
        %v568 = vsel %vm439, %v476, 0.0
        %v569 = vsel %vm439, %v479, 0.0
        %v570 = vsel %vm439, %v482, 0.0
        %v571 = vsel %vm439, %v485, 0.0
        %v572 = vsel %vm439, %v488, 0.0
        %vm605 = vcmask 1046528
        %v606 = vrot.slane %v539, 1
        %v607 = vrot.slane %v441, 1
        %v608 = vsel %vm605, %v606, %v607
        %v609 = vrot.slane %v556, 1
        %v610 = vsel %vm605, %v607, %v609
        %v611 = vrot.slane %v540, 1
        %v612 = vrot.slane %v444, 1
        %v613 = vsel %vm605, %v611, %v612
        %v614 = vrot.slane %v557, 1
        %v615 = vsel %vm605, %v612, %v614
        %v616 = vrot.slane %v541, 1
        %v617 = vrot.slane %v447, 1
        %v618 = vsel %vm605, %v616, %v617
        %v619 = vrot.slane %v558, 1
        %v620 = vsel %vm605, %v617, %v619
        %v621 = vrot.slane %v542, 1
        %v622 = vrot.slane %v450, 1
        %v623 = vsel %vm605, %v621, %v622
        %v624 = vrot.slane %v559, 1
        %v625 = vsel %vm605, %v622, %v624
        %v626 = vrot.slane %v543, 1
        %v627 = vrot.slane %v453, 1
        %v628 = vsel %vm605, %v626, %v627
        %v629 = vrot.slane %v560, 1
        %v630 = vsel %vm605, %v627, %v629
        %v631 = vrot.slane %v544, 1
        %v632 = vrot.slane %v456, 1
        %v633 = vsel %vm605, %v631, %v632
        %v634 = vrot.slane %v561, 1
        %v635 = vsel %vm605, %v632, %v634
        %v636 = vrot.slane %v545, 1
        %v637 = vrot.slane %v459, 1
        %v638 = vsel %vm605, %v636, %v637
        %v639 = vrot.slane %v562, 1
        %v640 = vsel %vm605, %v637, %v639
        %v641 = vrot.slane %v546, 1
        %v642 = vrot.slane %v462, 1
        %v643 = vsel %vm605, %v641, %v642
        %v644 = vrot.slane %v563, 1
        %v645 = vsel %vm605, %v642, %v644
        %v646 = vrot.slane %v547, 1
        %v647 = vrot.slane %v465, 1
        %v648 = vsel %vm605, %v646, %v647
        %v649 = vrot.slane %v564, 1
        %v650 = vsel %vm605, %v647, %v649
        %v651 = vrot.slane %v548, 1
        %v652 = vrot.slane %v468, 1
        %v653 = vsel %vm605, %v651, %v652
        %v654 = vrot.slane %v565, 1
        %v655 = vsel %vm605, %v652, %v654
        %v656 = vrot.slane %v549, 1
        %v657 = vrot.slane %v471, 1
        %v658 = vsel %vm605, %v656, %v657
        %v659 = vrot.slane %v566, 1
        %v660 = vsel %vm605, %v657, %v659
        %v661 = vrot.slane %v550, 1
        %v662 = vrot.slane %v474, 1
        %v663 = vsel %vm605, %v661, %v662
        %v664 = vrot.slane %v567, 1
        %v665 = vsel %vm605, %v662, %v664
        %v666 = vrot.slane %v551, 1
        %v667 = vrot.slane %v477, 1
        %v668 = vsel %vm605, %v666, %v667
        %v669 = vrot.slane %v568, 1
        %v670 = vsel %vm605, %v667, %v669
        %v671 = vrot.slane %v552, 1
        %v672 = vrot.slane %v480, 1
        %v673 = vsel %vm605, %v671, %v672
        %v674 = vrot.slane %v569, 1
        %v675 = vsel %vm605, %v672, %v674
        %v676 = vrot.slane %v553, 1
        %v677 = vrot.slane %v483, 1
        %v678 = vsel %vm605, %v676, %v677
        %v679 = vrot.slane %v570, 1
        %v680 = vsel %vm605, %v677, %v679
        %v681 = vrot.slane %v554, 1
        %v682 = vrot.slane %v486, 1
        %v683 = vsel %vm605, %v681, %v682
        %v684 = vrot.slane %v571, 1
        %v685 = vsel %vm605, %v682, %v684
        %686 = vrot.lane.b32.xlu0 %v608, 8
        %v687 = vpop.permute.xlu0 %686
        %688 = vrot.lane.b32.xlu0 %v610, 8
        %v689 = vpop.permute.xlu0 %688
        %690 = vrot.lane.b32.xlu0 %v613, 8
        %v691 = vpop.permute.xlu0 %690
        %692 = vrot.lane.b32.xlu0 %v615, 8
        %v693 = vpop.permute.xlu0 %692
        %694 = vrot.lane.b32.xlu0 %v618, 8
        %v695 = vpop.permute.xlu0 %694
        %696 = vrot.lane.b32.xlu0 %v620, 8
        %v697 = vpop.permute.xlu0 %696
        %698 = vrot.lane.b32.xlu0 %v623, 8
        %v699 = vpop.permute.xlu0 %698
        %700 = vrot.lane.b32.xlu0 %v625, 8
        %v701 = vpop.permute.xlu0 %700
        %702 = vrot.lane.b32.xlu0 %v628, 8
        %v703 = vpop.permute.xlu0 %702
        %704 = vrot.lane.b32.xlu0 %v630, 8
        %v705 = vpop.permute.xlu0 %704
        %706 = vrot.lane.b32.xlu0 %v633, 8
        %v707 = vpop.permute.xlu0 %706
        %708 = vrot.lane.b32.xlu0 %v635, 8
        %v709 = vpop.permute.xlu0 %708
        %710 = vrot.lane.b32.xlu0 %v638, 8
        %v711 = vpop.permute.xlu0 %710
        %712 = vrot.lane.b32.xlu0 %v640, 8
        %v713 = vpop.permute.xlu0 %712
        %714 = vrot.lane.b32.xlu0 %v643, 8
        %v715 = vpop.permute.xlu0 %714
        %716 = vrot.lane.b32.xlu0 %v645, 8
        %v717 = vpop.permute.xlu0 %716
        %718 = vrot.lane.b32.xlu0 %v648, 8
        %v719 = vpop.permute.xlu0 %718
        %720 = vrot.lane.b32.xlu0 %v650, 8
        %v721 = vpop.permute.xlu0 %720
        %722 = vrot.lane.b32.xlu0 %v653, 8
        %v723 = vpop.permute.xlu0 %722
        %724 = vrot.lane.b32.xlu0 %v655, 8
        %v725 = vpop.permute.xlu0 %724
        %726 = vrot.lane.b32.xlu0 %v658, 8
        %v727 = vpop.permute.xlu0 %726
        %728 = vrot.lane.b32.xlu0 %v660, 8
        %v729 = vpop.permute.xlu0 %728
        %730 = vrot.lane.b32.xlu0 %v663, 8
        %v731 = vpop.permute.xlu0 %730
        %732 = vrot.lane.b32.xlu0 %v665, 8
        %v733 = vpop.permute.xlu0 %732
        %734 = vrot.lane.b32.xlu0 %v668, 8
        %v735 = vpop.permute.xlu0 %734
        %736 = vrot.lane.b32.xlu0 %v670, 8
        %v737 = vpop.permute.xlu0 %736
        %738 = vrot.lane.b32.xlu0 %v673, 8
        %v739 = vpop.permute.xlu0 %738
        %740 = vrot.lane.b32.xlu0 %v675, 8
        %v741 = vpop.permute.xlu0 %740
        %742 = vrot.lane.b32.xlu0 %v678, 8
        %v743 = vpop.permute.xlu0 %742
        %744 = vrot.lane.b32.xlu0 %v680, 8
        %v745 = vpop.permute.xlu0 %744
        %746 = vrot.lane.b32.xlu0 %v683, 8
        %v747 = vpop.permute.xlu0 %746
        %748 = vrot.lane.b32.xlu0 %v685, 8
        %v749 = vpop.permute.xlu0 %748
        %vm782 = vcmask 1045504
        %v783 = vrot.slane %v539, 2
        %v784 = vrot.slane %v441, 2
        %v785 = vsel %vm782, %v783, %v784
        %v786 = vrot.slane %v556, 2
        %v787 = vsel %vm782, %v784, %v786
        %v788 = vrot.slane %v540, 2
        %v789 = vrot.slane %v444, 2
        %v790 = vsel %vm782, %v788, %v789
        %v791 = vrot.slane %v557, 2
        %v792 = vsel %vm782, %v789, %v791
        %v793 = vrot.slane %v541, 2
        %v794 = vrot.slane %v447, 2
        %v795 = vsel %vm782, %v793, %v794
        %v796 = vrot.slane %v558, 2
        %v797 = vsel %vm782, %v794, %v796
        %v798 = vrot.slane %v542, 2
        %v799 = vrot.slane %v450, 2
        %v800 = vsel %vm782, %v798, %v799
        %v801 = vrot.slane %v559, 2
        %v802 = vsel %vm782, %v799, %v801
        %v803 = vrot.slane %v543, 2
        %v804 = vrot.slane %v453, 2
        %v805 = vsel %vm782, %v803, %v804
        %v806 = vrot.slane %v560, 2
        %v807 = vsel %vm782, %v804, %v806
        %v808 = vrot.slane %v544, 2
        %v809 = vrot.slane %v456, 2
        %v810 = vsel %vm782, %v808, %v809
        %v811 = vrot.slane %v561, 2
        %v812 = vsel %vm782, %v809, %v811
        %v813 = vrot.slane %v545, 2
        %v814 = vrot.slane %v459, 2
        %v815 = vsel %vm782, %v813, %v814
        %v816 = vrot.slane %v562, 2
        %v817 = vsel %vm782, %v814, %v816
        %v818 = vrot.slane %v546, 2
        %v819 = vrot.slane %v462, 2
        %v820 = vsel %vm782, %v818, %v819
        %v821 = vrot.slane %v563, 2
        %v822 = vsel %vm782, %v819, %v821
        %v823 = vrot.slane %v547, 2
        %v824 = vrot.slane %v465, 2
        %v825 = vsel %vm782, %v823, %v824
        %v826 = vrot.slane %v564, 2
        %v827 = vsel %vm782, %v824, %v826
        %v828 = vrot.slane %v548, 2
        %v829 = vrot.slane %v468, 2
        %v830 = vsel %vm782, %v828, %v829
        %v831 = vrot.slane %v565, 2
        %v832 = vsel %vm782, %v829, %v831
        %v833 = vrot.slane %v549, 2
        %v834 = vrot.slane %v471, 2
        %v835 = vsel %vm782, %v833, %v834
        %v836 = vrot.slane %v566, 2
        %v837 = vsel %vm782, %v834, %v836
        %v838 = vrot.slane %v550, 2
        %v839 = vrot.slane %v474, 2
        %v840 = vsel %vm782, %v838, %v839
        %v841 = vrot.slane %v567, 2
        %v842 = vsel %vm782, %v839, %v841
        %v843 = vrot.slane %v551, 2
        %v844 = vrot.slane %v477, 2
        %v845 = vsel %vm782, %v843, %v844
        %v846 = vrot.slane %v568, 2
        %v847 = vsel %vm782, %v844, %v846
        %v848 = vrot.slane %v552, 2
        %v849 = vrot.slane %v480, 2
        %v850 = vsel %vm782, %v848, %v849
        %v851 = vrot.slane %v569, 2
        %v852 = vsel %vm782, %v849, %v851
        %v853 = vrot.slane %v553, 2
        %v854 = vrot.slane %v483, 2
        %v855 = vsel %vm782, %v853, %v854
        %v856 = vrot.slane %v570, 2
        %v857 = vsel %vm782, %v854, %v856
        %v858 = vrot.slane %v554, 2
        %v859 = vrot.slane %v486, 2
        %v860 = vsel %vm782, %v858, %v859
        %v861 = vrot.slane %v571, 2
        %v862 = vsel %vm782, %v859, %v861
        %863 = vrot.lane.b32.xlu0 %v785, 16
        %v864 = vpop.permute.xlu0 %863
        %865 = vrot.lane.b32.xlu0 %v787, 16
        %v866 = vpop.permute.xlu0 %865
        %867 = vrot.lane.b32.xlu0 %v790, 16
        %v868 = vpop.permute.xlu0 %867
        %869 = vrot.lane.b32.xlu0 %v792, 16
        %v870 = vpop.permute.xlu0 %869
        %871 = vrot.lane.b32.xlu0 %v795, 16
        %v872 = vpop.permute.xlu0 %871
        %873 = vrot.lane.b32.xlu0 %v797, 16
        %v874 = vpop.permute.xlu0 %873
        %875 = vrot.lane.b32.xlu0 %v800, 16
        %v876 = vpop.permute.xlu0 %875
        %877 = vrot.lane.b32.xlu0 %v802, 16
        %v878 = vpop.permute.xlu0 %877
        %879 = vrot.lane.b32.xlu0 %v805, 16
        %v880 = vpop.permute.xlu0 %879
        %881 = vrot.lane.b32.xlu0 %v807, 16
        %v882 = vpop.permute.xlu0 %881
        %883 = vrot.lane.b32.xlu0 %v810, 16
        %v884 = vpop.permute.xlu0 %883
        %885 = vrot.lane.b32.xlu0 %v812, 16
        %v886 = vpop.permute.xlu0 %885
        %887 = vrot.lane.b32.xlu0 %v815, 16
        %v888 = vpop.permute.xlu0 %887
        %889 = vrot.lane.b32.xlu0 %v817, 16
        %v890 = vpop.permute.xlu0 %889
        %891 = vrot.lane.b32.xlu0 %v820, 16
        %v892 = vpop.permute.xlu0 %891
        %893 = vrot.lane.b32.xlu0 %v822, 16
        %v894 = vpop.permute.xlu0 %893
        %895 = vrot.lane.b32.xlu0 %v825, 16
        %v896 = vpop.permute.xlu0 %895
        %897 = vrot.lane.b32.xlu0 %v827, 16
        %v898 = vpop.permute.xlu0 %897
        %899 = vrot.lane.b32.xlu0 %v830, 16
        %v900 = vpop.permute.xlu0 %899
        %901 = vrot.lane.b32.xlu0 %v832, 16
        %v902 = vpop.permute.xlu0 %901
        %903 = vrot.lane.b32.xlu0 %v835, 16
        %v904 = vpop.permute.xlu0 %903
        %905 = vrot.lane.b32.xlu0 %v837, 16
        %v906 = vpop.permute.xlu0 %905
        %907 = vrot.lane.b32.xlu0 %v840, 16
        %v908 = vpop.permute.xlu0 %907
        %909 = vrot.lane.b32.xlu0 %v842, 16
        %v910 = vpop.permute.xlu0 %909
        %911 = vrot.lane.b32.xlu0 %v845, 16
        %v912 = vpop.permute.xlu0 %911
        %913 = vrot.lane.b32.xlu0 %v847, 16
        %v914 = vpop.permute.xlu0 %913
        %915 = vrot.lane.b32.xlu0 %v850, 16
        %v916 = vpop.permute.xlu0 %915
        %917 = vrot.lane.b32.xlu0 %v852, 16
        %v918 = vpop.permute.xlu0 %917
        %919 = vrot.lane.b32.xlu0 %v855, 16
        %v920 = vpop.permute.xlu0 %919
        %921 = vrot.lane.b32.xlu0 %v857, 16
        %v922 = vpop.permute.xlu0 %921
        %923 = vrot.lane.b32.xlu0 %v860, 16
        %v924 = vpop.permute.xlu0 %923
        %925 = vrot.lane.b32.xlu0 %v862, 16
        %v926 = vpop.permute.xlu0 %925
        %960 = vrot.lane.b32.xlu0 %v540, 24
        %v961 = vpop.permute.xlu0 %960
        %962 = vrot.lane.b32.xlu0 %v444, 24
        %v963 = vpop.permute.xlu0 %962
        %964 = vrot.lane.b32.xlu0 %v541, 24
        %v965 = vpop.permute.xlu0 %964
        %966 = vrot.lane.b32.xlu0 %v447, 24
        %v967 = vpop.permute.xlu0 %966
        %968 = vrot.lane.b32.xlu0 %v542, 24
        %v969 = vpop.permute.xlu0 %968
        %970 = vrot.lane.b32.xlu0 %v450, 24
        %v971 = vpop.permute.xlu0 %970
        %972 = vrot.lane.b32.xlu0 %v543, 24
        %v973 = vpop.permute.xlu0 %972
        %974 = vrot.lane.b32.xlu0 %v453, 24
        %v975 = vpop.permute.xlu0 %974
        %976 = vrot.lane.b32.xlu0 %v544, 24
        %v977 = vpop.permute.xlu0 %976
        %978 = vrot.lane.b32.xlu0 %v456, 24
        %v979 = vpop.permute.xlu0 %978
        %980 = vrot.lane.b32.xlu0 %v545, 24
        %v981 = vpop.permute.xlu0 %980
        %982 = vrot.lane.b32.xlu0 %v459, 24
        %v983 = vpop.permute.xlu0 %982
        %984 = vrot.lane.b32.xlu0 %v546, 24
        %v985 = vpop.permute.xlu0 %984
        %986 = vrot.lane.b32.xlu0 %v462, 24
        %v987 = vpop.permute.xlu0 %986
        %988 = vrot.lane.b32.xlu0 %v547, 24
        %v989 = vpop.permute.xlu0 %988
        %990 = vrot.lane.b32.xlu0 %v465, 24
        %v991 = vpop.permute.xlu0 %990
        %992 = vrot.lane.b32.xlu0 %v548, 24
        %v993 = vpop.permute.xlu0 %992
        %994 = vrot.lane.b32.xlu0 %v468, 24
        %v995 = vpop.permute.xlu0 %994
        %996 = vrot.lane.b32.xlu0 %v549, 24
        %v997 = vpop.permute.xlu0 %996
        %998 = vrot.lane.b32.xlu0 %v471, 24
        %v999 = vpop.permute.xlu0 %998
        %1000 = vrot.lane.b32.xlu0 %v550, 24
        %v1001 = vpop.permute.xlu0 %1000
        %1002 = vrot.lane.b32.xlu0 %v474, 24
        %v1003 = vpop.permute.xlu0 %1002
        %1004 = vrot.lane.b32.xlu0 %v551, 24
        %v1005 = vpop.permute.xlu0 %1004
        %1006 = vrot.lane.b32.xlu0 %v477, 24
        %v1007 = vpop.permute.xlu0 %1006
        %1008 = vrot.lane.b32.xlu0 %v552, 24
        %v1009 = vpop.permute.xlu0 %1008
        %1010 = vrot.lane.b32.xlu0 %v480, 24
        %v1011 = vpop.permute.xlu0 %1010
        %1012 = vrot.lane.b32.xlu0 %v553, 24
        %v1013 = vpop.permute.xlu0 %1012
        %1014 = vrot.lane.b32.xlu0 %v483, 24
        %v1015 = vpop.permute.xlu0 %1014
        %1016 = vrot.lane.b32.xlu0 %v554, 24
        %v1017 = vpop.permute.xlu0 %1016
        %1018 = vrot.lane.b32.xlu0 %v486, 24
        %v1019 = vpop.permute.xlu0 %1018
        %1020 = vrot.lane.b32.xlu0 %v555, 24
        %v1021 = vpop.permute.xlu0 %1020
        %1022 = vrot.lane.b32.xlu0 %v489, 24
        %v1023 = vpop.permute.xlu0 %1022
        %v1057 = vrot.slane %v555, 1
        %v1058 = vrot.slane %v489, 1
        %v1059 = vsel %vm605, %v1057, %v1058
        %v1060 = vrot.slane %v572, 1
        %v1061 = vsel %vm605, %v1058, %v1060
        %1062 = vrot.lane.b32.xlu0 %v613, 32
        %v1063 = vpop.permute.xlu0 %1062
        %1064 = vrot.lane.b32.xlu0 %v615, 32
        %v1065 = vpop.permute.xlu0 %1064
        %1066 = vrot.lane.b32.xlu0 %v618, 32
        %v1067 = vpop.permute.xlu0 %1066
        %1068 = vrot.lane.b32.xlu0 %v620, 32
        %v1069 = vpop.permute.xlu0 %1068
        %1070 = vrot.lane.b32.xlu0 %v623, 32
        %v1071 = vpop.permute.xlu0 %1070
        %1072 = vrot.lane.b32.xlu0 %v625, 32
        %v1073 = vpop.permute.xlu0 %1072
        %1074 = vrot.lane.b32.xlu0 %v628, 32
        %v1075 = vpop.permute.xlu0 %1074
        %1076 = vrot.lane.b32.xlu0 %v630, 32
        %v1077 = vpop.permute.xlu0 %1076
        %1078 = vrot.lane.b32.xlu0 %v633, 32
        %v1079 = vpop.permute.xlu0 %1078
        %1080 = vrot.lane.b32.xlu0 %v635, 32
        %v1081 = vpop.permute.xlu0 %1080
        %1082 = vrot.lane.b32.xlu0 %v638, 32
        %v1083 = vpop.permute.xlu0 %1082
        %1084 = vrot.lane.b32.xlu0 %v640, 32
        %v1085 = vpop.permute.xlu0 %1084
        %1086 = vrot.lane.b32.xlu0 %v643, 32
        %v1087 = vpop.permute.xlu0 %1086
        %1088 = vrot.lane.b32.xlu0 %v645, 32
        %v1089 = vpop.permute.xlu0 %1088
        %1090 = vrot.lane.b32.xlu0 %v648, 32
        %v1091 = vpop.permute.xlu0 %1090
        %1092 = vrot.lane.b32.xlu0 %v650, 32
        %v1093 = vpop.permute.xlu0 %1092
        %1094 = vrot.lane.b32.xlu0 %v653, 32
        %v1095 = vpop.permute.xlu0 %1094
        %1096 = vrot.lane.b32.xlu0 %v655, 32
        %v1097 = vpop.permute.xlu0 %1096
        %1098 = vrot.lane.b32.xlu0 %v658, 32
        %v1099 = vpop.permute.xlu0 %1098
        %1100 = vrot.lane.b32.xlu0 %v660, 32
        %v1101 = vpop.permute.xlu0 %1100
        %1102 = vrot.lane.b32.xlu0 %v663, 32
        %v1103 = vpop.permute.xlu0 %1102
        %1104 = vrot.lane.b32.xlu0 %v665, 32
        %v1105 = vpop.permute.xlu0 %1104
        %1106 = vrot.lane.b32.xlu0 %v668, 32
        %v1107 = vpop.permute.xlu0 %1106
        %1108 = vrot.lane.b32.xlu0 %v670, 32
        %v1109 = vpop.permute.xlu0 %1108
        %1110 = vrot.lane.b32.xlu0 %v673, 32
        %v1111 = vpop.permute.xlu0 %1110
        %1112 = vrot.lane.b32.xlu0 %v675, 32
        %v1113 = vpop.permute.xlu0 %1112
        %1114 = vrot.lane.b32.xlu0 %v678, 32
        %v1115 = vpop.permute.xlu0 %1114
        %1116 = vrot.lane.b32.xlu0 %v680, 32
        %v1117 = vpop.permute.xlu0 %1116
        %1118 = vrot.lane.b32.xlu0 %v683, 32
        %v1119 = vpop.permute.xlu0 %1118
        %1120 = vrot.lane.b32.xlu0 %v685, 32
        %v1121 = vpop.permute.xlu0 %1120
        %1122 = vrot.lane.b32.xlu0 %v1059, 32
        %v1123 = vpop.permute.xlu0 %1122
        %1124 = vrot.lane.b32.xlu0 %v1061, 32
        %v1125 = vpop.permute.xlu0 %1124
        %v1158 = vrot.slane %v555, 2
        %v1159 = vrot.slane %v489, 2
        %v1160 = vsel %vm782, %v1158, %v1159
        %v1161 = vrot.slane %v572, 2
        %v1162 = vsel %vm782, %v1159, %v1161
        %1163 = vrot.lane.b32.xlu0 %v790, 40
        %v1164 = vpop.permute.xlu0 %1163
        %1165 = vrot.lane.b32.xlu0 %v792, 40
        %v1166 = vpop.permute.xlu0 %1165
        %1167 = vrot.lane.b32.xlu0 %v795, 40
        %v1168 = vpop.permute.xlu0 %1167
        %1169 = vrot.lane.b32.xlu0 %v797, 40
        %v1170 = vpop.permute.xlu0 %1169
        %1171 = vrot.lane.b32.xlu0 %v800, 40
        %v1172 = vpop.permute.xlu0 %1171
        %1173 = vrot.lane.b32.xlu0 %v802, 40
        %v1174 = vpop.permute.xlu0 %1173
        %1175 = vrot.lane.b32.xlu0 %v805, 40
        %v1176 = vpop.permute.xlu0 %1175
        %1177 = vrot.lane.b32.xlu0 %v807, 40
        %v1178 = vpop.permute.xlu0 %1177
        %1179 = vrot.lane.b32.xlu0 %v810, 40
        %v1180 = vpop.permute.xlu0 %1179
        %1181 = vrot.lane.b32.xlu0 %v812, 40
        %v1182 = vpop.permute.xlu0 %1181
        %1183 = vrot.lane.b32.xlu0 %v815, 40
        %v1184 = vpop.permute.xlu0 %1183
        %1185 = vrot.lane.b32.xlu0 %v817, 40
        %v1186 = vpop.permute.xlu0 %1185
        %1187 = vrot.lane.b32.xlu0 %v820, 40
        %v1188 = vpop.permute.xlu0 %1187
        %1189 = vrot.lane.b32.xlu0 %v822, 40
        %v1190 = vpop.permute.xlu0 %1189
        %1191 = vrot.lane.b32.xlu0 %v825, 40
        %v1192 = vpop.permute.xlu0 %1191
        %1193 = vrot.lane.b32.xlu0 %v827, 40
        %v1194 = vpop.permute.xlu0 %1193
        %1195 = vrot.lane.b32.xlu0 %v830, 40
        %v1196 = vpop.permute.xlu0 %1195
        %1197 = vrot.lane.b32.xlu0 %v832, 40
        %v1198 = vpop.permute.xlu0 %1197
        %1199 = vrot.lane.b32.xlu0 %v835, 40
        %v1200 = vpop.permute.xlu0 %1199
        %1201 = vrot.lane.b32.xlu0 %v837, 40
        %v1202 = vpop.permute.xlu0 %1201
        %1203 = vrot.lane.b32.xlu0 %v840, 40
        %v1204 = vpop.permute.xlu0 %1203
        %1205 = vrot.lane.b32.xlu0 %v842, 40
        %v1206 = vpop.permute.xlu0 %1205
        %1207 = vrot.lane.b32.xlu0 %v845, 40
        %v1208 = vpop.permute.xlu0 %1207
        %1209 = vrot.lane.b32.xlu0 %v847, 40
        %v1210 = vpop.permute.xlu0 %1209
        %1211 = vrot.lane.b32.xlu0 %v850, 40
        %v1212 = vpop.permute.xlu0 %1211
        %1213 = vrot.lane.b32.xlu0 %v852, 40
        %v1214 = vpop.permute.xlu0 %1213
        %1215 = vrot.lane.b32.xlu0 %v855, 40
        %v1216 = vpop.permute.xlu0 %1215
        %1217 = vrot.lane.b32.xlu0 %v857, 40
        %v1218 = vpop.permute.xlu0 %1217
        %1219 = vrot.lane.b32.xlu0 %v860, 40
        %v1220 = vpop.permute.xlu0 %1219
        %1221 = vrot.lane.b32.xlu0 %v862, 40
        %v1222 = vpop.permute.xlu0 %1221
        %1223 = vrot.lane.b32.xlu0 %v1160, 40
        %v1224 = vpop.permute.xlu0 %1223
        %1225 = vrot.lane.b32.xlu0 %v1162, 40
        %v1226 = vpop.permute.xlu0 %1225
        %1259 = vrot.lane.b32.xlu0 %v541, 48
        %v1260 = vpop.permute.xlu0 %1259
        %1261 = vrot.lane.b32.xlu0 %v447, 48
        %v1262 = vpop.permute.xlu0 %1261
        %1263 = vrot.lane.b32.xlu0 %v542, 48
        %v1264 = vpop.permute.xlu0 %1263
        %1265 = vrot.lane.b32.xlu0 %v450, 48
        %v1266 = vpop.permute.xlu0 %1265
        %1267 = vrot.lane.b32.xlu0 %v543, 48
        %v1268 = vpop.permute.xlu0 %1267
        %1269 = vrot.lane.b32.xlu0 %v453, 48
        %v1270 = vpop.permute.xlu0 %1269
        %1271 = vrot.lane.b32.xlu0 %v544, 48
        %v1272 = vpop.permute.xlu0 %1271
        %1273 = vrot.lane.b32.xlu0 %v456, 48
        %v1274 = vpop.permute.xlu0 %1273
        %1275 = vrot.lane.b32.xlu0 %v545, 48
        %v1276 = vpop.permute.xlu0 %1275
        %1277 = vrot.lane.b32.xlu0 %v459, 48
        %v1278 = vpop.permute.xlu0 %1277
        %1279 = vrot.lane.b32.xlu0 %v546, 48
        %v1280 = vpop.permute.xlu0 %1279
        %1281 = vrot.lane.b32.xlu0 %v462, 48
        %v1282 = vpop.permute.xlu0 %1281
        %1283 = vrot.lane.b32.xlu0 %v547, 48
        %v1284 = vpop.permute.xlu0 %1283
        %1285 = vrot.lane.b32.xlu0 %v465, 48
        %v1286 = vpop.permute.xlu0 %1285
        %1287 = vrot.lane.b32.xlu0 %v548, 48
        %v1288 = vpop.permute.xlu0 %1287
        %1289 = vrot.lane.b32.xlu0 %v468, 48
        %v1290 = vpop.permute.xlu0 %1289
        %1291 = vrot.lane.b32.xlu0 %v549, 48
        %v1292 = vpop.permute.xlu0 %1291
        %1293 = vrot.lane.b32.xlu0 %v471, 48
        %v1294 = vpop.permute.xlu0 %1293
        %1295 = vrot.lane.b32.xlu0 %v550, 48
        %v1296 = vpop.permute.xlu0 %1295
        %1297 = vrot.lane.b32.xlu0 %v474, 48
        %v1298 = vpop.permute.xlu0 %1297
        %1299 = vrot.lane.b32.xlu0 %v551, 48
        %v1300 = vpop.permute.xlu0 %1299
        %1301 = vrot.lane.b32.xlu0 %v477, 48
        %v1302 = vpop.permute.xlu0 %1301
        %1303 = vrot.lane.b32.xlu0 %v552, 48
        %v1304 = vpop.permute.xlu0 %1303
        %1305 = vrot.lane.b32.xlu0 %v480, 48
        %v1306 = vpop.permute.xlu0 %1305
        %1307 = vrot.lane.b32.xlu0 %v553, 48
        %v1308 = vpop.permute.xlu0 %1307
        %1309 = vrot.lane.b32.xlu0 %v483, 48
        %v1310 = vpop.permute.xlu0 %1309
        %1311 = vrot.lane.b32.xlu0 %v554, 48
        %v1312 = vpop.permute.xlu0 %1311
        %1313 = vrot.lane.b32.xlu0 %v486, 48
        %v1314 = vpop.permute.xlu0 %1313
        %1315 = vrot.lane.b32.xlu0 %v555, 48
        %v1316 = vpop.permute.xlu0 %1315
        %1317 = vrot.lane.b32.xlu0 %v489, 48
        %v1318 = vpop.permute.xlu0 %1317
        %1319 = vrot.lane.b32.xlu0 %v539, 48
        %v1320 = vpop.permute.xlu0 %1319
        %1321 = vrot.lane.b32.xlu0 %v441, 48
        %v1322 = vpop.permute.xlu0 %1321
        %1355 = vrot.lane.b32.xlu0 %v618, 56
        %v1356 = vpop.permute.xlu0 %1355
        %1357 = vrot.lane.b32.xlu0 %v620, 56
        %v1358 = vpop.permute.xlu0 %1357
        %1359 = vrot.lane.b32.xlu0 %v623, 56
        %v1360 = vpop.permute.xlu0 %1359
        %1361 = vrot.lane.b32.xlu0 %v625, 56
        %v1362 = vpop.permute.xlu0 %1361
        %1363 = vrot.lane.b32.xlu0 %v628, 56
        %v1364 = vpop.permute.xlu0 %1363
        %1365 = vrot.lane.b32.xlu0 %v630, 56
        %v1366 = vpop.permute.xlu0 %1365
        %1367 = vrot.lane.b32.xlu0 %v633, 56
        %v1368 = vpop.permute.xlu0 %1367
        %1369 = vrot.lane.b32.xlu0 %v635, 56
        %v1370 = vpop.permute.xlu0 %1369
        %1371 = vrot.lane.b32.xlu0 %v638, 56
        %v1372 = vpop.permute.xlu0 %1371
        %1373 = vrot.lane.b32.xlu0 %v640, 56
        %v1374 = vpop.permute.xlu0 %1373
        %1375 = vrot.lane.b32.xlu0 %v643, 56
        %v1376 = vpop.permute.xlu0 %1375
        %1377 = vrot.lane.b32.xlu0 %v645, 56
        %v1378 = vpop.permute.xlu0 %1377
        %1379 = vrot.lane.b32.xlu0 %v648, 56
        %v1380 = vpop.permute.xlu0 %1379
        %1381 = vrot.lane.b32.xlu0 %v650, 56
        %v1382 = vpop.permute.xlu0 %1381
        %1383 = vrot.lane.b32.xlu0 %v653, 56
        %v1384 = vpop.permute.xlu0 %1383
        %1385 = vrot.lane.b32.xlu0 %v655, 56
        %v1386 = vpop.permute.xlu0 %1385
        %1387 = vrot.lane.b32.xlu0 %v658, 56
        %v1388 = vpop.permute.xlu0 %1387
        %1389 = vrot.lane.b32.xlu0 %v660, 56
        %v1390 = vpop.permute.xlu0 %1389
        %1391 = vrot.lane.b32.xlu0 %v663, 56
        %v1392 = vpop.permute.xlu0 %1391
        %1393 = vrot.lane.b32.xlu0 %v665, 56
        %v1394 = vpop.permute.xlu0 %1393
        %1395 = vrot.lane.b32.xlu0 %v668, 56
        %v1396 = vpop.permute.xlu0 %1395
        %1397 = vrot.lane.b32.xlu0 %v670, 56
        %v1398 = vpop.permute.xlu0 %1397
        %1399 = vrot.lane.b32.xlu0 %v673, 56
        %v1400 = vpop.permute.xlu0 %1399
        %1401 = vrot.lane.b32.xlu0 %v675, 56
        %v1402 = vpop.permute.xlu0 %1401
        %1403 = vrot.lane.b32.xlu0 %v678, 56
        %v1404 = vpop.permute.xlu0 %1403
        %1405 = vrot.lane.b32.xlu0 %v680, 56
        %v1406 = vpop.permute.xlu0 %1405
        %1407 = vrot.lane.b32.xlu0 %v683, 56
        %v1408 = vpop.permute.xlu0 %1407
        %1409 = vrot.lane.b32.xlu0 %v685, 56
        %v1410 = vpop.permute.xlu0 %1409
        %1411 = vrot.lane.b32.xlu0 %v1059, 56
        %v1412 = vpop.permute.xlu0 %1411
        %1413 = vrot.lane.b32.xlu0 %v1061, 56
        %v1414 = vpop.permute.xlu0 %1413
        %1415 = vrot.lane.b32.xlu0 %v608, 56
        %v1416 = vpop.permute.xlu0 %1415
        %1417 = vrot.lane.b32.xlu0 %v610, 56
        %v1418 = vpop.permute.xlu0 %1417
        %1451 = vrot.lane.b32.xlu0 %v795, 64
        %v1452 = vpop.permute.xlu0 %1451
        %1453 = vrot.lane.b32.xlu0 %v797, 64
        %v1454 = vpop.permute.xlu0 %1453
        %1455 = vrot.lane.b32.xlu0 %v800, 64
        %v1456 = vpop.permute.xlu0 %1455
        %1457 = vrot.lane.b32.xlu0 %v802, 64
        %v1458 = vpop.permute.xlu0 %1457
        %1459 = vrot.lane.b32.xlu0 %v805, 64
        %v1460 = vpop.permute.xlu0 %1459
        %1461 = vrot.lane.b32.xlu0 %v807, 64
        %v1462 = vpop.permute.xlu0 %1461
        %1463 = vrot.lane.b32.xlu0 %v810, 64
        %v1464 = vpop.permute.xlu0 %1463
        %1465 = vrot.lane.b32.xlu0 %v812, 64
        %v1466 = vpop.permute.xlu0 %1465
        %1467 = vrot.lane.b32.xlu0 %v815, 64
        %v1468 = vpop.permute.xlu0 %1467
        %1469 = vrot.lane.b32.xlu0 %v817, 64
        %v1470 = vpop.permute.xlu0 %1469
        %1471 = vrot.lane.b32.xlu0 %v820, 64
        %v1472 = vpop.permute.xlu0 %1471
        %1473 = vrot.lane.b32.xlu0 %v822, 64
        %v1474 = vpop.permute.xlu0 %1473
        %1475 = vrot.lane.b32.xlu0 %v825, 64
        %v1476 = vpop.permute.xlu0 %1475
        %1477 = vrot.lane.b32.xlu0 %v827, 64
        %v1478 = vpop.permute.xlu0 %1477
        %1479 = vrot.lane.b32.xlu0 %v830, 64
        %v1480 = vpop.permute.xlu0 %1479
        %1481 = vrot.lane.b32.xlu0 %v832, 64
        %v1482 = vpop.permute.xlu0 %1481
        %1483 = vrot.lane.b32.xlu0 %v835, 64
        %v1484 = vpop.permute.xlu0 %1483
        %1485 = vrot.lane.b32.xlu0 %v837, 64
        %v1486 = vpop.permute.xlu0 %1485
        %1487 = vrot.lane.b32.xlu0 %v840, 64
        %v1488 = vpop.permute.xlu0 %1487
        %1489 = vrot.lane.b32.xlu0 %v842, 64
        %v1490 = vpop.permute.xlu0 %1489
        %1491 = vrot.lane.b32.xlu0 %v845, 64
        %v1492 = vpop.permute.xlu0 %1491
        %1493 = vrot.lane.b32.xlu0 %v847, 64
        %v1494 = vpop.permute.xlu0 %1493
        %1495 = vrot.lane.b32.xlu0 %v850, 64
        %v1496 = vpop.permute.xlu0 %1495
        %1497 = vrot.lane.b32.xlu0 %v852, 64
        %v1498 = vpop.permute.xlu0 %1497
        %1499 = vrot.lane.b32.xlu0 %v855, 64
        %v1500 = vpop.permute.xlu0 %1499
        %1501 = vrot.lane.b32.xlu0 %v857, 64
        %v1502 = vpop.permute.xlu0 %1501
        %1503 = vrot.lane.b32.xlu0 %v860, 64
        %v1504 = vpop.permute.xlu0 %1503
        %1505 = vrot.lane.b32.xlu0 %v862, 64
        %v1506 = vpop.permute.xlu0 %1505
        %1507 = vrot.lane.b32.xlu0 %v1160, 64
        %v1508 = vpop.permute.xlu0 %1507
        %1509 = vrot.lane.b32.xlu0 %v1162, 64
        %v1510 = vpop.permute.xlu0 %1509
        %1511 = vrot.lane.b32.xlu0 %v785, 64
        %v1512 = vpop.permute.xlu0 %1511
        %1513 = vrot.lane.b32.xlu0 %v787, 64
        %v1514 = vpop.permute.xlu0 %1513
        %vm1547 = vcmask 64512
        %v1548 = vsel %vm1547, %v539, %v687
        %v1549 = vsel %vm1547, %v441, %v689
        %v1550 = vsel %vm1547, %v540, %v691
        %v1551 = vsel %vm1547, %v444, %v693
        %v1552 = vsel %vm1547, %v541, %v695
        %v1553 = vsel %vm1547, %v447, %v697
        %v1554 = vsel %vm1547, %v542, %v699
        %v1555 = vsel %vm1547, %v450, %v701
        %v1556 = vsel %vm1547, %v543, %v703
        %v1557 = vsel %vm1547, %v453, %v705
        %v1558 = vsel %vm1547, %v544, %v707
        %v1559 = vsel %vm1547, %v456, %v709
        %v1560 = vsel %vm1547, %v545, %v711
        %v1561 = vsel %vm1547, %v459, %v713
        %v1562 = vsel %vm1547, %v546, %v715
        %v1563 = vsel %vm1547, %v462, %v717
        %v1564 = vsel %vm1547, %v547, %v719
        %v1565 = vsel %vm1547, %v465, %v721
        %v1566 = vsel %vm1547, %v548, %v723
        %v1567 = vsel %vm1547, %v468, %v725
        %v1568 = vsel %vm1547, %v549, %v727
        %v1569 = vsel %vm1547, %v471, %v729
        %v1570 = vsel %vm1547, %v550, %v731
        %v1571 = vsel %vm1547, %v474, %v733
        %v1572 = vsel %vm1547, %v551, %v735
        %v1573 = vsel %vm1547, %v477, %v737
        %v1574 = vsel %vm1547, %v552, %v739
        %v1575 = vsel %vm1547, %v480, %v741
        %v1576 = vsel %vm1547, %v553, %v743
        %v1577 = vsel %vm1547, %v483, %v745
        %v1578 = vsel %vm1547, %v554, %v747
        %v1579 = vsel %vm1547, %v486, %v749
        %vm1580 = vcmask 130048
        %v1581 = vsel %vm1580, %v1548, %v864
        %v1582 = vsel %vm1580, %v1549, %v866
        %v1583 = vsel %vm1580, %v1550, %v868
        %v1584 = vsel %vm1580, %v1551, %v870
        %v1585 = vsel %vm1580, %v1552, %v872
        %v1586 = vsel %vm1580, %v1553, %v874
        %v1587 = vsel %vm1580, %v1554, %v876
        %v1588 = vsel %vm1580, %v1555, %v878
        %v1589 = vsel %vm1580, %v1556, %v880
        %v1590 = vsel %vm1580, %v1557, %v882
        %v1591 = vsel %vm1580, %v1558, %v884
        %v1592 = vsel %vm1580, %v1559, %v886
        %v1593 = vsel %vm1580, %v1560, %v888
        %v1594 = vsel %vm1580, %v1561, %v890
        %v1595 = vsel %vm1580, %v1562, %v892
        %v1596 = vsel %vm1580, %v1563, %v894
        %v1597 = vsel %vm1580, %v1564, %v896
        %v1598 = vsel %vm1580, %v1565, %v898
        %v1599 = vsel %vm1580, %v1566, %v900
        %v1600 = vsel %vm1580, %v1567, %v902
        %v1601 = vsel %vm1580, %v1568, %v904
        %v1602 = vsel %vm1580, %v1569, %v906
        %v1603 = vsel %vm1580, %v1570, %v908
        %v1604 = vsel %vm1580, %v1571, %v910
        %v1605 = vsel %vm1580, %v1572, %v912
        %v1606 = vsel %vm1580, %v1573, %v914
        %v1607 = vsel %vm1580, %v1574, %v916
        %v1608 = vsel %vm1580, %v1575, %v918
        %v1609 = vsel %vm1580, %v1576, %v920
        %v1610 = vsel %vm1580, %v1577, %v922
        %v1611 = vsel %vm1580, %v1578, %v924
        %v1612 = vsel %vm1580, %v1579, %v926
        %vm1613 = vcmask 195584
        %v1614 = vsel %vm1613, %v1581, %v961
        %v1615 = vsel %vm1613, %v1582, %v963
        %v1616 = vsel %vm1613, %v1583, %v965
        %v1617 = vsel %vm1613, %v1584, %v967
        %v1618 = vsel %vm1613, %v1585, %v969
        %v1619 = vsel %vm1613, %v1586, %v971
        %v1620 = vsel %vm1613, %v1587, %v973
        %v1621 = vsel %vm1613, %v1588, %v975
        %v1622 = vsel %vm1613, %v1589, %v977
        %v1623 = vsel %vm1613, %v1590, %v979
        %v1624 = vsel %vm1613, %v1591, %v981
        %v1625 = vsel %vm1613, %v1592, %v983
        %v1626 = vsel %vm1613, %v1593, %v985
        %v1627 = vsel %vm1613, %v1594, %v987
        %v1628 = vsel %vm1613, %v1595, %v989
        %v1629 = vsel %vm1613, %v1596, %v991
        %v1630 = vsel %vm1613, %v1597, %v993
        %v1631 = vsel %vm1613, %v1598, %v995
        %v1632 = vsel %vm1613, %v1599, %v997
        %v1633 = vsel %vm1613, %v1600, %v999
        %v1634 = vsel %vm1613, %v1601, %v1001
        %v1635 = vsel %vm1613, %v1602, %v1003
        %v1636 = vsel %vm1613, %v1603, %v1005
        %v1637 = vsel %vm1613, %v1604, %v1007
        %v1638 = vsel %vm1613, %v1605, %v1009
        %v1639 = vsel %vm1613, %v1606, %v1011
        %v1640 = vsel %vm1613, %v1607, %v1013
        %v1641 = vsel %vm1613, %v1608, %v1015
        %v1642 = vsel %vm1613, %v1609, %v1017
        %v1643 = vsel %vm1613, %v1610, %v1019
        %v1644 = vsel %vm1613, %v1611, %v1021
        %v1645 = vsel %vm1613, %v1612, %v1023
        %vm1646 = vcmask 261120
        %v1647 = vsel %vm1646, %v1614, %v1063
        %v1648 = vsel %vm1646, %v1615, %v1065
        %v1649 = vsel %vm1646, %v1616, %v1067
        %v1650 = vsel %vm1646, %v1617, %v1069
        %v1651 = vsel %vm1646, %v1618, %v1071
        %v1652 = vsel %vm1646, %v1619, %v1073
        %v1653 = vsel %vm1646, %v1620, %v1075
        %v1654 = vsel %vm1646, %v1621, %v1077
        %v1655 = vsel %vm1646, %v1622, %v1079
        %v1656 = vsel %vm1646, %v1623, %v1081
        %v1657 = vsel %vm1646, %v1624, %v1083
        %v1658 = vsel %vm1646, %v1625, %v1085
        %v1659 = vsel %vm1646, %v1626, %v1087
        %v1660 = vsel %vm1646, %v1627, %v1089
        %v1661 = vsel %vm1646, %v1628, %v1091
        %v1662 = vsel %vm1646, %v1629, %v1093
        %v1663 = vsel %vm1646, %v1630, %v1095
        %v1664 = vsel %vm1646, %v1631, %v1097
        %v1665 = vsel %vm1646, %v1632, %v1099
        %v1666 = vsel %vm1646, %v1633, %v1101
        %v1667 = vsel %vm1646, %v1634, %v1103
        %v1668 = vsel %vm1646, %v1635, %v1105
        %v1669 = vsel %vm1646, %v1636, %v1107
        %v1670 = vsel %vm1646, %v1637, %v1109
        %v1671 = vsel %vm1646, %v1638, %v1111
        %v1672 = vsel %vm1646, %v1639, %v1113
        %v1673 = vsel %vm1646, %v1640, %v1115
        %v1674 = vsel %vm1646, %v1641, %v1117
        %v1675 = vsel %vm1646, %v1642, %v1119
        %v1676 = vsel %vm1646, %v1643, %v1121
        %v1677 = vsel %vm1646, %v1644, %v1123
        %v1678 = vsel %vm1646, %v1645, %v1125
        %vm1679 = vcmask 326656
        %v1680 = vsel %vm1679, %v1647, %v1164
        %v1681 = vsel %vm1679, %v1648, %v1166
        %v1682 = vsel %vm1679, %v1649, %v1168
        %v1683 = vsel %vm1679, %v1650, %v1170
        %v1684 = vsel %vm1679, %v1651, %v1172
        %v1685 = vsel %vm1679, %v1652, %v1174
        %v1686 = vsel %vm1679, %v1653, %v1176
        %v1687 = vsel %vm1679, %v1654, %v1178
        %v1688 = vsel %vm1679, %v1655, %v1180
        %v1689 = vsel %vm1679, %v1656, %v1182
        %v1690 = vsel %vm1679, %v1657, %v1184
        %v1691 = vsel %vm1679, %v1658, %v1186
        %v1692 = vsel %vm1679, %v1659, %v1188
        %v1693 = vsel %vm1679, %v1660, %v1190
        %v1694 = vsel %vm1679, %v1661, %v1192
        %v1695 = vsel %vm1679, %v1662, %v1194
        %v1696 = vsel %vm1679, %v1663, %v1196
        %v1697 = vsel %vm1679, %v1664, %v1198
        %v1698 = vsel %vm1679, %v1665, %v1200
        %v1699 = vsel %vm1679, %v1666, %v1202
        %v1700 = vsel %vm1679, %v1667, %v1204
        %v1701 = vsel %vm1679, %v1668, %v1206
        %v1702 = vsel %vm1679, %v1669, %v1208
        %v1703 = vsel %vm1679, %v1670, %v1210
        %v1704 = vsel %vm1679, %v1671, %v1212
        %v1705 = vsel %vm1679, %v1672, %v1214
        %v1706 = vsel %vm1679, %v1673, %v1216
        %v1707 = vsel %vm1679, %v1674, %v1218
        %v1708 = vsel %vm1679, %v1675, %v1220
        %v1709 = vsel %vm1679, %v1676, %v1222
        %v1710 = vsel %vm1679, %v1677, %v1224
        %v1711 = vsel %vm1679, %v1678, %v1226
        %vm1712 = vcmask 392192
        %v1713 = vsel %vm1712, %v1680, %v1260
        %v1714 = vsel %vm1712, %v1681, %v1262
        %v1715 = vsel %vm1712, %v1682, %v1264
        %v1716 = vsel %vm1712, %v1683, %v1266
        %v1717 = vsel %vm1712, %v1684, %v1268
        %v1718 = vsel %vm1712, %v1685, %v1270
        %v1719 = vsel %vm1712, %v1686, %v1272
        %v1720 = vsel %vm1712, %v1687, %v1274
        %v1721 = vsel %vm1712, %v1688, %v1276
        %v1722 = vsel %vm1712, %v1689, %v1278
        %v1723 = vsel %vm1712, %v1690, %v1280
        %v1724 = vsel %vm1712, %v1691, %v1282
        %v1725 = vsel %vm1712, %v1692, %v1284
        %v1726 = vsel %vm1712, %v1693, %v1286
        %v1727 = vsel %vm1712, %v1694, %v1288
        %v1728 = vsel %vm1712, %v1695, %v1290
        %v1729 = vsel %vm1712, %v1696, %v1292
        %v1730 = vsel %vm1712, %v1697, %v1294
        %v1731 = vsel %vm1712, %v1698, %v1296
        %v1732 = vsel %vm1712, %v1699, %v1298
        %v1733 = vsel %vm1712, %v1700, %v1300
        %v1734 = vsel %vm1712, %v1701, %v1302
        %v1735 = vsel %vm1712, %v1702, %v1304
        %v1736 = vsel %vm1712, %v1703, %v1306
        %v1737 = vsel %vm1712, %v1704, %v1308
        %v1738 = vsel %vm1712, %v1705, %v1310
        %v1739 = vsel %vm1712, %v1706, %v1312
        %v1740 = vsel %vm1712, %v1707, %v1314
        %v1741 = vsel %vm1712, %v1708, %v1316
        %v1742 = vsel %vm1712, %v1709, %v1318
        %v1743 = vsel %vm1712, %v1710, %v1320
        %v1744 = vsel %vm1712, %v1711, %v1322
        %vm1745 = vcmask 457728
        %v1746 = vsel %vm1745, %v1713, %v1356
        %v1747 = vsel %vm1745, %v1714, %v1358
        %v1748 = vsel %vm1745, %v1715, %v1360
        %v1749 = vsel %vm1745, %v1716, %v1362
        %v1750 = vsel %vm1745, %v1717, %v1364
        %v1751 = vsel %vm1745, %v1718, %v1366
        %v1752 = vsel %vm1745, %v1719, %v1368
        %v1753 = vsel %vm1745, %v1720, %v1370
        %v1754 = vsel %vm1745, %v1721, %v1372
        %v1755 = vsel %vm1745, %v1722, %v1374
        %v1756 = vsel %vm1745, %v1723, %v1376
        %v1757 = vsel %vm1745, %v1724, %v1378
        %v1758 = vsel %vm1745, %v1725, %v1380
        %v1759 = vsel %vm1745, %v1726, %v1382
        %v1760 = vsel %vm1745, %v1727, %v1384
        %v1761 = vsel %vm1745, %v1728, %v1386
        %v1762 = vsel %vm1745, %v1729, %v1388
        %v1763 = vsel %vm1745, %v1730, %v1390
        %v1764 = vsel %vm1745, %v1731, %v1392
        %v1765 = vsel %vm1745, %v1732, %v1394
        %v1766 = vsel %vm1745, %v1733, %v1396
        %v1767 = vsel %vm1745, %v1734, %v1398
        %v1768 = vsel %vm1745, %v1735, %v1400
        %v1769 = vsel %vm1745, %v1736, %v1402
        %v1770 = vsel %vm1745, %v1737, %v1404
        %v1771 = vsel %vm1745, %v1738, %v1406
        %v1772 = vsel %vm1745, %v1739, %v1408
        %v1773 = vsel %vm1745, %v1740, %v1410
        %v1774 = vsel %vm1745, %v1741, %v1412
        %v1775 = vsel %vm1745, %v1742, %v1414
        %v1776 = vsel %vm1745, %v1743, %v1416
        %v1777 = vsel %vm1745, %v1744, %v1418
        %vm1778 = vcmask 523264
        %v1779 = vsel %vm1778, %v1746, %v1452
        %v1780 = vsel %vm1778, %v1747, %v1454
        %v1781 = vsel %vm1778, %v1748, %v1456
        %v1782 = vsel %vm1778, %v1749, %v1458
        %v1783 = vsel %vm1778, %v1750, %v1460
        %v1784 = vsel %vm1778, %v1751, %v1462
        %v1785 = vsel %vm1778, %v1752, %v1464
        %v1786 = vsel %vm1778, %v1753, %v1466
        %v1787 = vsel %vm1778, %v1754, %v1468
        %v1788 = vsel %vm1778, %v1755, %v1470
        %v1789 = vsel %vm1778, %v1756, %v1472
        %v1790 = vsel %vm1778, %v1757, %v1474
        %v1791 = vsel %vm1778, %v1758, %v1476
        %v1792 = vsel %vm1778, %v1759, %v1478
        %v1793 = vsel %vm1778, %v1760, %v1480
        %v1794 = vsel %vm1778, %v1761, %v1482
        %v1795 = vsel %vm1778, %v1762, %v1484
        %v1796 = vsel %vm1778, %v1763, %v1486
        %v1797 = vsel %vm1778, %v1764, %v1488
        %v1798 = vsel %vm1778, %v1765, %v1490
        %v1799 = vsel %vm1778, %v1766, %v1492
        %v1800 = vsel %vm1778, %v1767, %v1494
        %v1801 = vsel %vm1778, %v1768, %v1496
        %v1802 = vsel %vm1778, %v1769, %v1498
        %v1803 = vsel %vm1778, %v1770, %v1500
        %v1804 = vsel %vm1778, %v1771, %v1502
        %v1805 = vsel %vm1778, %v1772, %v1504
        %v1806 = vsel %vm1778, %v1773, %v1506
        %v1807 = vsel %vm1778, %v1774, %v1508
        %v1808 = vsel %vm1778, %v1775, %v1510
        %v1809 = vsel %vm1778, %v1776, %v1512
        %v1810 = vsel %vm1778, %v1777, %v1514
        %v1812 = vlaneseq
        %v1813 = vshrl.u32 %v1812, 7
        %v1814 = vsub.s32 0, %v1813
        %v1815 = vrot.slane %v405, %v1814
        %vm1817 = vcmask 588800
        %v1819 = vsel %vm1817, %v1779, 0
        %v1822 = vsel %vm1817, %v1780, 0
        %v1825 = vsel %vm1817, %v1781, 0
        %v1828 = vsel %vm1817, %v1782, 0
        %v1831 = vsel %vm1817, %v1783, 0
        %v1834 = vsel %vm1817, %v1784, 0
        %v1837 = vsel %vm1817, %v1785, 0
        %v1840 = vsel %vm1817, %v1786, 0
        %v1843 = vsel %vm1817, %v1787, 0
        %v1846 = vsel %vm1817, %v1788, 0
        %v1849 = vsel %vm1817, %v1789, 0
        %v1852 = vsel %vm1817, %v1790, 0
        %v1855 = vsel %vm1817, %v1791, 0
        %v1858 = vsel %vm1817, %v1792, 0
        %v1861 = vsel %vm1817, %v1793, 0
        %v1864 = vsel %vm1817, %v1794, 0
        %v1867 = vsel %vm1817, %v1795, 0
        %v1870 = vsel %vm1817, %v1796, 0
        %v1873 = vsel %vm1817, %v1797, 0
        %v1876 = vsel %vm1817, %v1798, 0
        %v1879 = vsel %vm1817, %v1799, 0
        %v1882 = vsel %vm1817, %v1800, 0
        %v1885 = vsel %vm1817, %v1801, 0
        %v1888 = vsel %vm1817, %v1802, 0
        %v1891 = vsel %vm1817, %v1803, 0
        %v1894 = vsel %vm1817, %v1804, 0
        %v1897 = vsel %vm1817, %v1805, 0
        %v1900 = vsel %vm1817, %v1806, 0
        %v1903 = vsel %vm1817, %v1807, 0
        %v1906 = vsel %vm1817, %v1808, 0
        %v1909 = vsel %vm1817, %v1809, 0
        %v1912 = vsel %vm1817, %v1810, 0
        %1914 = vmatprep.subr.mxu0 0.0
        %1915 = vmatpush1.msra.mxu0 0.0
        %1916 = vmatprep.subr.mxu0 0.0
        %1917 = vmatpush1.msra.mxu0 0.0
        %1918 = vmatprep.subr.mxu0 0.0
        %1919 = vmatpush1.msra.mxu0 0.0
        %1920 = vmatprep.subr.mxu0 0.0
        %1921 = vmatpush1.msra.mxu0 0.0
        %1922 = vmatprep.subr.mxu0 0.0
        %1923 = vmatpush1.msra.mxu0 0.0
        %1924 = vmatprep.subr.mxu0 0.0
        %1925 = vmatpush1.msra.mxu0 0.0
        %1926 = vmatprep.subr.mxu0 0.0
        %1927 = vmatpush1.msra.mxu0 0.0
        %1928 = vmatprep.subr.mxu0 0.0
        %1929 = vmatpush1.msra.mxu0 %v404
        %1930 = vmatprep.subr.mxu0 0.0
        %1931 = vmatpush1.msra.mxu0 %v403
        %1932 = vmatprep.subr.mxu0 0.0
        %1933 = vmatpush1.msra.mxu0 %v402
        %1934 = vmatprep.subr.mxu0 0.0
        %1935 = vmatpush1.msra.mxu0 %v401
        %1936 = vmatprep.subr.mxu0 0.0
        %1937 = vmatpush1.msra.mxu0 %v400
        %1938 = vmatprep.subr.mxu0 0.0
        %1939 = vmatpush1.msra.mxu0 %v399
        %1940 = vmatprep.subr.mxu0 0.0
        %1941 = vmatpush1.msra.mxu0 %v398
        %1942 = vmatprep.subr.mxu0 0.0
        %1943 = vmatpush1.msra.mxu0 %v397
        %1944 = vmatprep.subr.mxu0 0.0
        %1945 = vmatpush1.msra.mxu0 %v396
        %1946 = vmatprep.subr.mxu0 0.0
        %1947 = vmatpush2.msra.mxu0 0.0
        %1948 = vmatprep.subr.mxu0 0.0
        %1949 = vmatpush2.msra.mxu0 0.0
        %1950 = vmatprep.subr.mxu0 0.0
        %1951 = vmatpush2.msra.mxu0 0.0
        %1952 = vmatprep.subr.mxu0 0.0
        %1953 = vmatpush2.msra.mxu0 0.0
        %1954 = vmatprep.subr.mxu0 0.0
        %1955 = vmatpush2.msra.mxu0 0.0
        %1956 = vmatprep.subr.mxu0 0.0
        %1957 = vmatpush2.msra.mxu0 0.0
        %1958 = vmatprep.subr.mxu0 0.0
        %1959 = vmatpush2.msra.mxu0 0.0
        %1960 = vmatprep.subr.mxu0 0.0
        %1961 = vmatpush2.msra.mxu0 0.0
        %1962 = vmatprep.subr.mxu0 0.0
        %1963 = vmatpush2.msra.mxu0 0.0
        %1964 = vmatprep.subr.mxu0 0.0
        %1965 = vmatpush2.msra.mxu0 0.0
        %1966 = vmatprep.subr.mxu0 0.0
        %1967 = vmatpush2.msra.mxu0 0.0
        %1968 = vmatprep.subr.mxu0 0.0
        %1969 = vmatpush2.msra.mxu0 0.0
        %1970 = vmatprep.subr.mxu0 0.0
        %1971 = vmatpush2.msra.mxu0 0.0
        %1972 = vmatprep.subr.mxu0 0.0
        %1973 = vmatpush2.msra.mxu0 0.0
        %1974 = vmatprep.subr.mxu0 0.0
        %1975 = vmatpush2.msra.mxu0 0.0
        %1976 = vmatprep.subr.mxu0 0.0
        %1977 = vmatpush2.msra.mxu0 0.0
        %1978 = vmatprep.mubr.f32.mxu0 0.0
        %1979 = vmatmul.mubr.f32.gmra.mxu0 %v1819
        %v1980 = vpop.f32.mrf.mxu0
        %v1981 = vadd.f32 %v1815, %v1980
        %v1982 = vpop.f32.mrf.mxu0
        %1983 = vmatprep.mubr.f32.mxu0 0.0
        %1984 = vmatmul.mubr.f32.gmra.mxu0 %v1822
        %v1985 = vpop.f32.mrf.mxu0
        %v1986 = vadd.f32 %v1815, %v1985
        %v1987 = vpop.f32.mrf.mxu0
        %1988 = vmatprep.mubr.f32.mxu0 0.0
        %1989 = vmatmul.mubr.f32.gmra.mxu0 %v1825
        %v1990 = vpop.f32.mrf.mxu0
        %v1991 = vadd.f32 %v1815, %v1990
        %v1992 = vpop.f32.mrf.mxu0
        %1993 = vmatprep.mubr.f32.mxu0 0.0
        %1994 = vmatmul.mubr.f32.gmra.mxu0 %v1828
        %v1995 = vpop.f32.mrf.mxu0
        %v1996 = vadd.f32 %v1815, %v1995
        %v1997 = vpop.f32.mrf.mxu0
        %1998 = vmatprep.mubr.f32.mxu0 0.0
        %1999 = vmatmul.mubr.f32.gmra.mxu0 %v1831
        %v2000 = vpop.f32.mrf.mxu0
        %v2001 = vadd.f32 %v1815, %v2000
        %v2002 = vpop.f32.mrf.mxu0
        %2003 = vmatprep.mubr.f32.mxu0 0.0
        %2004 = vmatmul.mubr.f32.gmra.mxu0 %v1834
        %v2005 = vpop.f32.mrf.mxu0
        %v2006 = vadd.f32 %v1815, %v2005
        %v2007 = vpop.f32.mrf.mxu0
        %2008 = vmatprep.mubr.f32.mxu0 0.0
        %2009 = vmatmul.mubr.f32.gmra.mxu0 %v1837
        %v2010 = vpop.f32.mrf.mxu0
        %v2011 = vadd.f32 %v1815, %v2010
        %v2012 = vpop.f32.mrf.mxu0
        %2013 = vmatprep.mubr.f32.mxu0 0.0
        %2014 = vmatmul.mubr.f32.gmra.mxu0 %v1840
        %v2015 = vpop.f32.mrf.mxu0
        %v2016 = vadd.f32 %v1815, %v2015
        %v2017 = vpop.f32.mrf.mxu0
        %2018 = vmatprep.mubr.f32.mxu0 0.0
        %2019 = vmatmul.mubr.f32.gmra.mxu0 %v1843
        %v2020 = vpop.f32.mrf.mxu0
        %v2021 = vadd.f32 %v1815, %v2020
        %v2022 = vpop.f32.mrf.mxu0
        %2023 = vmatprep.mubr.f32.mxu0 0.0
        %2024 = vmatmul.mubr.f32.gmra.mxu0 %v1846
        %v2025 = vpop.f32.mrf.mxu0
        %v2026 = vadd.f32 %v1815, %v2025
        %v2027 = vpop.f32.mrf.mxu0
        %2028 = vmatprep.mubr.f32.mxu0 0.0
        %2029 = vmatmul.mubr.f32.gmra.mxu0 %v1849
        %v2030 = vpop.f32.mrf.mxu0
        %v2031 = vadd.f32 %v1815, %v2030
        %v2032 = vpop.f32.mrf.mxu0
        %2033 = vmatprep.mubr.f32.mxu0 0.0
        %2034 = vmatmul.mubr.f32.gmra.mxu0 %v1852
        %v2035 = vpop.f32.mrf.mxu0
        %v2036 = vadd.f32 %v1815, %v2035
        %v2037 = vpop.f32.mrf.mxu0
        %2038 = vmatprep.mubr.f32.mxu0 0.0
        %2039 = vmatmul.mubr.f32.gmra.mxu0 %v1855
        %v2040 = vpop.f32.mrf.mxu0
        %v2041 = vadd.f32 %v1815, %v2040
        %v2042 = vpop.f32.mrf.mxu0
        %2043 = vmatprep.mubr.f32.mxu0 0.0
        %2044 = vmatmul.mubr.f32.gmra.mxu0 %v1858
        %v2045 = vpop.f32.mrf.mxu0
        %v2046 = vadd.f32 %v1815, %v2045
        %v2047 = vpop.f32.mrf.mxu0
        %2048 = vmatprep.mubr.f32.mxu0 0.0
        %2049 = vmatmul.mubr.f32.gmra.mxu0 %v1861
        %v2050 = vpop.f32.mrf.mxu0
        %v2051 = vadd.f32 %v1815, %v2050
        %v2052 = vpop.f32.mrf.mxu0
        %2053 = vmatprep.mubr.f32.mxu0 0.0
        %2054 = vmatmul.mubr.f32.gmra.mxu0 %v1864
        %v2055 = vpop.f32.mrf.mxu0
        %v2056 = vadd.f32 %v1815, %v2055
        %v2057 = vpop.f32.mrf.mxu0
        %2058 = vmatprep.mubr.f32.mxu0 0.0
        %2059 = vmatmul.mubr.f32.gmra.mxu0 %v1867
        %v2060 = vpop.f32.mrf.mxu0
        %v2061 = vadd.f32 %v1815, %v2060
        %v2062 = vpop.f32.mrf.mxu0
        %2063 = vmatprep.mubr.f32.mxu0 0.0
        %2064 = vmatmul.mubr.f32.gmra.mxu0 %v1870
        %v2065 = vpop.f32.mrf.mxu0
        %v2066 = vadd.f32 %v1815, %v2065
        %v2067 = vpop.f32.mrf.mxu0
        %2068 = vmatprep.mubr.f32.mxu0 0.0
        %2069 = vmatmul.mubr.f32.gmra.mxu0 %v1873
        %v2070 = vpop.f32.mrf.mxu0
        %v2071 = vadd.f32 %v1815, %v2070
        %v2072 = vpop.f32.mrf.mxu0
        %2073 = vmatprep.mubr.f32.mxu0 0.0
        %2074 = vmatmul.mubr.f32.gmra.mxu0 %v1876
        %v2075 = vpop.f32.mrf.mxu0
        %v2076 = vadd.f32 %v1815, %v2075
        %v2077 = vpop.f32.mrf.mxu0
        %2078 = vmatprep.mubr.f32.mxu0 0.0
        %2079 = vmatmul.mubr.f32.gmra.mxu0 %v1879
        %v2080 = vpop.f32.mrf.mxu0
        %v2081 = vadd.f32 %v1815, %v2080
        %v2082 = vpop.f32.mrf.mxu0
        %2083 = vmatprep.mubr.f32.mxu0 0.0
        %2084 = vmatmul.mubr.f32.gmra.mxu0 %v1882
        %v2085 = vpop.f32.mrf.mxu0
        %v2086 = vadd.f32 %v1815, %v2085
        %v2087 = vpop.f32.mrf.mxu0
        %2088 = vmatprep.mubr.f32.mxu0 0.0
        %2089 = vmatmul.mubr.f32.gmra.mxu0 %v1885
        %v2090 = vpop.f32.mrf.mxu0
        %v2091 = vadd.f32 %v1815, %v2090
        %v2092 = vpop.f32.mrf.mxu0
        %2093 = vmatprep.mubr.f32.mxu0 0.0
        %2094 = vmatmul.mubr.f32.gmra.mxu0 %v1888
        %v2095 = vpop.f32.mrf.mxu0
        %v2096 = vadd.f32 %v1815, %v2095
        %v2097 = vpop.f32.mrf.mxu0
        %2098 = vmatprep.mubr.f32.mxu0 0.0
        %2099 = vmatmul.mubr.f32.gmra.mxu0 %v1891
        %v2100 = vpop.f32.mrf.mxu0
        %v2101 = vadd.f32 %v1815, %v2100
        %v2102 = vpop.f32.mrf.mxu0
        %2103 = vmatprep.mubr.f32.mxu0 0.0
        %2104 = vmatmul.mubr.f32.gmra.mxu0 %v1894
        %v2105 = vpop.f32.mrf.mxu0
        %v2106 = vadd.f32 %v1815, %v2105
        %v2107 = vpop.f32.mrf.mxu0
        %2108 = vmatprep.mubr.f32.mxu0 0.0
        %2109 = vmatmul.mubr.f32.gmra.mxu0 %v1897
        %v2110 = vpop.f32.mrf.mxu0
        %v2111 = vadd.f32 %v1815, %v2110
        %v2112 = vpop.f32.mrf.mxu0
        %2113 = vmatprep.mubr.f32.mxu0 0.0
        %2114 = vmatmul.mubr.f32.gmra.mxu0 %v1900
        %v2115 = vpop.f32.mrf.mxu0
        %v2116 = vadd.f32 %v1815, %v2115
        %v2117 = vpop.f32.mrf.mxu0
        %2118 = vmatprep.mubr.f32.mxu0 0.0
        %2119 = vmatmul.mubr.f32.gmra.mxu0 %v1903
        %v2120 = vpop.f32.mrf.mxu0
        %v2121 = vadd.f32 %v1815, %v2120
        %v2122 = vpop.f32.mrf.mxu0
        %2123 = vmatprep.mubr.f32.mxu0 0.0
        %2124 = vmatmul.mubr.f32.gmra.mxu0 %v1906
        %v2125 = vpop.f32.mrf.mxu0
        %v2126 = vadd.f32 %v1815, %v2125
        %v2127 = vpop.f32.mrf.mxu0
        %2128 = vmatprep.mubr.f32.mxu0 0.0
        %2129 = vmatmul.mubr.f32.gmra.mxu0 %v1909
        %v2130 = vpop.f32.mrf.mxu0
        %v2131 = vadd.f32 %v1815, %v2130
        %v2132 = vpop.f32.mrf.mxu0
        %2133 = vmatprep.mubr.f32.mxu0 0.0
        %2134 = vmatmul.mubr.f32.gmra.mxu0 %v1912
        %v2135 = vpop.f32.mrf.mxu0
        %v2136 = vadd.f32 %v1815, %v2135
        %v2137 = vpop.f32.mrf.mxu0
        %2138 = vdwg.mxu0
        %s2139 = sld [smem:[#allocation2 + $0x1]]
        %vm2140 = vcmp.ge.f32.partialorder %v1981, 0.0
        %vm2141 = vcmp.ge.f32.partialorder %v1986, 0.0
        %vm2142 = vcmp.ge.f32.partialorder %v1991, 0.0
        %vm2143 = vcmp.ge.f32.partialorder %v1996, 0.0
        %vm2144 = vcmp.ge.f32.partialorder %v2001, 0.0
        %vm2145 = vcmp.ge.f32.partialorder %v2006, 0.0
        %vm2146 = vcmp.ge.f32.partialorder %v2011, 0.0
        %vm2147 = vcmp.ge.f32.partialorder %v2016, 0.0
        %vm2148 = vcmp.ge.f32.partialorder %v2021, 0.0
        %vm2149 = vcmp.ge.f32.partialorder %v2026, 0.0
        %vm2150 = vcmp.ge.f32.partialorder %v2031, 0.0
        %vm2151 = vcmp.ge.f32.partialorder %v2036, 0.0
        %vm2152 = vcmp.ge.f32.partialorder %v2041, 0.0
        %vm2153 = vcmp.ge.f32.partialorder %v2046, 0.0
        %vm2154 = vcmp.ge.f32.partialorder %v2051, 0.0
        %vm2155 = vcmp.ge.f32.partialorder %v2056, 0.0
        %vm2156 = vcmp.ge.f32.partialorder %v2061, 0.0
        %vm2157 = vcmp.ge.f32.partialorder %v2066, 0.0
        %vm2158 = vcmp.ge.f32.partialorder %v2071, 0.0
        %vm2159 = vcmp.ge.f32.partialorder %v2076, 0.0
        %vm2160 = vcmp.ge.f32.partialorder %v2081, 0.0
        %vm2161 = vcmp.ge.f32.partialorder %v2086, 0.0
        %vm2162 = vcmp.ge.f32.partialorder %v2091, 0.0
        %vm2163 = vcmp.ge.f32.partialorder %v2096, 0.0
        %vm2164 = vcmp.ge.f32.partialorder %v2101, 0.0
        %vm2165 = vcmp.ge.f32.partialorder %v2106, 0.0
        %vm2166 = vcmp.ge.f32.partialorder %v2111, 0.0
        %vm2167 = vcmp.ge.f32.partialorder %v2116, 0.0
        %vm2168 = vcmp.ge.f32.partialorder %v2121, 0.0
        %vm2169 = vcmp.ge.f32.partialorder %v2126, 0.0
        %vm2170 = vcmp.ge.f32.partialorder %v2131, 0.0
        %vm2171 = vcmp.ge.f32.partialorder %v2136, 0.0
        %v2172 = vstv %s2139
        %v2173 = vmul.f32 %v2172, %v1981
        %v2174 = vmul.f32 %v2172, %v1986
        %v2175 = vmul.f32 %v2172, %v1991
        %v2176 = vmul.f32 %v2172, %v1996
        %v2177 = vmul.f32 %v2172, %v2001
        %v2178 = vmul.f32 %v2172, %v2006
        %v2179 = vmul.f32 %v2172, %v2011
        %v2180 = vmul.f32 %v2172, %v2016
        %v2181 = vmul.f32 %v2172, %v2021
        %v2182 = vmul.f32 %v2172, %v2026
        %v2183 = vmul.f32 %v2172, %v2031
        %v2184 = vmul.f32 %v2172, %v2036
        %v2185 = vmul.f32 %v2172, %v2041
        %v2186 = vmul.f32 %v2172, %v2046
        %v2187 = vmul.f32 %v2172, %v2051
        %v2188 = vmul.f32 %v2172, %v2056
        %v2189 = vmul.f32 %v2172, %v2061
        %v2190 = vmul.f32 %v2172, %v2066
        %v2191 = vmul.f32 %v2172, %v2071
        %v2192 = vmul.f32 %v2172, %v2076
        %v2193 = vmul.f32 %v2172, %v2081
        %v2194 = vmul.f32 %v2172, %v2086
        %v2195 = vmul.f32 %v2172, %v2091
        %v2196 = vmul.f32 %v2172, %v2096
        %v2197 = vmul.f32 %v2172, %v2101
        %v2198 = vmul.f32 %v2172, %v2106
        %v2199 = vmul.f32 %v2172, %v2111
        %v2200 = vmul.f32 %v2172, %v2116
        %v2201 = vmul.f32 %v2172, %v2121
        %v2202 = vmul.f32 %v2172, %v2126
        %v2203 = vmul.f32 %v2172, %v2131
        %v2204 = vmul.f32 %v2172, %v2136
        %v2205 = vsel %vm2140, %v1981, %v2173
        %v2206 = vsel %vm2141, %v1986, %v2174
        %v2207 = vsel %vm2142, %v1991, %v2175
        %v2208 = vsel %vm2143, %v1996, %v2176
        %v2209 = vsel %vm2144, %v2001, %v2177
        %v2210 = vsel %vm2145, %v2006, %v2178
        %v2211 = vsel %vm2146, %v2011, %v2179
        %v2212 = vsel %vm2147, %v2016, %v2180
        %v2213 = vsel %vm2148, %v2021, %v2181
        %v2214 = vsel %vm2149, %v2026, %v2182
        %v2215 = vsel %vm2150, %v2031, %v2183
        %v2216 = vsel %vm2151, %v2036, %v2184
        %v2217 = vsel %vm2152, %v2041, %v2185
        %v2218 = vsel %vm2153, %v2046, %v2186
        %v2219 = vsel %vm2154, %v2051, %v2187
        %v2220 = vsel %vm2155, %v2056, %v2188
        %v2221 = vsel %vm2156, %v2061, %v2189
        %v2222 = vsel %vm2157, %v2066, %v2190
        %v2223 = vsel %vm2158, %v2071, %v2191
        %v2224 = vsel %vm2159, %v2076, %v2192
        %v2225 = vsel %vm2160, %v2081, %v2193
        %v2226 = vsel %vm2161, %v2086, %v2194
        %v2227 = vsel %vm2162, %v2091, %v2195
        %v2228 = vsel %vm2163, %v2096, %v2196
        %v2229 = vsel %vm2164, %v2101, %v2197
        %v2230 = vsel %vm2165, %v2106, %v2198
        %v2231 = vsel %vm2166, %v2111, %v2199
        %v2232 = vsel %vm2167, %v2116, %v2200
        %v2233 = vsel %vm2168, %v2121, %v2201
        %v2234 = vsel %vm2169, %v2126, %v2202
        %v2235 = vsel %vm2170, %v2131, %v2203
        %v2236 = vsel %vm2171, %v2136, %v2204
        %v2237 = vld [vmem:[%s3] sm:$0xff]
        %v2238 = vld [vmem:[%s3 + $0x8] sm:$0xff]
        %v2239 = vld [vmem:[%s3 + $0x10] sm:$0xff]
        %v2240 = vld [vmem:[%s3 + $0x18] sm:$0xff]
        %v2241 = vld [vmem:[%s3 + $0x20] sm:$0xff]
        %v2242 = vld [vmem:[%s3 + $0x28] sm:$0xff]
        %v2243 = vld [vmem:[%s3 + $0x30] sm:$0xff]
        %v2244 = vld [vmem:[%s3 + $0x38] sm:$0xff]
        %v2245 = vld [vmem:[%s3 + $0x40] sm:$0xff]
        %v2246 = vld [vmem:[%s4] sm:$0x1]
        %v2279 = vrot.slane %v2205, 7
        %v2280 = vrot.slane %v2206, 7
        %v2281 = vsel %vm439, %v2279, %v2280
        %v2282 = vrot.slane %v2207, 7
        %v2283 = vrot.slane %v2208, 7
        %v2284 = vsel %vm439, %v2282, %v2283
        %v2285 = vrot.slane %v2209, 7
        %v2286 = vrot.slane %v2210, 7
        %v2287 = vsel %vm439, %v2285, %v2286
        %v2288 = vrot.slane %v2211, 7
        %v2289 = vrot.slane %v2212, 7
        %v2290 = vsel %vm439, %v2288, %v2289
        %v2291 = vrot.slane %v2213, 7
        %v2292 = vrot.slane %v2214, 7
        %v2293 = vsel %vm439, %v2291, %v2292
        %v2294 = vrot.slane %v2215, 7
        %v2295 = vrot.slane %v2216, 7
        %v2296 = vsel %vm439, %v2294, %v2295
        %v2297 = vrot.slane %v2217, 7
        %v2298 = vrot.slane %v2218, 7
        %v2299 = vsel %vm439, %v2297, %v2298
        %v2300 = vrot.slane %v2219, 7
        %v2301 = vrot.slane %v2220, 7
        %v2302 = vsel %vm439, %v2300, %v2301
        %v2303 = vrot.slane %v2221, 7
        %v2304 = vrot.slane %v2222, 7
        %v2305 = vsel %vm439, %v2303, %v2304
        %v2306 = vrot.slane %v2223, 7
        %v2307 = vrot.slane %v2224, 7
        %v2308 = vsel %vm439, %v2306, %v2307
        %v2309 = vrot.slane %v2225, 7
        %v2310 = vrot.slane %v2226, 7
        %v2311 = vsel %vm439, %v2309, %v2310
        %v2312 = vrot.slane %v2227, 7
        %v2313 = vrot.slane %v2228, 7
        %v2314 = vsel %vm439, %v2312, %v2313
        %v2315 = vrot.slane %v2229, 7
        %v2316 = vrot.slane %v2230, 7
        %v2317 = vsel %vm439, %v2315, %v2316
        %v2318 = vrot.slane %v2231, 7
        %v2319 = vrot.slane %v2232, 7
        %v2320 = vsel %vm439, %v2318, %v2319
        %v2321 = vrot.slane %v2233, 7
        %v2322 = vrot.slane %v2234, 7
        %v2323 = vsel %vm439, %v2321, %v2322
        %v2324 = vrot.slane %v2235, 7
        %v2325 = vrot.slane %v2236, 7
        %v2326 = vsel %vm439, %v2324, %v2325
        %v2374 = vsel %vm439, 0.0, %v2279
        %v2375 = vsel %vm439, 0.0, %v2282
        %v2376 = vsel %vm439, 0.0, %v2285
        %v2377 = vsel %vm439, 0.0, %v2288
        %v2378 = vsel %vm439, 0.0, %v2291
        %v2379 = vsel %vm439, 0.0, %v2294
        %v2380 = vsel %vm439, 0.0, %v2297
        %v2381 = vsel %vm439, 0.0, %v2300
        %v2382 = vsel %vm439, 0.0, %v2303
        %v2383 = vsel %vm439, 0.0, %v2306
        %v2384 = vsel %vm439, 0.0, %v2309
        %v2385 = vsel %vm439, 0.0, %v2312
        %v2386 = vsel %vm439, 0.0, %v2315
        %v2387 = vsel %vm439, 0.0, %v2318
        %v2388 = vsel %vm439, 0.0, %v2321
        %v2389 = vsel %vm439, 0.0, %v2324
        %v2390 = vsel %vm439, %v2280, 0.0
        %v2391 = vsel %vm439, %v2283, 0.0
        %v2392 = vsel %vm439, %v2286, 0.0
        %v2393 = vsel %vm439, %v2289, 0.0
        %v2394 = vsel %vm439, %v2292, 0.0
        %v2395 = vsel %vm439, %v2295, 0.0
        %v2396 = vsel %vm439, %v2298, 0.0
        %v2397 = vsel %vm439, %v2301, 0.0
        %v2398 = vsel %vm439, %v2304, 0.0
        %v2399 = vsel %vm439, %v2307, 0.0
        %v2400 = vsel %vm439, %v2310, 0.0
        %v2401 = vsel %vm439, %v2313, 0.0
        %v2402 = vsel %vm439, %v2316, 0.0
        %v2403 = vsel %vm439, %v2319, 0.0
        %v2404 = vsel %vm439, %v2322, 0.0
        %v2405 = vsel %vm439, %v2325, 0.0
        %v2436 = vrot.slane %v2374, 1
        %v2437 = vrot.slane %v2281, 1
        %v2438 = vsel %vm605, %v2436, %v2437
        %v2439 = vrot.slane %v2390, 1
        %v2440 = vsel %vm605, %v2437, %v2439
        %v2441 = vrot.slane %v2375, 1
        %v2442 = vrot.slane %v2284, 1
        %v2443 = vsel %vm605, %v2441, %v2442
        %v2444 = vrot.slane %v2391, 1
        %v2445 = vsel %vm605, %v2442, %v2444
        %v2446 = vrot.slane %v2376, 1
        %v2447 = vrot.slane %v2287, 1
        %v2448 = vsel %vm605, %v2446, %v2447
        %v2449 = vrot.slane %v2392, 1
        %v2450 = vsel %vm605, %v2447, %v2449
        %v2451 = vrot.slane %v2377, 1
        %v2452 = vrot.slane %v2290, 1
        %v2453 = vsel %vm605, %v2451, %v2452
        %v2454 = vrot.slane %v2393, 1
        %v2455 = vsel %vm605, %v2452, %v2454
        %v2456 = vrot.slane %v2378, 1
        %v2457 = vrot.slane %v2293, 1
        %v2458 = vsel %vm605, %v2456, %v2457
        %v2459 = vrot.slane %v2394, 1
        %v2460 = vsel %vm605, %v2457, %v2459
        %v2461 = vrot.slane %v2379, 1
        %v2462 = vrot.slane %v2296, 1
        %v2463 = vsel %vm605, %v2461, %v2462
        %v2464 = vrot.slane %v2395, 1
        %v2465 = vsel %vm605, %v2462, %v2464
        %v2466 = vrot.slane %v2380, 1
        %v2467 = vrot.slane %v2299, 1
        %v2468 = vsel %vm605, %v2466, %v2467
        %v2469 = vrot.slane %v2396, 1
        %v2470 = vsel %vm605, %v2467, %v2469
        %v2471 = vrot.slane %v2381, 1
        %v2472 = vrot.slane %v2302, 1
        %v2473 = vsel %vm605, %v2471, %v2472
        %v2474 = vrot.slane %v2397, 1
        %v2475 = vsel %vm605, %v2472, %v2474
        %v2476 = vrot.slane %v2382, 1
        %v2477 = vrot.slane %v2305, 1
        %v2478 = vsel %vm605, %v2476, %v2477
        %v2479 = vrot.slane %v2398, 1
        %v2480 = vsel %vm605, %v2477, %v2479
        %v2481 = vrot.slane %v2383, 1
        %v2482 = vrot.slane %v2308, 1
        %v2483 = vsel %vm605, %v2481, %v2482
        %v2484 = vrot.slane %v2399, 1
        %v2485 = vsel %vm605, %v2482, %v2484
        %v2486 = vrot.slane %v2384, 1
        %v2487 = vrot.slane %v2311, 1
        %v2488 = vsel %vm605, %v2486, %v2487
        %v2489 = vrot.slane %v2400, 1
        %v2490 = vsel %vm605, %v2487, %v2489
        %v2491 = vrot.slane %v2385, 1
        %v2492 = vrot.slane %v2314, 1
        %v2493 = vsel %vm605, %v2491, %v2492
        %v2494 = vrot.slane %v2401, 1
        %v2495 = vsel %vm605, %v2492, %v2494
        %v2496 = vrot.slane %v2386, 1
        %v2497 = vrot.slane %v2317, 1
        %v2498 = vsel %vm605, %v2496, %v2497
        %v2499 = vrot.slane %v2402, 1
        %v2500 = vsel %vm605, %v2497, %v2499
        %v2501 = vrot.slane %v2387, 1
        %v2502 = vrot.slane %v2320, 1
        %v2503 = vsel %vm605, %v2501, %v2502
        %v2504 = vrot.slane %v2403, 1
        %v2505 = vsel %vm605, %v2502, %v2504
        %v2506 = vrot.slane %v2388, 1
        %v2507 = vrot.slane %v2323, 1
        %v2508 = vsel %vm605, %v2506, %v2507
        %v2509 = vrot.slane %v2404, 1
        %v2510 = vsel %vm605, %v2507, %v2509
        %2511 = vrot.lane.b32.xlu0 %v2438, 8
        %v2512 = vpop.permute.xlu0 %2511
        %2513 = vrot.lane.b32.xlu0 %v2440, 8
        %v2514 = vpop.permute.xlu0 %2513
        %2515 = vrot.lane.b32.xlu0 %v2443, 8
        %v2516 = vpop.permute.xlu0 %2515
        %2517 = vrot.lane.b32.xlu0 %v2445, 8
        %v2518 = vpop.permute.xlu0 %2517
        %2519 = vrot.lane.b32.xlu0 %v2448, 8
        %v2520 = vpop.permute.xlu0 %2519
        %2521 = vrot.lane.b32.xlu0 %v2450, 8
        %v2522 = vpop.permute.xlu0 %2521
        %2523 = vrot.lane.b32.xlu0 %v2453, 8
        %v2524 = vpop.permute.xlu0 %2523
        %2525 = vrot.lane.b32.xlu0 %v2455, 8
        %v2526 = vpop.permute.xlu0 %2525
        %2527 = vrot.lane.b32.xlu0 %v2458, 8
        %v2528 = vpop.permute.xlu0 %2527
        %2529 = vrot.lane.b32.xlu0 %v2460, 8
        %v2530 = vpop.permute.xlu0 %2529
        %2531 = vrot.lane.b32.xlu0 %v2463, 8
        %v2532 = vpop.permute.xlu0 %2531
        %2533 = vrot.lane.b32.xlu0 %v2465, 8
        %v2534 = vpop.permute.xlu0 %2533
        %2535 = vrot.lane.b32.xlu0 %v2468, 8
        %v2536 = vpop.permute.xlu0 %2535
        %2537 = vrot.lane.b32.xlu0 %v2470, 8
        %v2538 = vpop.permute.xlu0 %2537
        %2539 = vrot.lane.b32.xlu0 %v2473, 8
        %v2540 = vpop.permute.xlu0 %2539
        %2541 = vrot.lane.b32.xlu0 %v2475, 8
        %v2542 = vpop.permute.xlu0 %2541
        %2543 = vrot.lane.b32.xlu0 %v2478, 8
        %v2544 = vpop.permute.xlu0 %2543
        %2545 = vrot.lane.b32.xlu0 %v2480, 8
        %v2546 = vpop.permute.xlu0 %2545
        %2547 = vrot.lane.b32.xlu0 %v2483, 8
        %v2548 = vpop.permute.xlu0 %2547
        %2549 = vrot.lane.b32.xlu0 %v2485, 8
        %v2550 = vpop.permute.xlu0 %2549
        %2551 = vrot.lane.b32.xlu0 %v2488, 8
        %v2552 = vpop.permute.xlu0 %2551
        %2553 = vrot.lane.b32.xlu0 %v2490, 8
        %v2554 = vpop.permute.xlu0 %2553
        %2555 = vrot.lane.b32.xlu0 %v2493, 8
        %v2556 = vpop.permute.xlu0 %2555
        %2557 = vrot.lane.b32.xlu0 %v2495, 8
        %v2558 = vpop.permute.xlu0 %2557
        %2559 = vrot.lane.b32.xlu0 %v2498, 8
        %v2560 = vpop.permute.xlu0 %2559
        %2561 = vrot.lane.b32.xlu0 %v2500, 8
        %v2562 = vpop.permute.xlu0 %2561
        %2563 = vrot.lane.b32.xlu0 %v2503, 8
        %v2564 = vpop.permute.xlu0 %2563
        %2565 = vrot.lane.b32.xlu0 %v2505, 8
        %v2566 = vpop.permute.xlu0 %2565
        %2567 = vrot.lane.b32.xlu0 %v2508, 8
        %v2568 = vpop.permute.xlu0 %2567
        %2569 = vrot.lane.b32.xlu0 %v2510, 8
        %v2570 = vpop.permute.xlu0 %2569
        %v2601 = vrot.slane %v2374, 2
        %v2602 = vrot.slane %v2281, 2
        %v2603 = vsel %vm782, %v2601, %v2602
        %v2604 = vrot.slane %v2390, 2
        %v2605 = vsel %vm782, %v2602, %v2604
        %v2606 = vrot.slane %v2375, 2
        %v2607 = vrot.slane %v2284, 2
        %v2608 = vsel %vm782, %v2606, %v2607
        %v2609 = vrot.slane %v2391, 2
        %v2610 = vsel %vm782, %v2607, %v2609
        %v2611 = vrot.slane %v2376, 2
        %v2612 = vrot.slane %v2287, 2
        %v2613 = vsel %vm782, %v2611, %v2612
        %v2614 = vrot.slane %v2392, 2
        %v2615 = vsel %vm782, %v2612, %v2614
        %v2616 = vrot.slane %v2377, 2
        %v2617 = vrot.slane %v2290, 2
        %v2618 = vsel %vm782, %v2616, %v2617
        %v2619 = vrot.slane %v2393, 2
        %v2620 = vsel %vm782, %v2617, %v2619
        %v2621 = vrot.slane %v2378, 2
        %v2622 = vrot.slane %v2293, 2
        %v2623 = vsel %vm782, %v2621, %v2622
        %v2624 = vrot.slane %v2394, 2
        %v2625 = vsel %vm782, %v2622, %v2624
        %v2626 = vrot.slane %v2379, 2
        %v2627 = vrot.slane %v2296, 2
        %v2628 = vsel %vm782, %v2626, %v2627
        %v2629 = vrot.slane %v2395, 2
        %v2630 = vsel %vm782, %v2627, %v2629
        %v2631 = vrot.slane %v2380, 2
        %v2632 = vrot.slane %v2299, 2
        %v2633 = vsel %vm782, %v2631, %v2632
        %v2634 = vrot.slane %v2396, 2
        %v2635 = vsel %vm782, %v2632, %v2634
        %v2636 = vrot.slane %v2381, 2
        %v2637 = vrot.slane %v2302, 2
        %v2638 = vsel %vm782, %v2636, %v2637
        %v2639 = vrot.slane %v2397, 2
        %v2640 = vsel %vm782, %v2637, %v2639
        %v2641 = vrot.slane %v2382, 2
        %v2642 = vrot.slane %v2305, 2
        %v2643 = vsel %vm782, %v2641, %v2642
        %v2644 = vrot.slane %v2398, 2
        %v2645 = vsel %vm782, %v2642, %v2644
        %v2646 = vrot.slane %v2383, 2
        %v2647 = vrot.slane %v2308, 2
        %v2648 = vsel %vm782, %v2646, %v2647
        %v2649 = vrot.slane %v2399, 2
        %v2650 = vsel %vm782, %v2647, %v2649
        %v2651 = vrot.slane %v2384, 2
        %v2652 = vrot.slane %v2311, 2
        %v2653 = vsel %vm782, %v2651, %v2652
        %v2654 = vrot.slane %v2400, 2
        %v2655 = vsel %vm782, %v2652, %v2654
        %v2656 = vrot.slane %v2385, 2
        %v2657 = vrot.slane %v2314, 2
        %v2658 = vsel %vm782, %v2656, %v2657
        %v2659 = vrot.slane %v2401, 2
        %v2660 = vsel %vm782, %v2657, %v2659
        %v2661 = vrot.slane %v2386, 2
        %v2662 = vrot.slane %v2317, 2
        %v2663 = vsel %vm782, %v2661, %v2662
        %v2664 = vrot.slane %v2402, 2
        %v2665 = vsel %vm782, %v2662, %v2664
        %v2666 = vrot.slane %v2387, 2
        %v2667 = vrot.slane %v2320, 2
        %v2668 = vsel %vm782, %v2666, %v2667
        %v2669 = vrot.slane %v2403, 2
        %v2670 = vsel %vm782, %v2667, %v2669
        %v2671 = vrot.slane %v2388, 2
        %v2672 = vrot.slane %v2323, 2
        %v2673 = vsel %vm782, %v2671, %v2672
        %v2674 = vrot.slane %v2404, 2
        %v2675 = vsel %vm782, %v2672, %v2674
        %2676 = vrot.lane.b32.xlu0 %v2603, 16
        %v2677 = vpop.permute.xlu0 %2676
        %2678 = vrot.lane.b32.xlu0 %v2605, 16
        %v2679 = vpop.permute.xlu0 %2678
        %2680 = vrot.lane.b32.xlu0 %v2608, 16
        %v2681 = vpop.permute.xlu0 %2680
        %2682 = vrot.lane.b32.xlu0 %v2610, 16
        %v2683 = vpop.permute.xlu0 %2682
        %2684 = vrot.lane.b32.xlu0 %v2613, 16
        %v2685 = vpop.permute.xlu0 %2684
        %2686 = vrot.lane.b32.xlu0 %v2615, 16
        %v2687 = vpop.permute.xlu0 %2686
        %2688 = vrot.lane.b32.xlu0 %v2618, 16
        %v2689 = vpop.permute.xlu0 %2688
        %2690 = vrot.lane.b32.xlu0 %v2620, 16
        %v2691 = vpop.permute.xlu0 %2690
        %2692 = vrot.lane.b32.xlu0 %v2623, 16
        %v2693 = vpop.permute.xlu0 %2692
        %2694 = vrot.lane.b32.xlu0 %v2625, 16
        %v2695 = vpop.permute.xlu0 %2694
        %2696 = vrot.lane.b32.xlu0 %v2628, 16
        %v2697 = vpop.permute.xlu0 %2696
        %2698 = vrot.lane.b32.xlu0 %v2630, 16
        %v2699 = vpop.permute.xlu0 %2698
        %2700 = vrot.lane.b32.xlu0 %v2633, 16
        %v2701 = vpop.permute.xlu0 %2700
        %2702 = vrot.lane.b32.xlu0 %v2635, 16
        %v2703 = vpop.permute.xlu0 %2702
        %2704 = vrot.lane.b32.xlu0 %v2638, 16
        %v2705 = vpop.permute.xlu0 %2704
        %2706 = vrot.lane.b32.xlu0 %v2640, 16
        %v2707 = vpop.permute.xlu0 %2706
        %2708 = vrot.lane.b32.xlu0 %v2643, 16
        %v2709 = vpop.permute.xlu0 %2708
        %2710 = vrot.lane.b32.xlu0 %v2645, 16
        %v2711 = vpop.permute.xlu0 %2710
        %2712 = vrot.lane.b32.xlu0 %v2648, 16
        %v2713 = vpop.permute.xlu0 %2712
        %2714 = vrot.lane.b32.xlu0 %v2650, 16
        %v2715 = vpop.permute.xlu0 %2714
        %2716 = vrot.lane.b32.xlu0 %v2653, 16
        %v2717 = vpop.permute.xlu0 %2716
        %2718 = vrot.lane.b32.xlu0 %v2655, 16
        %v2719 = vpop.permute.xlu0 %2718
        %2720 = vrot.lane.b32.xlu0 %v2658, 16
        %v2721 = vpop.permute.xlu0 %2720
        %2722 = vrot.lane.b32.xlu0 %v2660, 16
        %v2723 = vpop.permute.xlu0 %2722
        %2724 = vrot.lane.b32.xlu0 %v2663, 16
        %v2725 = vpop.permute.xlu0 %2724
        %2726 = vrot.lane.b32.xlu0 %v2665, 16
        %v2727 = vpop.permute.xlu0 %2726
        %2728 = vrot.lane.b32.xlu0 %v2668, 16
        %v2729 = vpop.permute.xlu0 %2728
        %2730 = vrot.lane.b32.xlu0 %v2670, 16
        %v2731 = vpop.permute.xlu0 %2730
        %2732 = vrot.lane.b32.xlu0 %v2673, 16
        %v2733 = vpop.permute.xlu0 %2732
        %2734 = vrot.lane.b32.xlu0 %v2675, 16
        %v2735 = vpop.permute.xlu0 %2734
        %2767 = vrot.lane.b32.xlu0 %v2374, 24
        %v2768 = vpop.permute.xlu0 %2767
        %2769 = vrot.lane.b32.xlu0 %v2281, 24
        %v2770 = vpop.permute.xlu0 %2769
        %2771 = vrot.lane.b32.xlu0 %v2375, 24
        %v2772 = vpop.permute.xlu0 %2771
        %2773 = vrot.lane.b32.xlu0 %v2284, 24
        %v2774 = vpop.permute.xlu0 %2773
        %2775 = vrot.lane.b32.xlu0 %v2376, 24
        %v2776 = vpop.permute.xlu0 %2775
        %2777 = vrot.lane.b32.xlu0 %v2287, 24
        %v2778 = vpop.permute.xlu0 %2777
        %2779 = vrot.lane.b32.xlu0 %v2377, 24
        %v2780 = vpop.permute.xlu0 %2779
        %2781 = vrot.lane.b32.xlu0 %v2290, 24
        %v2782 = vpop.permute.xlu0 %2781
        %2783 = vrot.lane.b32.xlu0 %v2378, 24
        %v2784 = vpop.permute.xlu0 %2783
        %2785 = vrot.lane.b32.xlu0 %v2293, 24
        %v2786 = vpop.permute.xlu0 %2785
        %2787 = vrot.lane.b32.xlu0 %v2379, 24
        %v2788 = vpop.permute.xlu0 %2787
        %2789 = vrot.lane.b32.xlu0 %v2296, 24
        %v2790 = vpop.permute.xlu0 %2789
        %2791 = vrot.lane.b32.xlu0 %v2380, 24
        %v2792 = vpop.permute.xlu0 %2791
        %2793 = vrot.lane.b32.xlu0 %v2299, 24
        %v2794 = vpop.permute.xlu0 %2793
        %2795 = vrot.lane.b32.xlu0 %v2381, 24
        %v2796 = vpop.permute.xlu0 %2795
        %2797 = vrot.lane.b32.xlu0 %v2302, 24
        %v2798 = vpop.permute.xlu0 %2797
        %2799 = vrot.lane.b32.xlu0 %v2382, 24
        %v2800 = vpop.permute.xlu0 %2799
        %2801 = vrot.lane.b32.xlu0 %v2305, 24
        %v2802 = vpop.permute.xlu0 %2801
        %2803 = vrot.lane.b32.xlu0 %v2383, 24
        %v2804 = vpop.permute.xlu0 %2803
        %2805 = vrot.lane.b32.xlu0 %v2308, 24
        %v2806 = vpop.permute.xlu0 %2805
        %2807 = vrot.lane.b32.xlu0 %v2384, 24
        %v2808 = vpop.permute.xlu0 %2807
        %2809 = vrot.lane.b32.xlu0 %v2311, 24
        %v2810 = vpop.permute.xlu0 %2809
        %2811 = vrot.lane.b32.xlu0 %v2385, 24
        %v2812 = vpop.permute.xlu0 %2811
        %2813 = vrot.lane.b32.xlu0 %v2314, 24
        %v2814 = vpop.permute.xlu0 %2813
        %2815 = vrot.lane.b32.xlu0 %v2386, 24
        %v2816 = vpop.permute.xlu0 %2815
        %2817 = vrot.lane.b32.xlu0 %v2317, 24
        %v2818 = vpop.permute.xlu0 %2817
        %2819 = vrot.lane.b32.xlu0 %v2387, 24
        %v2820 = vpop.permute.xlu0 %2819
        %2821 = vrot.lane.b32.xlu0 %v2320, 24
        %v2822 = vpop.permute.xlu0 %2821
        %2823 = vrot.lane.b32.xlu0 %v2388, 24
        %v2824 = vpop.permute.xlu0 %2823
        %2825 = vrot.lane.b32.xlu0 %v2323, 24
        %v2826 = vpop.permute.xlu0 %2825
        %2827 = vrot.lane.b32.xlu0 %v2389, 24
        %v2828 = vpop.permute.xlu0 %2827
        %2829 = vrot.lane.b32.xlu0 %v2326, 24
        %v2830 = vpop.permute.xlu0 %2829
        %v2864 = vrot.slane %v2389, 1
        %v2865 = vrot.slane %v2326, 1
        %v2866 = vsel %vm605, %v2864, %v2865
        %v2867 = vrot.slane %v2405, 1
        %v2868 = vsel %vm605, %v2865, %v2867
        %2869 = vrot.lane.b32.xlu0 %v2438, 32
        %v2870 = vpop.permute.xlu0 %2869
        %2871 = vrot.lane.b32.xlu0 %v2440, 32
        %v2872 = vpop.permute.xlu0 %2871
        %2873 = vrot.lane.b32.xlu0 %v2443, 32
        %v2874 = vpop.permute.xlu0 %2873
        %2875 = vrot.lane.b32.xlu0 %v2445, 32
        %v2876 = vpop.permute.xlu0 %2875
        %2877 = vrot.lane.b32.xlu0 %v2448, 32
        %v2878 = vpop.permute.xlu0 %2877
        %2879 = vrot.lane.b32.xlu0 %v2450, 32
        %v2880 = vpop.permute.xlu0 %2879
        %2881 = vrot.lane.b32.xlu0 %v2453, 32
        %v2882 = vpop.permute.xlu0 %2881
        %2883 = vrot.lane.b32.xlu0 %v2455, 32
        %v2884 = vpop.permute.xlu0 %2883
        %2885 = vrot.lane.b32.xlu0 %v2458, 32
        %v2886 = vpop.permute.xlu0 %2885
        %2887 = vrot.lane.b32.xlu0 %v2460, 32
        %v2888 = vpop.permute.xlu0 %2887
        %2889 = vrot.lane.b32.xlu0 %v2463, 32
        %v2890 = vpop.permute.xlu0 %2889
        %2891 = vrot.lane.b32.xlu0 %v2465, 32
        %v2892 = vpop.permute.xlu0 %2891
        %2893 = vrot.lane.b32.xlu0 %v2468, 32
        %v2894 = vpop.permute.xlu0 %2893
        %2895 = vrot.lane.b32.xlu0 %v2470, 32
        %v2896 = vpop.permute.xlu0 %2895
        %2897 = vrot.lane.b32.xlu0 %v2473, 32
        %v2898 = vpop.permute.xlu0 %2897
        %2899 = vrot.lane.b32.xlu0 %v2475, 32
        %v2900 = vpop.permute.xlu0 %2899
        %2901 = vrot.lane.b32.xlu0 %v2478, 32
        %v2902 = vpop.permute.xlu0 %2901
        %2903 = vrot.lane.b32.xlu0 %v2480, 32
        %v2904 = vpop.permute.xlu0 %2903
        %2905 = vrot.lane.b32.xlu0 %v2483, 32
        %v2906 = vpop.permute.xlu0 %2905
        %2907 = vrot.lane.b32.xlu0 %v2485, 32
        %v2908 = vpop.permute.xlu0 %2907
        %2909 = vrot.lane.b32.xlu0 %v2488, 32
        %v2910 = vpop.permute.xlu0 %2909
        %2911 = vrot.lane.b32.xlu0 %v2490, 32
        %v2912 = vpop.permute.xlu0 %2911
        %2913 = vrot.lane.b32.xlu0 %v2493, 32
        %v2914 = vpop.permute.xlu0 %2913
        %2915 = vrot.lane.b32.xlu0 %v2495, 32
        %v2916 = vpop.permute.xlu0 %2915
        %2917 = vrot.lane.b32.xlu0 %v2498, 32
        %v2918 = vpop.permute.xlu0 %2917
        %2919 = vrot.lane.b32.xlu0 %v2500, 32
        %v2920 = vpop.permute.xlu0 %2919
        %2921 = vrot.lane.b32.xlu0 %v2503, 32
        %v2922 = vpop.permute.xlu0 %2921
        %2923 = vrot.lane.b32.xlu0 %v2505, 32
        %v2924 = vpop.permute.xlu0 %2923
        %2925 = vrot.lane.b32.xlu0 %v2508, 32
        %v2926 = vpop.permute.xlu0 %2925
        %2927 = vrot.lane.b32.xlu0 %v2510, 32
        %v2928 = vpop.permute.xlu0 %2927
        %2929 = vrot.lane.b32.xlu0 %v2866, 32
        %v2930 = vpop.permute.xlu0 %2929
        %2931 = vrot.lane.b32.xlu0 %v2868, 32
        %v2932 = vpop.permute.xlu0 %2931
        %v2965 = vrot.slane %v2389, 2
        %v2966 = vrot.slane %v2326, 2
        %v2967 = vsel %vm782, %v2965, %v2966
        %v2968 = vrot.slane %v2405, 2
        %v2969 = vsel %vm782, %v2966, %v2968
        %2970 = vrot.lane.b32.xlu0 %v2603, 40
        %v2971 = vpop.permute.xlu0 %2970
        %2972 = vrot.lane.b32.xlu0 %v2605, 40
        %v2973 = vpop.permute.xlu0 %2972
        %2974 = vrot.lane.b32.xlu0 %v2608, 40
        %v2975 = vpop.permute.xlu0 %2974
        %2976 = vrot.lane.b32.xlu0 %v2610, 40
        %v2977 = vpop.permute.xlu0 %2976
        %2978 = vrot.lane.b32.xlu0 %v2613, 40
        %v2979 = vpop.permute.xlu0 %2978
        %2980 = vrot.lane.b32.xlu0 %v2615, 40
        %v2981 = vpop.permute.xlu0 %2980
        %2982 = vrot.lane.b32.xlu0 %v2618, 40
        %v2983 = vpop.permute.xlu0 %2982
        %2984 = vrot.lane.b32.xlu0 %v2620, 40
        %v2985 = vpop.permute.xlu0 %2984
        %2986 = vrot.lane.b32.xlu0 %v2623, 40
        %v2987 = vpop.permute.xlu0 %2986
        %2988 = vrot.lane.b32.xlu0 %v2625, 40
        %v2989 = vpop.permute.xlu0 %2988
        %2990 = vrot.lane.b32.xlu0 %v2628, 40
        %v2991 = vpop.permute.xlu0 %2990
        %2992 = vrot.lane.b32.xlu0 %v2630, 40
        %v2993 = vpop.permute.xlu0 %2992
        %2994 = vrot.lane.b32.xlu0 %v2633, 40
        %v2995 = vpop.permute.xlu0 %2994
        %2996 = vrot.lane.b32.xlu0 %v2635, 40
        %v2997 = vpop.permute.xlu0 %2996
        %2998 = vrot.lane.b32.xlu0 %v2638, 40
        %v2999 = vpop.permute.xlu0 %2998
        %3000 = vrot.lane.b32.xlu0 %v2640, 40
        %v3001 = vpop.permute.xlu0 %3000
        %3002 = vrot.lane.b32.xlu0 %v2643, 40
        %v3003 = vpop.permute.xlu0 %3002
        %3004 = vrot.lane.b32.xlu0 %v2645, 40
        %v3005 = vpop.permute.xlu0 %3004
        %3006 = vrot.lane.b32.xlu0 %v2648, 40
        %v3007 = vpop.permute.xlu0 %3006
        %3008 = vrot.lane.b32.xlu0 %v2650, 40
        %v3009 = vpop.permute.xlu0 %3008
        %3010 = vrot.lane.b32.xlu0 %v2653, 40
        %v3011 = vpop.permute.xlu0 %3010
        %3012 = vrot.lane.b32.xlu0 %v2655, 40
        %v3013 = vpop.permute.xlu0 %3012
        %3014 = vrot.lane.b32.xlu0 %v2658, 40
        %v3015 = vpop.permute.xlu0 %3014
        %3016 = vrot.lane.b32.xlu0 %v2660, 40
        %v3017 = vpop.permute.xlu0 %3016
        %3018 = vrot.lane.b32.xlu0 %v2663, 40
        %v3019 = vpop.permute.xlu0 %3018
        %3020 = vrot.lane.b32.xlu0 %v2665, 40
        %v3021 = vpop.permute.xlu0 %3020
        %3022 = vrot.lane.b32.xlu0 %v2668, 40
        %v3023 = vpop.permute.xlu0 %3022
        %3024 = vrot.lane.b32.xlu0 %v2670, 40
        %v3025 = vpop.permute.xlu0 %3024
        %3026 = vrot.lane.b32.xlu0 %v2673, 40
        %v3027 = vpop.permute.xlu0 %3026
        %3028 = vrot.lane.b32.xlu0 %v2675, 40
        %v3029 = vpop.permute.xlu0 %3028
        %3030 = vrot.lane.b32.xlu0 %v2967, 40
        %v3031 = vpop.permute.xlu0 %3030
        %3032 = vrot.lane.b32.xlu0 %v2969, 40
        %v3033 = vpop.permute.xlu0 %3032
        %3066 = vrot.lane.b32.xlu0 %v2375, 48
        %v3067 = vpop.permute.xlu0 %3066
        %3068 = vrot.lane.b32.xlu0 %v2284, 48
        %v3069 = vpop.permute.xlu0 %3068
        %3070 = vrot.lane.b32.xlu0 %v2376, 48
        %v3071 = vpop.permute.xlu0 %3070
        %3072 = vrot.lane.b32.xlu0 %v2287, 48
        %v3073 = vpop.permute.xlu0 %3072
        %3074 = vrot.lane.b32.xlu0 %v2377, 48
        %v3075 = vpop.permute.xlu0 %3074
        %3076 = vrot.lane.b32.xlu0 %v2290, 48
        %v3077 = vpop.permute.xlu0 %3076
        %3078 = vrot.lane.b32.xlu0 %v2378, 48
        %v3079 = vpop.permute.xlu0 %3078
        %3080 = vrot.lane.b32.xlu0 %v2293, 48
        %v3081 = vpop.permute.xlu0 %3080
        %3082 = vrot.lane.b32.xlu0 %v2379, 48
        %v3083 = vpop.permute.xlu0 %3082
        %3084 = vrot.lane.b32.xlu0 %v2296, 48
        %v3085 = vpop.permute.xlu0 %3084
        %3086 = vrot.lane.b32.xlu0 %v2380, 48
        %v3087 = vpop.permute.xlu0 %3086
        %3088 = vrot.lane.b32.xlu0 %v2299, 48
        %v3089 = vpop.permute.xlu0 %3088
        %3090 = vrot.lane.b32.xlu0 %v2381, 48
        %v3091 = vpop.permute.xlu0 %3090
        %3092 = vrot.lane.b32.xlu0 %v2302, 48
        %v3093 = vpop.permute.xlu0 %3092
        %3094 = vrot.lane.b32.xlu0 %v2382, 48
        %v3095 = vpop.permute.xlu0 %3094
        %3096 = vrot.lane.b32.xlu0 %v2305, 48
        %v3097 = vpop.permute.xlu0 %3096
        %3098 = vrot.lane.b32.xlu0 %v2383, 48
        %v3099 = vpop.permute.xlu0 %3098
        %3100 = vrot.lane.b32.xlu0 %v2308, 48
        %v3101 = vpop.permute.xlu0 %3100
        %3102 = vrot.lane.b32.xlu0 %v2384, 48
        %v3103 = vpop.permute.xlu0 %3102
        %3104 = vrot.lane.b32.xlu0 %v2311, 48
        %v3105 = vpop.permute.xlu0 %3104
        %3106 = vrot.lane.b32.xlu0 %v2385, 48
        %v3107 = vpop.permute.xlu0 %3106
        %3108 = vrot.lane.b32.xlu0 %v2314, 48
        %v3109 = vpop.permute.xlu0 %3108
        %3110 = vrot.lane.b32.xlu0 %v2386, 48
        %v3111 = vpop.permute.xlu0 %3110
        %3112 = vrot.lane.b32.xlu0 %v2317, 48
        %v3113 = vpop.permute.xlu0 %3112
        %3114 = vrot.lane.b32.xlu0 %v2387, 48
        %v3115 = vpop.permute.xlu0 %3114
        %3116 = vrot.lane.b32.xlu0 %v2320, 48
        %v3117 = vpop.permute.xlu0 %3116
        %3118 = vrot.lane.b32.xlu0 %v2388, 48
        %v3119 = vpop.permute.xlu0 %3118
        %3120 = vrot.lane.b32.xlu0 %v2323, 48
        %v3121 = vpop.permute.xlu0 %3120
        %3122 = vrot.lane.b32.xlu0 %v2389, 48
        %v3123 = vpop.permute.xlu0 %3122
        %3124 = vrot.lane.b32.xlu0 %v2326, 48
        %v3125 = vpop.permute.xlu0 %3124
        %3156 = vrot.lane.b32.xlu0 %v2443, 56
        %v3157 = vpop.permute.xlu0 %3156
        %3158 = vrot.lane.b32.xlu0 %v2445, 56
        %v3159 = vpop.permute.xlu0 %3158
        %3160 = vrot.lane.b32.xlu0 %v2448, 56
        %v3161 = vpop.permute.xlu0 %3160
        %3162 = vrot.lane.b32.xlu0 %v2450, 56
        %v3163 = vpop.permute.xlu0 %3162
        %3164 = vrot.lane.b32.xlu0 %v2453, 56
        %v3165 = vpop.permute.xlu0 %3164
        %3166 = vrot.lane.b32.xlu0 %v2455, 56
        %v3167 = vpop.permute.xlu0 %3166
        %3168 = vrot.lane.b32.xlu0 %v2458, 56
        %v3169 = vpop.permute.xlu0 %3168
        %3170 = vrot.lane.b32.xlu0 %v2460, 56
        %v3171 = vpop.permute.xlu0 %3170
        %3172 = vrot.lane.b32.xlu0 %v2463, 56
        %v3173 = vpop.permute.xlu0 %3172
        %3174 = vrot.lane.b32.xlu0 %v2465, 56
        %v3175 = vpop.permute.xlu0 %3174
        %3176 = vrot.lane.b32.xlu0 %v2468, 56
        %v3177 = vpop.permute.xlu0 %3176
        %3178 = vrot.lane.b32.xlu0 %v2470, 56
        %v3179 = vpop.permute.xlu0 %3178
        %3180 = vrot.lane.b32.xlu0 %v2473, 56
        %v3181 = vpop.permute.xlu0 %3180
        %3182 = vrot.lane.b32.xlu0 %v2475, 56
        %v3183 = vpop.permute.xlu0 %3182
        %3184 = vrot.lane.b32.xlu0 %v2478, 56
        %v3185 = vpop.permute.xlu0 %3184
        %3186 = vrot.lane.b32.xlu0 %v2480, 56
        %v3187 = vpop.permute.xlu0 %3186
        %3188 = vrot.lane.b32.xlu0 %v2483, 56
        %v3189 = vpop.permute.xlu0 %3188
        %3190 = vrot.lane.b32.xlu0 %v2485, 56
        %v3191 = vpop.permute.xlu0 %3190
        %3192 = vrot.lane.b32.xlu0 %v2488, 56
        %v3193 = vpop.permute.xlu0 %3192
        %3194 = vrot.lane.b32.xlu0 %v2490, 56
        %v3195 = vpop.permute.xlu0 %3194
        %3196 = vrot.lane.b32.xlu0 %v2493, 56
        %v3197 = vpop.permute.xlu0 %3196
        %3198 = vrot.lane.b32.xlu0 %v2495, 56
        %v3199 = vpop.permute.xlu0 %3198
        %3200 = vrot.lane.b32.xlu0 %v2498, 56
        %v3201 = vpop.permute.xlu0 %3200
        %3202 = vrot.lane.b32.xlu0 %v2500, 56
        %v3203 = vpop.permute.xlu0 %3202
        %3204 = vrot.lane.b32.xlu0 %v2503, 56
        %v3205 = vpop.permute.xlu0 %3204
        %3206 = vrot.lane.b32.xlu0 %v2505, 56
        %v3207 = vpop.permute.xlu0 %3206
        %3208 = vrot.lane.b32.xlu0 %v2508, 56
        %v3209 = vpop.permute.xlu0 %3208
        %3210 = vrot.lane.b32.xlu0 %v2510, 56
        %v3211 = vpop.permute.xlu0 %3210
        %3212 = vrot.lane.b32.xlu0 %v2866, 56
        %v3213 = vpop.permute.xlu0 %3212
        %3214 = vrot.lane.b32.xlu0 %v2868, 56
        %v3215 = vpop.permute.xlu0 %3214
        %3246 = vrot.lane.b32.xlu0 %v2608, 64
        %v3247 = vpop.permute.xlu0 %3246
        %3248 = vrot.lane.b32.xlu0 %v2610, 64
        %v3249 = vpop.permute.xlu0 %3248
        %3250 = vrot.lane.b32.xlu0 %v2613, 64
        %v3251 = vpop.permute.xlu0 %3250
        %3252 = vrot.lane.b32.xlu0 %v2615, 64
        %v3253 = vpop.permute.xlu0 %3252
        %3254 = vrot.lane.b32.xlu0 %v2618, 64
        %v3255 = vpop.permute.xlu0 %3254
        %3256 = vrot.lane.b32.xlu0 %v2620, 64
        %v3257 = vpop.permute.xlu0 %3256
        %3258 = vrot.lane.b32.xlu0 %v2623, 64
        %v3259 = vpop.permute.xlu0 %3258
        %3260 = vrot.lane.b32.xlu0 %v2625, 64
        %v3261 = vpop.permute.xlu0 %3260
        %3262 = vrot.lane.b32.xlu0 %v2628, 64
        %v3263 = vpop.permute.xlu0 %3262
        %3264 = vrot.lane.b32.xlu0 %v2630, 64
        %v3265 = vpop.permute.xlu0 %3264
        %3266 = vrot.lane.b32.xlu0 %v2633, 64
        %v3267 = vpop.permute.xlu0 %3266
        %3268 = vrot.lane.b32.xlu0 %v2635, 64
        %v3269 = vpop.permute.xlu0 %3268
        %3270 = vrot.lane.b32.xlu0 %v2638, 64
        %v3271 = vpop.permute.xlu0 %3270
        %3272 = vrot.lane.b32.xlu0 %v2640, 64
        %v3273 = vpop.permute.xlu0 %3272
        %3274 = vrot.lane.b32.xlu0 %v2643, 64
        %v3275 = vpop.permute.xlu0 %3274
        %3276 = vrot.lane.b32.xlu0 %v2645, 64
        %v3277 = vpop.permute.xlu0 %3276
        %3278 = vrot.lane.b32.xlu0 %v2648, 64
        %v3279 = vpop.permute.xlu0 %3278
        %3280 = vrot.lane.b32.xlu0 %v2650, 64
        %v3281 = vpop.permute.xlu0 %3280
        %3282 = vrot.lane.b32.xlu0 %v2653, 64
        %v3283 = vpop.permute.xlu0 %3282
        %3284 = vrot.lane.b32.xlu0 %v2655, 64
        %v3285 = vpop.permute.xlu0 %3284
        %3286 = vrot.lane.b32.xlu0 %v2658, 64
        %v3287 = vpop.permute.xlu0 %3286
        %3288 = vrot.lane.b32.xlu0 %v2660, 64
        %v3289 = vpop.permute.xlu0 %3288
        %3290 = vrot.lane.b32.xlu0 %v2663, 64
        %v3291 = vpop.permute.xlu0 %3290
        %3292 = vrot.lane.b32.xlu0 %v2665, 64
        %v3293 = vpop.permute.xlu0 %3292
        %3294 = vrot.lane.b32.xlu0 %v2668, 64
        %v3295 = vpop.permute.xlu0 %3294
        %3296 = vrot.lane.b32.xlu0 %v2670, 64
        %v3297 = vpop.permute.xlu0 %3296
        %3298 = vrot.lane.b32.xlu0 %v2673, 64
        %v3299 = vpop.permute.xlu0 %3298
        %3300 = vrot.lane.b32.xlu0 %v2675, 64
        %v3301 = vpop.permute.xlu0 %3300
        %3302 = vrot.lane.b32.xlu0 %v2967, 64
        %v3303 = vpop.permute.xlu0 %3302
        %3304 = vrot.lane.b32.xlu0 %v2969, 64
        %v3305 = vpop.permute.xlu0 %3304
        %v3336 = vsel %vm1547, %v2374, %v2512
        %v3337 = vsel %vm1547, %v2281, %v2514
        %v3338 = vsel %vm1547, %v2375, %v2516
        %v3339 = vsel %vm1547, %v2284, %v2518
        %v3340 = vsel %vm1547, %v2376, %v2520
        %v3341 = vsel %vm1547, %v2287, %v2522
        %v3342 = vsel %vm1547, %v2377, %v2524
        %v3343 = vsel %vm1547, %v2290, %v2526
        %v3344 = vsel %vm1547, %v2378, %v2528
        %v3345 = vsel %vm1547, %v2293, %v2530
        %v3346 = vsel %vm1547, %v2379, %v2532
        %v3347 = vsel %vm1547, %v2296, %v2534
        %v3348 = vsel %vm1547, %v2380, %v2536
        %v3349 = vsel %vm1547, %v2299, %v2538
        %v3350 = vsel %vm1547, %v2381, %v2540
        %v3351 = vsel %vm1547, %v2302, %v2542
        %v3352 = vsel %vm1547, %v2382, %v2544
        %v3353 = vsel %vm1547, %v2305, %v2546
        %v3354 = vsel %vm1547, %v2383, %v2548
        %v3355 = vsel %vm1547, %v2308, %v2550
        %v3356 = vsel %vm1547, %v2384, %v2552
        %v3357 = vsel %vm1547, %v2311, %v2554
        %v3358 = vsel %vm1547, %v2385, %v2556
        %v3359 = vsel %vm1547, %v2314, %v2558
        %v3360 = vsel %vm1547, %v2386, %v2560
        %v3361 = vsel %vm1547, %v2317, %v2562
        %v3362 = vsel %vm1547, %v2387, %v2564
        %v3363 = vsel %vm1547, %v2320, %v2566
        %v3364 = vsel %vm1547, %v2388, %v2568
        %v3365 = vsel %vm1547, %v2323, %v2570
        %v3366 = vsel %vm1580, %v3336, %v2677
        %v3367 = vsel %vm1580, %v3337, %v2679
        %v3368 = vsel %vm1580, %v3338, %v2681
        %v3369 = vsel %vm1580, %v3339, %v2683
        %v3370 = vsel %vm1580, %v3340, %v2685
        %v3371 = vsel %vm1580, %v3341, %v2687
        %v3372 = vsel %vm1580, %v3342, %v2689
        %v3373 = vsel %vm1580, %v3343, %v2691
        %v3374 = vsel %vm1580, %v3344, %v2693
        %v3375 = vsel %vm1580, %v3345, %v2695
        %v3376 = vsel %vm1580, %v3346, %v2697
        %v3377 = vsel %vm1580, %v3347, %v2699
        %v3378 = vsel %vm1580, %v3348, %v2701
        %v3379 = vsel %vm1580, %v3349, %v2703
        %v3380 = vsel %vm1580, %v3350, %v2705
        %v3381 = vsel %vm1580, %v3351, %v2707
        %v3382 = vsel %vm1580, %v3352, %v2709
        %v3383 = vsel %vm1580, %v3353, %v2711
        %v3384 = vsel %vm1580, %v3354, %v2713
        %v3385 = vsel %vm1580, %v3355, %v2715
        %v3386 = vsel %vm1580, %v3356, %v2717
        %v3387 = vsel %vm1580, %v3357, %v2719
        %v3388 = vsel %vm1580, %v3358, %v2721
        %v3389 = vsel %vm1580, %v3359, %v2723
        %v3390 = vsel %vm1580, %v3360, %v2725
        %v3391 = vsel %vm1580, %v3361, %v2727
        %v3392 = vsel %vm1580, %v3362, %v2729
        %v3393 = vsel %vm1580, %v3363, %v2731
        %v3394 = vsel %vm1580, %v3364, %v2733
        %v3395 = vsel %vm1580, %v3365, %v2735
        %v3396 = vsel %vm1613, %v1581, %v2768
        %v3397 = vsel %vm1613, %v1582, %v2770
        %v3398 = vsel %vm1613, %v3366, %v2772
        %v3399 = vsel %vm1613, %v3367, %v2774
        %v3400 = vsel %vm1613, %v3368, %v2776
        %v3401 = vsel %vm1613, %v3369, %v2778
        %v3402 = vsel %vm1613, %v3370, %v2780
        %v3403 = vsel %vm1613, %v3371, %v2782
        %v3404 = vsel %vm1613, %v3372, %v2784
        %v3405 = vsel %vm1613, %v3373, %v2786
        %v3406 = vsel %vm1613, %v3374, %v2788
        %v3407 = vsel %vm1613, %v3375, %v2790
        %v3408 = vsel %vm1613, %v3376, %v2792
        %v3409 = vsel %vm1613, %v3377, %v2794
        %v3410 = vsel %vm1613, %v3378, %v2796
        %v3411 = vsel %vm1613, %v3379, %v2798
        %v3412 = vsel %vm1613, %v3380, %v2800
        %v3413 = vsel %vm1613, %v3381, %v2802
        %v3414 = vsel %vm1613, %v3382, %v2804
        %v3415 = vsel %vm1613, %v3383, %v2806
        %v3416 = vsel %vm1613, %v3384, %v2808
        %v3417 = vsel %vm1613, %v3385, %v2810
        %v3418 = vsel %vm1613, %v3386, %v2812
        %v3419 = vsel %vm1613, %v3387, %v2814
        %v3420 = vsel %vm1613, %v3388, %v2816
        %v3421 = vsel %vm1613, %v3389, %v2818
        %v3422 = vsel %vm1613, %v3390, %v2820
        %v3423 = vsel %vm1613, %v3391, %v2822
        %v3424 = vsel %vm1613, %v3392, %v2824
        %v3425 = vsel %vm1613, %v3393, %v2826
        %v3426 = vsel %vm1613, %v3394, %v2828
        %v3427 = vsel %vm1613, %v3395, %v2830
        %v3428 = vsel %vm1646, %v3396, %v2870
        %v3429 = vsel %vm1646, %v3397, %v2872
        %v3430 = vsel %vm1646, %v3398, %v2874
        %v3431 = vsel %vm1646, %v3399, %v2876
        %v3432 = vsel %vm1646, %v3400, %v2878
        %v3433 = vsel %vm1646, %v3401, %v2880
        %v3434 = vsel %vm1646, %v3402, %v2882
        %v3435 = vsel %vm1646, %v3403, %v2884
        %v3436 = vsel %vm1646, %v3404, %v2886
        %v3437 = vsel %vm1646, %v3405, %v2888
        %v3438 = vsel %vm1646, %v3406, %v2890
        %v3439 = vsel %vm1646, %v3407, %v2892
        %v3440 = vsel %vm1646, %v3408, %v2894
        %v3441 = vsel %vm1646, %v3409, %v2896
        %v3442 = vsel %vm1646, %v3410, %v2898
        %v3443 = vsel %vm1646, %v3411, %v2900
        %v3444 = vsel %vm1646, %v3412, %v2902
        %v3445 = vsel %vm1646, %v3413, %v2904
        %v3446 = vsel %vm1646, %v3414, %v2906
        %v3447 = vsel %vm1646, %v3415, %v2908
        %v3448 = vsel %vm1646, %v3416, %v2910
        %v3449 = vsel %vm1646, %v3417, %v2912
        %v3450 = vsel %vm1646, %v3418, %v2914
        %v3451 = vsel %vm1646, %v3419, %v2916
        %v3452 = vsel %vm1646, %v3420, %v2918
        %v3453 = vsel %vm1646, %v3421, %v2920
        %v3454 = vsel %vm1646, %v3422, %v2922
        %v3455 = vsel %vm1646, %v3423, %v2924
        %v3456 = vsel %vm1646, %v3424, %v2926
        %v3457 = vsel %vm1646, %v3425, %v2928
        %v3458 = vsel %vm1646, %v3426, %v2930
        %v3459 = vsel %vm1646, %v3427, %v2932
        %v3460 = vsel %vm1679, %v3428, %v2971
        %v3461 = vsel %vm1679, %v3429, %v2973
        %v3462 = vsel %vm1679, %v3430, %v2975
        %v3463 = vsel %vm1679, %v3431, %v2977
        %v3464 = vsel %vm1679, %v3432, %v2979
        %v3465 = vsel %vm1679, %v3433, %v2981
        %v3466 = vsel %vm1679, %v3434, %v2983
        %v3467 = vsel %vm1679, %v3435, %v2985
        %v3468 = vsel %vm1679, %v3436, %v2987
        %v3469 = vsel %vm1679, %v3437, %v2989
        %v3470 = vsel %vm1679, %v3438, %v2991
        %v3471 = vsel %vm1679, %v3439, %v2993
        %v3472 = vsel %vm1679, %v3440, %v2995
        %v3473 = vsel %vm1679, %v3441, %v2997
        %v3474 = vsel %vm1679, %v3442, %v2999
        %v3475 = vsel %vm1679, %v3443, %v3001
        %v3476 = vsel %vm1679, %v3444, %v3003
        %v3477 = vsel %vm1679, %v3445, %v3005
        %v3478 = vsel %vm1679, %v3446, %v3007
        %v3479 = vsel %vm1679, %v3447, %v3009
        %v3480 = vsel %vm1679, %v3448, %v3011
        %v3481 = vsel %vm1679, %v3449, %v3013
        %v3482 = vsel %vm1679, %v3450, %v3015
        %v3483 = vsel %vm1679, %v3451, %v3017
        %v3484 = vsel %vm1679, %v3452, %v3019
        %v3485 = vsel %vm1679, %v3453, %v3021
        %v3486 = vsel %vm1679, %v3454, %v3023
        %v3487 = vsel %vm1679, %v3455, %v3025
        %v3488 = vsel %vm1679, %v3456, %v3027
        %v3489 = vsel %vm1679, %v3457, %v3029
        %v3490 = vsel %vm1679, %v3458, %v3031
        %v3491 = vsel %vm1679, %v3459, %v3033
        %v3492 = vsel %vm1712, %v3460, %v3067
        %v3493 = vsel %vm1712, %v3461, %v3069
        %v3494 = vsel %vm1712, %v3462, %v3071
        %v3495 = vsel %vm1712, %v3463, %v3073
        %v3496 = vsel %vm1712, %v3464, %v3075
        %v3497 = vsel %vm1712, %v3465, %v3077
        %v3498 = vsel %vm1712, %v3466, %v3079
        %v3499 = vsel %vm1712, %v3467, %v3081
        %v3500 = vsel %vm1712, %v3468, %v3083
        %v3501 = vsel %vm1712, %v3469, %v3085
        %v3502 = vsel %vm1712, %v3470, %v3087
        %v3503 = vsel %vm1712, %v3471, %v3089
        %v3504 = vsel %vm1712, %v3472, %v3091
        %v3505 = vsel %vm1712, %v3473, %v3093
        %v3506 = vsel %vm1712, %v3474, %v3095
        %v3507 = vsel %vm1712, %v3475, %v3097
        %v3508 = vsel %vm1712, %v3476, %v3099
        %v3509 = vsel %vm1712, %v3477, %v3101
        %v3510 = vsel %vm1712, %v3478, %v3103
        %v3511 = vsel %vm1712, %v3479, %v3105
        %v3512 = vsel %vm1712, %v3480, %v3107
        %v3513 = vsel %vm1712, %v3481, %v3109
        %v3514 = vsel %vm1712, %v3482, %v3111
        %v3515 = vsel %vm1712, %v3483, %v3113
        %v3516 = vsel %vm1712, %v3484, %v3115
        %v3517 = vsel %vm1712, %v3485, %v3117
        %v3518 = vsel %vm1712, %v3486, %v3119
        %v3519 = vsel %vm1712, %v3487, %v3121
        %v3520 = vsel %vm1712, %v3488, %v3123
        %v3521 = vsel %vm1712, %v3489, %v3125
        %v3522 = vsel %vm1712, %v3490, %v1320
        %v3523 = vsel %vm1712, %v3491, %v1322
        %v3524 = vsel %vm1745, %v3492, %v3157
        %v3525 = vsel %vm1745, %v3493, %v3159
        %v3526 = vsel %vm1745, %v3494, %v3161
        %v3527 = vsel %vm1745, %v3495, %v3163
        %v3528 = vsel %vm1745, %v3496, %v3165
        %v3529 = vsel %vm1745, %v3497, %v3167
        %v3530 = vsel %vm1745, %v3498, %v3169
        %v3531 = vsel %vm1745, %v3499, %v3171
        %v3532 = vsel %vm1745, %v3500, %v3173
        %v3533 = vsel %vm1745, %v3501, %v3175
        %v3534 = vsel %vm1745, %v3502, %v3177
        %v3535 = vsel %vm1745, %v3503, %v3179
        %v3536 = vsel %vm1745, %v3504, %v3181
        %v3537 = vsel %vm1745, %v3505, %v3183
        %v3538 = vsel %vm1745, %v3506, %v3185
        %v3539 = vsel %vm1745, %v3507, %v3187
        %v3540 = vsel %vm1745, %v3508, %v3189
        %v3541 = vsel %vm1745, %v3509, %v3191
        %v3542 = vsel %vm1745, %v3510, %v3193
        %v3543 = vsel %vm1745, %v3511, %v3195
        %v3544 = vsel %vm1745, %v3512, %v3197
        %v3545 = vsel %vm1745, %v3513, %v3199
        %v3546 = vsel %vm1745, %v3514, %v3201
        %v3547 = vsel %vm1745, %v3515, %v3203
        %v3548 = vsel %vm1745, %v3516, %v3205
        %v3549 = vsel %vm1745, %v3517, %v3207
        %v3550 = vsel %vm1745, %v3518, %v3209
        %v3551 = vsel %vm1745, %v3519, %v3211
        %v3552 = vsel %vm1745, %v3520, %v3213
        %v3553 = vsel %vm1745, %v3521, %v3215
        %v3554 = vsel %vm1745, %v3522, %v1416
        %v3555 = vsel %vm1745, %v3523, %v1418
        %v3556 = vsel %vm1778, %v3524, %v3247
        %v3557 = vsel %vm1778, %v3525, %v3249
        %v3558 = vsel %vm1778, %v3526, %v3251
        %v3559 = vsel %vm1778, %v3527, %v3253
        %v3560 = vsel %vm1778, %v3528, %v3255
        %v3561 = vsel %vm1778, %v3529, %v3257
        %v3562 = vsel %vm1778, %v3530, %v3259
        %v3563 = vsel %vm1778, %v3531, %v3261
        %v3564 = vsel %vm1778, %v3532, %v3263
        %v3565 = vsel %vm1778, %v3533, %v3265
        %v3566 = vsel %vm1778, %v3534, %v3267
        %v3567 = vsel %vm1778, %v3535, %v3269
        %v3568 = vsel %vm1778, %v3536, %v3271
        %v3569 = vsel %vm1778, %v3537, %v3273
        %v3570 = vsel %vm1778, %v3538, %v3275
        %v3571 = vsel %vm1778, %v3539, %v3277
        %v3572 = vsel %vm1778, %v3540, %v3279
        %v3573 = vsel %vm1778, %v3541, %v3281
        %v3574 = vsel %vm1778, %v3542, %v3283
        %v3575 = vsel %vm1778, %v3543, %v3285
        %v3576 = vsel %vm1778, %v3544, %v3287
        %v3577 = vsel %vm1778, %v3545, %v3289
        %v3578 = vsel %vm1778, %v3546, %v3291
        %v3579 = vsel %vm1778, %v3547, %v3293
        %v3580 = vsel %vm1778, %v3548, %v3295
        %v3581 = vsel %vm1778, %v3549, %v3297
        %v3582 = vsel %vm1778, %v3550, %v3299
        %v3583 = vsel %vm1778, %v3551, %v3301
        %v3584 = vsel %vm1778, %v3552, %v3303
        %v3585 = vsel %vm1778, %v3553, %v3305
        %v3586 = vsel %vm1778, %v3554, %v1512
        %v3587 = vsel %vm1778, %v3555, %v1514
        %v3589 = vlaneseq
        %v3590 = vshrl.u32 %v3589, 7
        %v3591 = vsub.s32 0, %v3590
        %v3592 = vrot.slane %v2246, %v3591
        %v3595 = vsel %vm1817, %v3556, 0
        %v3598 = vsel %vm1817, %v3557, 0
        %v3601 = vsel %vm1817, %v3558, 0
        %v3604 = vsel %vm1817, %v3559, 0
        %v3607 = vsel %vm1817, %v3560, 0
        %v3610 = vsel %vm1817, %v3561, 0
        %v3613 = vsel %vm1817, %v3562, 0
        %v3616 = vsel %vm1817, %v3563, 0
        %v3619 = vsel %vm1817, %v3564, 0
        %v3622 = vsel %vm1817, %v3565, 0
        %v3625 = vsel %vm1817, %v3566, 0
        %v3628 = vsel %vm1817, %v3567, 0
        %v3631 = vsel %vm1817, %v3568, 0
        %v3634 = vsel %vm1817, %v3569, 0
        %v3637 = vsel %vm1817, %v3570, 0
        %v3640 = vsel %vm1817, %v3571, 0
        %v3643 = vsel %vm1817, %v3572, 0
        %v3646 = vsel %vm1817, %v3573, 0
        %v3649 = vsel %vm1817, %v3574, 0
        %v3652 = vsel %vm1817, %v3575, 0
        %v3655 = vsel %vm1817, %v3576, 0
        %v3658 = vsel %vm1817, %v3577, 0
        %v3661 = vsel %vm1817, %v3578, 0
        %v3664 = vsel %vm1817, %v3579, 0
        %v3667 = vsel %vm1817, %v3580, 0
        %v3670 = vsel %vm1817, %v3581, 0
        %v3673 = vsel %vm1817, %v3582, 0
        %v3676 = vsel %vm1817, %v3583, 0
        %v3679 = vsel %vm1817, %v3584, 0
        %v3682 = vsel %vm1817, %v3585, 0
        %v3685 = vsel %vm1817, %v3586, 0
        %v3688 = vsel %vm1817, %v3587, 0
        %3690 = vmatprep.subr.mxu0 0.0
        %3691 = vmatpush1.msra.mxu0 0.0
        %3692 = vmatprep.subr.mxu0 0.0
        %3693 = vmatpush1.msra.mxu0 0.0
        %3694 = vmatprep.subr.mxu0 0.0
        %3695 = vmatpush1.msra.mxu0 0.0
        %3696 = vmatprep.subr.mxu0 0.0
        %3697 = vmatpush1.msra.mxu0 0.0
        %3698 = vmatprep.subr.mxu0 0.0
        %3699 = vmatpush1.msra.mxu0 0.0
        %3700 = vmatprep.subr.mxu0 0.0
        %3701 = vmatpush1.msra.mxu0 0.0
        %3702 = vmatprep.subr.mxu0 0.0
        %3703 = vmatpush1.msra.mxu0 0.0
        %3704 = vmatprep.subr.mxu0 0.0
        %3705 = vmatpush1.msra.mxu0 %v2245
        %3706 = vmatprep.subr.mxu0 0.0
        %3707 = vmatpush1.msra.mxu0 %v2244
        %3708 = vmatprep.subr.mxu0 0.0
        %3709 = vmatpush1.msra.mxu0 %v2243
        %3710 = vmatprep.subr.mxu0 0.0
        %3711 = vmatpush1.msra.mxu0 %v2242
        %3712 = vmatprep.subr.mxu0 0.0
        %3713 = vmatpush1.msra.mxu0 %v2241
        %3714 = vmatprep.subr.mxu0 0.0
        %3715 = vmatpush1.msra.mxu0 %v2240
        %3716 = vmatprep.subr.mxu0 0.0
        %3717 = vmatpush1.msra.mxu0 %v2239
        %3718 = vmatprep.subr.mxu0 0.0
        %3719 = vmatpush1.msra.mxu0 %v2238
        %3720 = vmatprep.subr.mxu0 0.0
        %3721 = vmatpush1.msra.mxu0 %v2237
        %3722 = vmatprep.subr.mxu0 0.0
        %3723 = vmatpush2.msra.mxu0 0.0
        %3724 = vmatprep.subr.mxu0 0.0
        %3725 = vmatpush2.msra.mxu0 0.0
        %3726 = vmatprep.subr.mxu0 0.0
        %3727 = vmatpush2.msra.mxu0 0.0
        %3728 = vmatprep.subr.mxu0 0.0
        %3729 = vmatpush2.msra.mxu0 0.0
        %3730 = vmatprep.subr.mxu0 0.0
        %3731 = vmatpush2.msra.mxu0 0.0
        %3732 = vmatprep.subr.mxu0 0.0
        %3733 = vmatpush2.msra.mxu0 0.0
        %3734 = vmatprep.subr.mxu0 0.0
        %3735 = vmatpush2.msra.mxu0 0.0
        %3736 = vmatprep.subr.mxu0 0.0
        %3737 = vmatpush2.msra.mxu0 0.0
        %3738 = vmatprep.subr.mxu0 0.0
        %3739 = vmatpush2.msra.mxu0 0.0
        %3740 = vmatprep.subr.mxu0 0.0
        %3741 = vmatpush2.msra.mxu0 0.0
        %3742 = vmatprep.subr.mxu0 0.0
        %3743 = vmatpush2.msra.mxu0 0.0
        %3744 = vmatprep.subr.mxu0 0.0
        %3745 = vmatpush2.msra.mxu0 0.0
        %3746 = vmatprep.subr.mxu0 0.0
        %3747 = vmatpush2.msra.mxu0 0.0
        %3748 = vmatprep.subr.mxu0 0.0
        %3749 = vmatpush2.msra.mxu0 0.0
        %3750 = vmatprep.subr.mxu0 0.0
        %3751 = vmatpush2.msra.mxu0 0.0
        %3752 = vmatprep.subr.mxu0 0.0
        %3753 = vmatpush2.msra.mxu0 0.0
        %3754 = vmatprep.mubr.f32.mxu0 0.0
        %3755 = vmatmul.mubr.f32.gmra.mxu0 %v3595
        %v3756 = vpop.f32.mrf.mxu0
        %v3757 = vadd.f32 %v3592, %v3756
        %v3758 = vpop.f32.mrf.mxu0
        %3759 = vmatprep.mubr.f32.mxu0 0.0
        %3760 = vmatmul.mubr.f32.gmra.mxu0 %v3598
        %v3761 = vpop.f32.mrf.mxu0
        %v3762 = vadd.f32 %v3592, %v3761
        %v3763 = vpop.f32.mrf.mxu0
        %3764 = vmatprep.mubr.f32.mxu0 0.0
        %3765 = vmatmul.mubr.f32.gmra.mxu0 %v3601
        %v3766 = vpop.f32.mrf.mxu0
        %v3767 = vadd.f32 %v3592, %v3766
        %v3768 = vpop.f32.mrf.mxu0
        %3769 = vmatprep.mubr.f32.mxu0 0.0
        %3770 = vmatmul.mubr.f32.gmra.mxu0 %v3604
        %v3771 = vpop.f32.mrf.mxu0
        %v3772 = vadd.f32 %v3592, %v3771
        %v3773 = vpop.f32.mrf.mxu0
        %3774 = vmatprep.mubr.f32.mxu0 0.0
        %3775 = vmatmul.mubr.f32.gmra.mxu0 %v3607
        %v3776 = vpop.f32.mrf.mxu0
        %v3777 = vadd.f32 %v3592, %v3776
        %v3778 = vpop.f32.mrf.mxu0
        %3779 = vmatprep.mubr.f32.mxu0 0.0
        %3780 = vmatmul.mubr.f32.gmra.mxu0 %v3610
        %v3781 = vpop.f32.mrf.mxu0
        %v3782 = vadd.f32 %v3592, %v3781
        %v3783 = vpop.f32.mrf.mxu0
        %3784 = vmatprep.mubr.f32.mxu0 0.0
        %3785 = vmatmul.mubr.f32.gmra.mxu0 %v3613
        %v3786 = vpop.f32.mrf.mxu0
        %v3787 = vadd.f32 %v3592, %v3786
        %v3788 = vpop.f32.mrf.mxu0
        %3789 = vmatprep.mubr.f32.mxu0 0.0
        %3790 = vmatmul.mubr.f32.gmra.mxu0 %v3616
        %v3791 = vpop.f32.mrf.mxu0
        %v3792 = vadd.f32 %v3592, %v3791
        %v3793 = vpop.f32.mrf.mxu0
        %3794 = vmatprep.mubr.f32.mxu0 0.0
        %3795 = vmatmul.mubr.f32.gmra.mxu0 %v3619
        %v3796 = vpop.f32.mrf.mxu0
        %v3797 = vadd.f32 %v3592, %v3796
        %v3798 = vpop.f32.mrf.mxu0
        %3799 = vmatprep.mubr.f32.mxu0 0.0
        %3800 = vmatmul.mubr.f32.gmra.mxu0 %v3622
        %v3801 = vpop.f32.mrf.mxu0
        %v3802 = vadd.f32 %v3592, %v3801
        %v3803 = vpop.f32.mrf.mxu0
        %3804 = vmatprep.mubr.f32.mxu0 0.0
        %3805 = vmatmul.mubr.f32.gmra.mxu0 %v3625
        %v3806 = vpop.f32.mrf.mxu0
        %v3807 = vadd.f32 %v3592, %v3806
        %v3808 = vpop.f32.mrf.mxu0
        %3809 = vmatprep.mubr.f32.mxu0 0.0
        %3810 = vmatmul.mubr.f32.gmra.mxu0 %v3628
        %v3811 = vpop.f32.mrf.mxu0
        %v3812 = vadd.f32 %v3592, %v3811
        %v3813 = vpop.f32.mrf.mxu0
        %3814 = vmatprep.mubr.f32.mxu0 0.0
        %3815 = vmatmul.mubr.f32.gmra.mxu0 %v3631
        %v3816 = vpop.f32.mrf.mxu0
        %v3817 = vadd.f32 %v3592, %v3816
        %v3818 = vpop.f32.mrf.mxu0
        %3819 = vmatprep.mubr.f32.mxu0 0.0
        %3820 = vmatmul.mubr.f32.gmra.mxu0 %v3634
        %v3821 = vpop.f32.mrf.mxu0
        %v3822 = vadd.f32 %v3592, %v3821
        %v3823 = vpop.f32.mrf.mxu0
        %3824 = vmatprep.mubr.f32.mxu0 0.0
        %3825 = vmatmul.mubr.f32.gmra.mxu0 %v3637
        %v3826 = vpop.f32.mrf.mxu0
        %v3827 = vadd.f32 %v3592, %v3826
        %v3828 = vpop.f32.mrf.mxu0
        %3829 = vmatprep.mubr.f32.mxu0 0.0
        %3830 = vmatmul.mubr.f32.gmra.mxu0 %v3640
        %v3831 = vpop.f32.mrf.mxu0
        %v3832 = vadd.f32 %v3592, %v3831
        %v3833 = vpop.f32.mrf.mxu0
        %3834 = vmatprep.mubr.f32.mxu0 0.0
        %3835 = vmatmul.mubr.f32.gmra.mxu0 %v3643
        %v3836 = vpop.f32.mrf.mxu0
        %v3837 = vadd.f32 %v3592, %v3836
        %v3838 = vpop.f32.mrf.mxu0
        %3839 = vmatprep.mubr.f32.mxu0 0.0
        %3840 = vmatmul.mubr.f32.gmra.mxu0 %v3646
        %v3841 = vpop.f32.mrf.mxu0
        %v3842 = vadd.f32 %v3592, %v3841
        %v3843 = vpop.f32.mrf.mxu0
        %3844 = vmatprep.mubr.f32.mxu0 0.0
        %3845 = vmatmul.mubr.f32.gmra.mxu0 %v3649
        %v3846 = vpop.f32.mrf.mxu0
        %v3847 = vadd.f32 %v3592, %v3846
        %v3848 = vpop.f32.mrf.mxu0
        %3849 = vmatprep.mubr.f32.mxu0 0.0
        %3850 = vmatmul.mubr.f32.gmra.mxu0 %v3652
        %v3851 = vpop.f32.mrf.mxu0
        %v3852 = vadd.f32 %v3592, %v3851
        %v3853 = vpop.f32.mrf.mxu0
        %3854 = vmatprep.mubr.f32.mxu0 0.0
        %3855 = vmatmul.mubr.f32.gmra.mxu0 %v3655
        %v3856 = vpop.f32.mrf.mxu0
        %v3857 = vadd.f32 %v3592, %v3856
        %v3858 = vpop.f32.mrf.mxu0
        %3859 = vmatprep.mubr.f32.mxu0 0.0
        %3860 = vmatmul.mubr.f32.gmra.mxu0 %v3658
        %v3861 = vpop.f32.mrf.mxu0
        %v3862 = vadd.f32 %v3592, %v3861
        %v3863 = vpop.f32.mrf.mxu0
        %3864 = vmatprep.mubr.f32.mxu0 0.0
        %3865 = vmatmul.mubr.f32.gmra.mxu0 %v3661
        %v3866 = vpop.f32.mrf.mxu0
        %v3867 = vadd.f32 %v3592, %v3866
        %v3868 = vpop.f32.mrf.mxu0
        %3869 = vmatprep.mubr.f32.mxu0 0.0
        %3870 = vmatmul.mubr.f32.gmra.mxu0 %v3664
        %v3871 = vpop.f32.mrf.mxu0
        %v3872 = vadd.f32 %v3592, %v3871
        %v3873 = vpop.f32.mrf.mxu0
        %3874 = vmatprep.mubr.f32.mxu0 0.0
        %3875 = vmatmul.mubr.f32.gmra.mxu0 %v3667
        %v3876 = vpop.f32.mrf.mxu0
        %v3877 = vadd.f32 %v3592, %v3876
        %v3878 = vpop.f32.mrf.mxu0
        %3879 = vmatprep.mubr.f32.mxu0 0.0
        %3880 = vmatmul.mubr.f32.gmra.mxu0 %v3670
        %v3881 = vpop.f32.mrf.mxu0
        %v3882 = vadd.f32 %v3592, %v3881
        %v3883 = vpop.f32.mrf.mxu0
        %3884 = vmatprep.mubr.f32.mxu0 0.0
        %3885 = vmatmul.mubr.f32.gmra.mxu0 %v3673
        %v3886 = vpop.f32.mrf.mxu0
        %v3887 = vadd.f32 %v3592, %v3886
        %v3888 = vpop.f32.mrf.mxu0
        %3889 = vmatprep.mubr.f32.mxu0 0.0
        %3890 = vmatmul.mubr.f32.gmra.mxu0 %v3676
        %v3891 = vpop.f32.mrf.mxu0
        %v3892 = vadd.f32 %v3592, %v3891
        %v3893 = vpop.f32.mrf.mxu0
        %3894 = vmatprep.mubr.f32.mxu0 0.0
        %3895 = vmatmul.mubr.f32.gmra.mxu0 %v3679
        %v3896 = vpop.f32.mrf.mxu0
        %v3897 = vadd.f32 %v3592, %v3896
        %v3898 = vpop.f32.mrf.mxu0
        %3899 = vmatprep.mubr.f32.mxu0 0.0
        %3900 = vmatmul.mubr.f32.gmra.mxu0 %v3682
        %v3901 = vpop.f32.mrf.mxu0
        %v3902 = vadd.f32 %v3592, %v3901
        %v3903 = vpop.f32.mrf.mxu0
        %3904 = vmatprep.mubr.f32.mxu0 0.0
        %3905 = vmatmul.mubr.f32.gmra.mxu0 %v3685
        %v3906 = vpop.f32.mrf.mxu0
        %v3907 = vadd.f32 %v3592, %v3906
        %v3908 = vpop.f32.mrf.mxu0
        %3909 = vmatprep.mubr.f32.mxu0 0.0
        %3910 = vmatmul.mubr.f32.gmra.mxu0 %v3688
        %v3911 = vpop.f32.mrf.mxu0
        %v3912 = vadd.f32 %v3592, %v3911
        %v3913 = vpop.f32.mrf.mxu0
        %3914 = vdwg.mxu0
        %3915 = vst.msk [vmem:[%s265] sm:$0xff] %vm1547, %v3757
        %3916 = vst.msk [vmem:[%s265 + $0x8] sm:$0xff] %vm1547, %v3762
        %3917 = vst.msk [vmem:[%s265 + $0x10] sm:$0xff] %vm1547, %v3767
        %3918 = vst.msk [vmem:[%s265 + $0x18] sm:$0xff] %vm1547, %v3772
        %3919 = vst.msk [vmem:[%s265 + $0x20] sm:$0xff] %vm1547, %v3777
        %3920 = vst.msk [vmem:[%s265 + $0x28] sm:$0xff] %vm1547, %v3782
        %3921 = vst.msk [vmem:[%s265 + $0x30] sm:$0xff] %vm1547, %v3787
        %3922 = vst.msk [vmem:[%s265 + $0x38] sm:$0xff] %vm1547, %v3792
        %3923 = vst.msk [vmem:[%s265 + $0x40] sm:$0xff] %vm1547, %v3797
        %3924 = vst.msk [vmem:[%s265 + $0x48] sm:$0xff] %vm1547, %v3802
        %3925 = vst.msk [vmem:[%s265 + $0x50] sm:$0xff] %vm1547, %v3807
        %3926 = vst.msk [vmem:[%s265 + $0x58] sm:$0xff] %vm1547, %v3812
        %3927 = vst.msk [vmem:[%s265 + $0x60] sm:$0xff] %vm1547, %v3817
        %3928 = vst.msk [vmem:[%s265 + $0x68] sm:$0xff] %vm1547, %v3822
        %3929 = vst.msk [vmem:[%s265 + $0x70] sm:$0xff] %vm1547, %v3827
        %3930 = vst.msk [vmem:[%s265 + $0x78] sm:$0xff] %vm1547, %v3832
        %3931 = vst.msk [vmem:[%s265 + $0x80] sm:$0xff] %vm1547, %v3837
        %3932 = vst.msk [vmem:[%s265 + $0x88] sm:$0xff] %vm1547, %v3842
        %3933 = vst.msk [vmem:[%s265 + $0x90] sm:$0xff] %vm1547, %v3847
        %3934 = vst.msk [vmem:[%s265 + $0x98] sm:$0xff] %vm1547, %v3852
        %3935 = vst.msk [vmem:[%s265 + $0xa0] sm:$0xff] %vm1547, %v3857
        %3936 = vst.msk [vmem:[%s265 + $0xa8] sm:$0xff] %vm1547, %v3862
        %3937 = vst.msk [vmem:[%s265 + $0xb0] sm:$0xff] %vm1547, %v3867
        %3938 = vst.msk [vmem:[%s265 + $0xb8] sm:$0xff] %vm1547, %v3872
        %3939 = vst.msk [vmem:[%s265 + $0xc0] sm:$0xff] %vm1547, %v3877
        %3940 = vst.msk [vmem:[%s265 + $0xc8] sm:$0xff] %vm1547, %v3882
        %3941 = vst.msk [vmem:[%s265 + $0xd0] sm:$0xff] %vm1547, %v3887
        %3942 = vst.msk [vmem:[%s265 + $0xd8] sm:$0xff] %vm1547, %v3892
        %3943 = vst.msk [vmem:[%s265 + $0xe0] sm:$0xff] %vm1547, %v3897
        %3944 = vst.msk [vmem:[%s265 + $0xe8] sm:$0xff] %vm1547, %v3902
        %3945 = vst.msk [vmem:[%s265 + $0xf0] sm:$0xff] %vm1547, %v3907
        %3946 = vst.msk [vmem:[%s265 + $0xf8] sm:$0xff] %vm1547, %v3912
        %p3947 = scmp.lt.s32.totalorder %s18, 1
        %s3948 = scalar_select %p3947, %s18, 1
        %s3949 = smul.addr %s3948, 32
        %s3950 = smul.addr %s3949, 8
        %s3951 = scalar_lea.vmem %s6, %s3950
        // Predicated region
        $region49: #{tpu_custom_call.1} parent=43 // pred_check
          %p3952 = pneg %p167
        $region50: #{tpu_custom_call.1} parent=43 // pred_check_branch
          %3954 = sbr.rel (%p3952) target = $region52
        $region51: #{tpu_custom_call.1} parent=43 // pred_region
          _
        $region52: #{tpu_custom_call.1} parent=43 // pred_fallthru
          _
      $region44: #{tpu_custom_call.1} parent=5 // pred_fallthru
        _
      %p3955 = scmp.le.s32.totalorder 2, %s13
      // Predicated region
      $region53: #{tpu_custom_call.1} parent=5 // pred_check
        %p3956 = pneg %p3955
      $region54: #{tpu_custom_call.1} parent=5 // pred_check_branch
        %3958 = sbr.rel (%p3956) target = $region56
      $region55: #{tpu_custom_call.1} parent=5 // pred_region
        %s3959 = ssub.s32 %s13, 2
        // Predicated region
        $region57: #{tpu_custom_call.1} parent=55 // pred_check
          %p3960 = pneg %p173
        $region58: #{tpu_custom_call.1} parent=55 // pred_check_branch
          %3962 = sbr.rel (%p3960) target = $region60
        $region59: #{tpu_custom_call.1} parent=55 // pred_region
          %p3963 = scmp.lt.s32.totalorder %s19, 1
          %s3964 = scalar_select %p3963, %s19, 1
          %s3965 = smul.addr %s3964, 32
          %s3966 = smul.addr %s3965, 8
          %s3967 = scalar_lea.vmem %s6, %s3966
        $region60: #{tpu_custom_call.1} parent=55 // pred_fallthru
          _
      $region56: #{tpu_custom_call.1} parent=5 // pred_fallthru
        _
    $region6: #{tpu_custom_call.1} parent=1 // loop_footer
      %s17 = sadd.s32 1, %s13
    $region7: #{tpu_custom_call.1} parent=1 // loop_footer_branch
      %12 = sbr.rel target = $region3
    $region8: #{tpu_custom_call.1} parent=1 // loop_exit
      _
    %3968 = vsyncpa [#allocation3], 1
    %s3969 = scalar_lea.sflag [#allocation3], 1
    %3970 = vsyncpa %s3969, 1

</llo_original>
